<compile_context>
chip_gen: v7x
topology: tpu7x:2x2x1
jax: 0.10.0
libtpu: 0.0.40
codegen_flags: <defaults>
</compile_context>

<pallas_src>
import functools

import jax
import jax.numpy as jnp
import numpy as np
from jax.experimental import pallas as pl
from jax.experimental.pallas import tpu as pltpu

EPS = 1e-5      # nn.BatchNorm2d default eps
LANE = 128      # lane width: channels padded to a multiple of this


# ---------------------------------------------------------------------------
# Small host helpers
# ---------------------------------------------------------------------------
def _round_up(x, m):
    return (x + m - 1) // m * m


def _vmem_limit_bytes():
    """~96 MiB on v5e/v6e (128 MiB physical), ~48 MiB on v7x (64 MiB)."""
    try:
        cap = pltpu.get_tpu_info().vmem_capacity_bytes
    except Exception:
        cap = 64 * 1024 * 1024
    return int(min(cap * 3 // 4, 100 * 1024 * 1024))


def _cout_tile(cp):
    """Cout block for the parallel grid axis (v7x: splits work across TCs)."""
    return 256 if cp % 256 == 0 else 128


def _ew_row_tile(m):
    """Large row tiles for the mem-bound final elementwise pass."""
    return m if m <= 2048 else 2048


# ---------------------------------------------------------------------------
# Pallas kernels
# ---------------------------------------------------------------------------
def _conv_stats_kernel(*refs, stride, hq, ho, wo, cin, has_sc):
    """3x3 conv (pad=1, given stride) of one image block + BN sum/ssq.

    Input block is the phase-decomposed padded image, so tap (ky, kx) is the
    contiguous slice rows [((ky%s)*s+kx%s)*hq + ky//s, +ho), cols [kx//s, +wo).
    Optionally fuses the 1x1 projection shortcut (its input == centre tap).
    Grid = (cout_blocks [parallel], batch [arbitrary: stats accumulate]).
    """
    if has_sc:
        (x_ref, w_ref, wsc_ref,
         y_ref, s_ref, q_ref, ysc_ref, ssc_ref, qsc_ref) = refs
    else:
        x_ref, w_ref, y_ref, s_ref, q_ref = refs
        wsc_ref = ysc_ref = ssc_ref = qsc_ref = None

    @pl.when(pl.program_id(1) == 0)
    def _init():
        s_ref[...] = jnp.zeros_like(s_ref)
        q_ref[...] = jnp.zeros_like(q_ref)
        if has_sc:
            ssc_ref[...] = jnp.zeros_like(ssc_ref)
            qsc_ref[...] = jnp.zeros_like(qsc_ref)

    acc = None
    center = None
    for ky in range(3):
        for kx in range(3):
            row0 = ((ky % stride) * stride + (kx % stride)) * hq + ky // stride
            col0 = kx // stride
            tap = x_ref[row0:row0 + ho, col0:col0 + wo, :].reshape(ho * wo, cin)
            if (ky, kx) == (1, 1):
                center = tap
            k0 = (ky * 3 + kx) * cin
            part = jnp.dot(tap, w_ref[k0:k0 + cin, :],
                           preferred_element_type=jnp.float32)
            acc = part if acc is None else acc + part

    y_ref[...] = acc.astype(y_ref.dtype)
    s_ref[...] += jnp.sum(acc, axis=0, keepdims=True)
    q_ref[...] += jnp.sum(acc * acc, axis=0, keepdims=True)

    if has_sc:
        acc_sc = jnp.dot(center, wsc_ref[...], preferred_element_type=jnp.float32)
        ysc_ref[...] = acc_sc.astype(ysc_ref.dtype)
        ssc_ref[...] += jnp.sum(acc_sc, axis=0, keepdims=True)
        qsc_ref[...] += jnp.sum(acc_sc * acc_sc, axis=0, keepdims=True)


def _bnrelu_conv_kernel(y1_ref, sc_ref, sh_ref, w_ref,
                        y2_ref, s_ref, q_ref, hpad_ref, *, ho, wo, cp):
    """Fused bn1 + ReLU + 3x3/stride-1 conv2 (+ BN stats) of one image block.
    `h` never leaves VMEM: it is written (bf16) into a zero-bordered scratch
    whose 9 shifted slices feed the MXU."""
    @pl.when(pl.program_id(1) == 0)
    def _init():
        s_ref[...] = jnp.zeros_like(s_ref)
        q_ref[...] = jnp.zeros_like(q_ref)
        hpad_ref[...] = jnp.zeros_like(hpad_ref)   # border stays zero forever

    h = jnp.maximum(
        y1_ref[...].astype(jnp.float32) * sc_ref[...] + sh_ref[...], 0.0)
    hpad_ref[1:ho + 1, 1:wo + 1, :] = h.reshape(ho, wo, cp).astype(hpad_ref.dtype)

    acc = None
    for ky in range(3):
        for kx in range(3):
            tap = hpad_ref[ky:ky + ho, kx:kx + wo, :].reshape(ho * wo, cp)
            k0 = (ky * 3 + kx) * cp
            part = jnp.dot(tap, w_ref[k0:k0 + cp, :],
                           preferred_element_type=jnp.float32)
            acc = part if acc is None else acc + part

    y2_ref[...] = acc.astype(y2_ref.dtype)
    s_ref[...] += jnp.sum(acc, axis=0, keepdims=True)
    q_ref[...] += jnp.sum(acc * acc, axis=0, keepdims=True)


def _bn_add_relu_kernel(y_ref, r_ref, s2_ref, b2_ref, sr_ref, br_ref, o_ref):
    """out = relu(bn2(conv2) + bn_r(residual)); identity residual uses
    scale=1 / shift=0. Inputs are bf16, math in f32 on the VPU."""
    z = y_ref[...].astype(jnp.float32) * s2_ref[...] + b2_ref[...]
    r = r_ref[...].astype(jnp.float32) * sr_ref[...] + br_ref[...]
    o_ref[...] = jnp.maximum(z + r, 0.0).astype(o_ref.dtype)


# ---------------------------------------------------------------------------
# pallas_call wrappers
# ---------------------------------------------------------------------------
def _conv1_call(xph, wmat, wsc, n, hq, wq, ho, wo, cin, cp, stride):
    tn = _cout_tile(cp)
    mimg = ho * wo
    has_sc = wsc is not None
    kernel = functools.partial(_conv_stats_kernel, stride=stride, hq=hq,
                               ho=ho, wo=wo, cin=cin, has_sc=has_sc)

    in_specs = [
        pl.BlockSpec((None, stride * stride * hq, wq, cin),
                     lambda j, i: (i, 0, 0, 0)),
        pl.BlockSpec((9 * cin, tn), lambda j, i: (0, j)),
    ]
    inputs = [xph, wmat]
    out_shape = [jax.ShapeDtypeStruct((n, mimg, cp), jnp.bfloat16),
                 jax.ShapeDtypeStruct((1, cp), jnp.float32),
                 jax.ShapeDtypeStruct((1, cp), jnp.float32)]
    out_specs = [pl.BlockSpec((None, mimg, tn), lambda j, i: (i, 0, j)),
                 pl.BlockSpec((1, tn), lambda j, i: (0, j)),
                 pl.BlockSpec((1, tn), lambda j, i: (0, j))]
    if has_sc:
        in_specs.append(pl.BlockSpec((cin, tn), lambda j, i: (0, j)))
        inputs.append(wsc)
        out_shape += [jax.ShapeDtypeStruct((n, mimg, cp), jnp.bfloat16),
                      jax.ShapeDtypeStruct((1, cp), jnp.float32),
                      jax.ShapeDtypeStruct((1, cp), jnp.float32)]
        out_specs += [pl.BlockSpec((None, mimg, tn), lambda j, i: (i, 0, j)),
                      pl.BlockSpec((1, tn), lambda j, i: (0, j)),
                      pl.BlockSpec((1, tn), lambda j, i: (0, j))]

    flops = 2 * n * mimg * (9 * cin + (cin if has_sc else 0)) * cp
    bytes_accessed = (xph.size * 2 + wmat.size * 2
                      + n * mimg * cp * 2 * (2 if has_sc else 1) + 4 * cp * 4)
    return pl.pallas_call(
        kernel,
        out_shape=tuple(out_shape),
        grid=(cp // tn, n),
        in_specs=in_specs,
        out_specs=tuple(out_specs),
        compiler_params=pltpu.CompilerParams(
            dimension_semantics=("parallel", "arbitrary"),
            vmem_limit_bytes=_vmem_limit_bytes()),
        cost_estimate=pl.CostEstimate(flops=flops, transcendentals=0,
                                      bytes_accessed=bytes_accessed),
    )(*inputs)


def _conv2_call(y1, scale1, shift1, w2m, n, ho, wo, cp):
    tn = _cout_tile(cp)
    mimg = ho * wo
    kernel = functools.partial(_bnrelu_conv_kernel, ho=ho, wo=wo, cp=cp)
    flops = 2 * n * mimg * 9 * cp * cp
    bytes_accessed = n * mimg * cp * 2 * 2 + w2m.size * 2 + 2 * cp * 4
    return pl.pallas_call(
        kernel,
        out_shape=(jax.ShapeDtypeStruct((n, mimg, cp), jnp.bfloat16),
                   jax.ShapeDtypeStruct((1, cp), jnp.float32),
                   jax.ShapeDtypeStruct((1, cp), jnp.float32)),
        grid=(cp // tn, n),
        in_specs=[pl.BlockSpec((None, mimg, cp), lambda j, i: (i, 0, 0)),
                  pl.BlockSpec((1, cp), lambda j, i: (0, 0)),
                  pl.BlockSpec((1, cp), lambda j, i: (0, 0)),
                  pl.BlockSpec((9 * cp, tn), lambda j, i: (0, j))],
        out_specs=(pl.BlockSpec((None, mimg, tn), lambda j, i: (i, 0, j)),
                   pl.BlockSpec((1, tn), lambda j, i: (0, j)),
                   pl.BlockSpec((1, tn), lambda j, i: (0, j))),
        scratch_shapes=[pltpu.VMEM((ho + 2, wo + 2, cp), jnp.bfloat16)],
        compiler_params=pltpu.CompilerParams(
            dimension_semantics=("parallel", "arbitrary"),
            vmem_limit_bytes=_vmem_limit_bytes()),
        cost_estimate=pl.CostEstimate(flops=flops, transcendentals=0,
                                      bytes_accessed=bytes_accessed),
    )(y1, scale1, shift1, w2m)


def _bn_add_relu_call(y2, resid, scale2, shift2, scale_r, shift_r, cp):
    m = y2.shape[0]
    tm = _ew_row_tile(m)
    mp = _round_up(m, tm)
    if mp != m:
        y2 = jnp.pad(y2, ((0, mp - m), (0, 0)))
        resid = jnp.pad(resid, ((0, mp - m), (0, 0)))
    return pl.pallas_call(
        _bn_add_relu_kernel,
        out_shape=jax.ShapeDtypeStruct((mp, cp), jnp.float32),
        grid=(mp // tm,),
        in_specs=[pl.BlockSpec((tm, cp), lambda i: (i, 0)),
                  pl.BlockSpec((tm, cp), lambda i: (i, 0)),
                  pl.BlockSpec((1, cp), lambda i: (0, 0)),
                  pl.BlockSpec((1, cp), lambda i: (0, 0)),
                  pl.BlockSpec((1, cp), lambda i: (0, 0)),
                  pl.BlockSpec((1, cp), lambda i: (0, 0))],
        out_specs=pl.BlockSpec((tm, cp), lambda i: (i, 0)),
        compiler_params=pltpu.CompilerParams(
            dimension_semantics=("parallel",),
            vmem_limit_bytes=_vmem_limit_bytes()),
    )(y2, resid, scale2, shift2, scale_r, shift_r)


# ---------------------------------------------------------------------------
# Host-side glue (layout only: spatial pad + phase decompose, weight reshapes,
# tiny per-channel scale/shift math from the kernel-computed sums)
# ---------------------------------------------------------------------------
def _prep_input(x_nhwc, stride):
    """Zero-pad (pad=1) and phase-decompose NHWC so every 3x3 tap at the given
    stride is a contiguous in-kernel slice:
       xph[n, (py*s+px)*Hq + i, j, c] == xpad[n, s*i+py, s*j+px, c]."""
    n, h, w, c = x_nhwc.shape
    hp = _round_up(h + 2, stride)
    wp = _round_up(w + 2, stride)
    xp = jnp.pad(x_nhwc, ((0, 0), (1, hp - h - 1), (1, wp - w - 1), (0, 0)))
    hq, wq = hp // stride, wp // stride
    xph = xp.reshape(n, hq, stride, wq, stride, c)
    xph = jnp.transpose(xph, (0, 2, 4, 1, 3, 5))
    return xph.reshape(n, stride * stride * hq, wq, c), hq, wq


def _w3x3_to_mat(w, cin_pad, cout_pad):
    """(O, I, 3, 3) -> (9*cin_pad, cout_pad), tap-major rows."""
    o, i, _, _ = w.shape
    m = jnp.transpose(w, (2, 3, 1, 0)).reshape(9, i, o)
    m = jnp.pad(m, ((0, 0), (0, cin_pad - i), (0, cout_pad - o)))
    return m.reshape(9 * cin_pad, cout_pad)


def _bn_scale_shift(s, q, gamma, beta, count):
    """Fold training-mode BN (batch stats) into per-channel scale/shift."""
    mean = s / count
    var = jnp.maximum(q / count - mean * mean, 0.0)   # guard cancellation
    scale = gamma * jax.lax.rsqrt(var + EPS)
    shift = beta - mean * scale
    return scale, shift


@functools.partial(jax.jit, static_argnames=("stride",))
def basic_block_forward(x_nchw, params, stride=1):
    x = jnp.transpose(x_nchw, (0, 2, 3, 1)).astype(jnp.float32)   # NHWC
    n, h, w, cin = x.shape
    planes = params["w1"].shape[0]
    cp = _round_up(planes, LANE)                                  # lane-dense

    ho = (h + 2 - 3) // stride + 1
    wo = (w + 2 - 3) // stride + 1
    mimg = ho * wo
    m = n * mimg

    def padc(v):
        return jnp.pad(v, (0, cp - planes)).reshape(1, cp)

    g1, b1 = padc(params["g1"]), padc(params["b1"])
    g2, b2 = padc(params["g2"]), padc(params["b2"])

    # ---- conv1 (3x3, stride) [+ fused 1x1 projection] + BN stats ------------
    xph, hq, wq = _prep_input(x.astype(jnp.bfloat16), stride)
    w1m = _w3x3_to_mat(params["w1"], cin, cp).astype(jnp.bfloat16)
    has_sc = "wsc" in params
    if has_sc:
        wscm = jnp.pad(params["wsc"][:, :, 0, 0].T,
                       ((0, 0), (0, cp - planes))).astype(jnp.bfloat16)
        y1, s1, q1, ysc, ssc, qsc = _conv1_call(
            xph, w1m, wscm, n, hq, wq, ho, wo, cin, cp, stride)
    else:
        y1, s1, q1 = _conv1_call(xph, w1m, None, n, hq, wq, ho, wo, cin, cp, stride)
    scale1, shift1 = _bn_scale_shift(s1, q1, g1, b1, m)

    # ---- fused bn1 + relu + conv2 (3x3, stride 1) + BN stats ----------------
    w2m = _w3x3_to_mat(params["w2"], cp, cp).astype(jnp.bfloat16)
    y2, s2, q2 = _conv2_call(y1, scale1, shift1, w2m, n, ho, wo, cp)
    scale2, shift2 = _bn_scale_shift(s2, q2, g2, b2, m)

    # ---- bn2 + residual + relu ----------------------------------------------
    if has_sc:
        gsc, bsc = padc(params["gsc"]), padc(params["bsc"])
        scale_r, shift_r = _bn_scale_shift(ssc, qsc, gsc, bsc, m)
        resid = ysc.reshape(m, cp)
    else:
        scale_r = jnp.ones((1, cp), jnp.float32)
        shift_r = jnp.zeros((1, cp), jnp.float32)
        resid = jnp.pad(x.reshape(m, cin),
                        ((0, 0), (0, cp - cin))).astype(jnp.bfloat16)

    out = _bn_add_relu_call(y2.reshape(m, cp), resid,
                            scale2, shift2, scale_r, shift_r, cp)
    out = out[:m, :planes].reshape(n, ho, wo, planes)
    return jnp.transpose(out, (0, 3, 1, 2))   # back to NCHW


# ---------------------------------------------------------------------------
# Pure-JAX reference (mirrors PyTorch BasicBlock.forward in train mode)
# ---------------------------------------------------------------------------
def _ref_forward(x, params, stride):
    def conv(x, w, s, pad):
        return jax.lax.conv_general_dilated(
            x, w, (s, s), ((pad, pad), (pad, pad)),
            dimension_numbers=("NCHW", "OIHW", "NCHW"))

    def bn(x, g, b):
        mu = x.mean(axis=(0, 2, 3), keepdims=True)
        v = ((x - mu) ** 2).mean(axis=(0, 2, 3), keepdims=True)
        return ((x - mu) * jax.lax.rsqrt(v + EPS) * g.reshape(1, -1, 1, 1)
                + b.reshape(1, -1, 1, 1))

    out = jax.nn.relu(bn(conv(x, params["w1"], stride, 1), params["g1"], params["b1"]))
    out = bn(conv(out, params["w2"], 1, 1), params["g2"], params["b2"])
    if "wsc" in params:
        sc = bn(conv(x, params["wsc"], stride, 0), params["gsc"], params["bsc"])
    else:
        sc = x
    return jax.nn.relu(out + sc)


# ---------------------------------------------------------------------------
# Deterministic parameter construction
# ---------------------------------------------------------------------------
def make_params(key, in_planes, planes, stride):
    ks = jax.random.split(key, 8)
    p = {
        "w1": 0.2 * jax.random.normal(ks[0], (planes, in_planes, 3, 3), jnp.float32),
        "g1": 1.0 + 0.1 * jax.random.normal(ks[1], (planes,), jnp.float32),
        "b1": 0.1 * jax.random.normal(ks[2], (planes,), jnp.float32),
        "w2": 0.2 * jax.random.normal(ks[3], (planes, planes, 3, 3), jnp.float32),
        "g2": 1.0 + 0.1 * jax.random.normal(ks[4], (planes,), jnp.float32),
        "b2": 0.1 * jax.random.normal(ks[5], (planes,), jnp.float32),
    }
    if stride != 1 or in_planes != planes:
        p["wsc"] = 0.2 * jax.random.normal(ks[6], (planes, in_planes, 1, 1), jnp.float32)
        p["gsc"] = jnp.ones((planes,), jnp.float32)
        p["bsc"] = 0.1 * jax.random.normal(ks[7], (planes,), jnp.float32)
    return p


if __name__ == "__main__":
    key = jax.random.PRNGKey(0)
    k_x1, k_p1, k_x2, k_p2 = jax.random.split(key, 4)

    # Case A: projection shortcut (in_planes=4 -> planes=8, stride=2)
    x1 = jax.random.normal(k_x1, (2, 4, 16, 16), jnp.float32)
    params1 = make_params(k_p1, in_planes=4, planes=8, stride=2)
    y1 = basic_block_forward(x1, params1, stride=2)
    jax.block_until_ready(y1)
    r1 = _ref_forward(x1, params1, 2)
    np.testing.assert_allclose(np.asarray(y1), np.asarray(r1), atol=3e-2, rtol=3e-2)

    # Case B: identity shortcut (in_planes=planes=8, stride=1)
    x2 = jax.random.normal(k_x2, (2, 8, 16, 16), jnp.float32)
    params2 = make_params(k_p2, in_planes=8, planes=8, stride=1)
    y2 = basic_block_forward(x2, params2, stride=1)
    jax.block_until_ready(y2)
    r2 = _ref_forward(x2, params2, 1)
    np.testing.assert_allclose(np.asarray(y2), np.asarray(r2), atol=3e-2, rtol=3e-2)

    print("KERNEL_OK")
</pallas_src>

<mosaic_0001>
module attributes {stable_mosaic.version = 11 : i64} {
  func.func @_bnrelu_conv_kernel(%arg0: i32, %arg1: i32, %arg2: memref<1x64x128xbf16, #tpu.memory_space<vmem>>, %arg3: memref<1x128xf32, #tpu.memory_space<vmem>>, %arg4: memref<1x128xf32, #tpu.memory_space<vmem>>, %arg5: memref<1152x128xbf16, #tpu.memory_space<vmem>>, %arg6: memref<1x64x128xbf16, #tpu.memory_space<vmem>>, %arg7: memref<1x128xf32, #tpu.memory_space<vmem>>, %arg8: memref<1x128xf32, #tpu.memory_space<vmem>>, %arg9: memref<10x10x128xbf16, #tpu.memory_space<vmem>>) attributes {dimension_semantics = [#tpu.dimension_semantics<parallel>, #tpu.dimension_semantics<arbitrary>], iteration_bounds = array<i64: 1, 2>, scalar_prefetch = 0 : i64, scratch_operands = 1 : i64, tpu.core_type = #tpu.core_type<tc>, window_params = [{transform_indices = @transform_0, window_bounds = array<i64: 1, 64, 128>}, {pipeline_mode = #tpu.pipeline_mode<synchronous>, transform_indices = @transform_1, window_bounds = array<i64: 1, 128>}, {pipeline_mode = #tpu.pipeline_mode<synchronous>, transform_indices = @transform_2, window_bounds = array<i64: 1, 128>}, {transform_indices = @transform_3, window_bounds = array<i64: 1152, 128>}, {transform_indices = @transform_4, window_bounds = array<i64: 1, 64, 128>}, {transform_indices = @transform_5, window_bounds = array<i64: 1, 128>}, {transform_indices = @transform_6, window_bounds = array<i64: 1, 128>}]} {
    %c0_i32 = arith.constant 0 : i32
    %0 = arith.cmpi eq, %arg1, %c0_i32 : i32
    %1 = arith.extui %0 : i1 to i32
    %c0_i32_0 = arith.constant 0 : i32
    %2 = arith.cmpi ne, %1, %c0_i32_0 : i32
    scf.if %2 {
      %cst_67 = arith.constant 0.000000e+00 : f32
      %76 = vector.broadcast %cst_67 : f32 to vector<1x128xf32>
      %c0_68 = arith.constant 0 : index
      %c0_69 = arith.constant 0 : index
      %77 = vector.load %arg7[%c0_68, %c0_69] : memref<1x128xf32, #tpu.memory_space<vmem>>, vector<1x128xf32>
      tpu.vector_store %arg7[%c0_68, %c0_69], %76 {strides = array<i32>} : memref<1x128xf32, #tpu.memory_space<vmem>>, vector<1x128xf32>,
      %cst_70 = arith.constant 0.000000e+00 : f32
      %78 = vector.broadcast %cst_70 : f32 to vector<1x128xf32>
      %c0_71 = arith.constant 0 : index
      %c0_72 = arith.constant 0 : index
      %79 = vector.load %arg8[%c0_71, %c0_72] : memref<1x128xf32, #tpu.memory_space<vmem>>, vector<1x128xf32>
      tpu.vector_store %arg8[%c0_71, %c0_72], %78 {strides = array<i32>} : memref<1x128xf32, #tpu.memory_space<vmem>>, vector<1x128xf32>,
      %cst_73 = arith.constant 0.000000e+00 : bf16
      %80 = vector.broadcast %cst_73 : bf16 to vector<10x10x128xbf16>
      %c0_74 = arith.constant 0 : index
      %c0_75 = arith.constant 0 : index
      %c0_76 = arith.constant 0 : index
      %81 = vector.load %arg9[%c0_74, %c0_75, %c0_76] : memref<10x10x128xbf16, #tpu.memory_space<vmem>>, vector<10x10x128xbf16>
      tpu.vector_store %arg9[%c0_74, %c0_75, %c0_76], %80 {strides = array<i32>} : memref<10x10x128xbf16, #tpu.memory_space<vmem>>, vector<10x10x128xbf16>,
    } else {
    }
    %c0 = arith.constant 0 : index
    %c0_1 = arith.constant 0 : index
    %c0_2 = arith.constant 0 : index
    %3 = vector.load %arg2[%c0, %c0_1, %c0_2] : memref<1x64x128xbf16, #tpu.memory_space<vmem>>, vector<1x64x128xbf16>
    %4 = vector.shape_cast %3 : vector<1x64x128xbf16> to vector<64x128xbf16>
    %5 = arith.extf %4 : vector<64x128xbf16> to vector<64x128xf32>
    %c0_3 = arith.constant 0 : index
    %c0_4 = arith.constant 0 : index
    %6 = vector.load %arg3[%c0_3, %c0_4] : memref<1x128xf32, #tpu.memory_space<vmem>>, vector<1x128xf32>
    %7 = vector.broadcast %6 : vector<1x128xf32> to vector<64x128xf32>
    %8 = arith.mulf %5, %7 : vector<64x128xf32>
    %c0_5 = arith.constant 0 : index
    %c0_6 = arith.constant 0 : index
    %9 = vector.load %arg4[%c0_5, %c0_6] : memref<1x128xf32, #tpu.memory_space<vmem>>, vector<1x128xf32>
    %10 = vector.broadcast %9 : vector<1x128xf32> to vector<64x128xf32>
    %11 = arith.addf %8, %10 : vector<64x128xf32>
    %cst = arith.constant 0.000000e+00 : f32
    %12 = vector.broadcast %cst : f32 to vector<64x128xf32>
    %13 = arith.maximumf %11, %12 : vector<64x128xf32>
    %14 = vector.shape_cast %13 : vector<64x128xf32> to vector<8x8x128xf32>
    %15 = arith.truncf %14 : vector<8x8x128xf32> to vector<8x8x128xbf16>
    %c1 = arith.constant 1 : index
    %c1_7 = arith.constant 1 : index
    %c0_8 = arith.constant 0 : index
    %16 = vector.load %arg9[%c1, %c1_7, %c0_8] : memref<10x10x128xbf16, #tpu.memory_space<vmem>>, vector<8x8x128xbf16>
    tpu.vector_store %arg9[%c1, %c1_7, %c0_8], %15 {strides = array<i32>} : memref<10x10x128xbf16, #tpu.memory_space<vmem>>, vector<8x8x128xbf16>,
    %c0_9 = arith.constant 0 : index
    %c0_10 = arith.constant 0 : index
    %c0_11 = arith.constant 0 : index
    %17 = vector.load %arg9[%c0_9, %c0_10, %c0_11] : memref<10x10x128xbf16, #tpu.memory_space<vmem>>, vector<8x8x128xbf16>
    %18 = vector.shape_cast %17 : vector<8x8x128xbf16> to vector<64x128xbf16>
    %c0_12 = arith.constant 0 : index
    %c0_13 = arith.constant 0 : index
    %19 = vector.load %arg5[%c0_12, %c0_13] : memref<1152x128xbf16, #tpu.memory_space<vmem>>, vector<128x128xbf16>
    %cst_14 = arith.constant dense<0.000000e+00> : vector<64x128xf32>
    %20 = tpu.matmul %18, %19, %cst_14 {dimension_numbers = #tpu.dot_dimension_numbers<[1], [0], [0], [1], [0, 0, 1, 1], [], []>} : vector<64x128xbf16>, vector<128x128xbf16>, vector<64x128xf32> -> vector<64x128xf32>
    %c0_15 = arith.constant 0 : index
    %c1_16 = arith.constant 1 : index
    %c0_17 = arith.constant 0 : index
    %21 = vector.load %arg9[%c0_15, %c1_16, %c0_17] : memref<10x10x128xbf16, #tpu.memory_space<vmem>>, vector<8x8x128xbf16>
    %22 = vector.shape_cast %21 : vector<8x8x128xbf16> to vector<64x128xbf16>
    %c128 = arith.constant 128 : index
    %c0_18 = arith.constant 0 : index
    %23 = vector.load %arg5[%c128, %c0_18] : memref<1152x128xbf16, #tpu.memory_space<vmem>>, vector<128x128xbf16>
    %cst_19 = arith.constant dense<0.000000e+00> : vector<64x128xf32>
    %24 = tpu.matmul %22, %23, %cst_19 {dimension_numbers = #tpu.dot_dimension_numbers<[1], [0], [0], [1], [0, 0, 1, 1], [], []>} : vector<64x128xbf16>, vector<128x128xbf16>, vector<64x128xf32> -> vector<64x128xf32>
    %25 = arith.addf %20, %24 : vector<64x128xf32>
    %c0_20 = arith.constant 0 : index
    %c2 = arith.constant 2 : index
    %c0_21 = arith.constant 0 : index
    %26 = vector.load %arg9[%c0_20, %c2, %c0_21] : memref<10x10x128xbf16, #tpu.memory_space<vmem>>, vector<8x8x128xbf16>
    %27 = vector.shape_cast %26 : vector<8x8x128xbf16> to vector<64x128xbf16>
    %c256 = arith.constant 256 : index
    %c0_22 = arith.constant 0 : index
    %28 = vector.load %arg5[%c256, %c0_22] : memref<1152x128xbf16, #tpu.memory_space<vmem>>, vector<128x128xbf16>
    %cst_23 = arith.constant dense<0.000000e+00> : vector<64x128xf32>
    %29 = tpu.matmul %27, %28, %cst_23 {dimension_numbers = #tpu.dot_dimension_numbers<[1], [0], [0], [1], [0, 0, 1, 1], [], []>} : vector<64x128xbf16>, vector<128x128xbf16>, vector<64x128xf32> -> vector<64x128xf32>
    %30 = arith.addf %25, %29 : vector<64x128xf32>
    %c1_24 = arith.constant 1 : index
    %c0_25 = arith.constant 0 : index
    %c0_26 = arith.constant 0 : index
    %31 = vector.load %arg9[%c1_24, %c0_25, %c0_26] : memref<10x10x128xbf16, #tpu.memory_space<vmem>>, vector<8x8x128xbf16>
    %32 = vector.shape_cast %31 : vector<8x8x128xbf16> to vector<64x128xbf16>
    %c384 = arith.constant 384 : index
    %c0_27 = arith.constant 0 : index
    %33 = vector.load %arg5[%c384, %c0_27] : memref<1152x128xbf16, #tpu.memory_space<vmem>>, vector<128x128xbf16>
    %cst_28 = arith.constant dense<0.000000e+00> : vector<64x128xf32>
    %34 = tpu.matmul %32, %33, %cst_28 {dimension_numbers = #tpu.dot_dimension_numbers<[1], [0], [0], [1], [0, 0, 1, 1], [], []>} : vector<64x128xbf16>, vector<128x128xbf16>, vector<64x128xf32> -> vector<64x128xf32>
    %35 = arith.addf %30, %34 : vector<64x128xf32>
    %c1_29 = arith.constant 1 : index
    %c1_30 = arith.constant 1 : index
    %c0_31 = arith.constant 0 : index
    %36 = vector.load %arg9[%c1_29, %c1_30, %c0_31] : memref<10x10x128xbf16, #tpu.memory_space<vmem>>, vector<8x8x128xbf16>
    %37 = vector.shape_cast %36 : vector<8x8x128xbf16> to vector<64x128xbf16>
    %c512 = arith.constant 512 : index
    %c0_32 = arith.constant 0 : index
    %38 = vector.load %arg5[%c512, %c0_32] : memref<1152x128xbf16, #tpu.memory_space<vmem>>, vector<128x128xbf16>
    %cst_33 = arith.constant dense<0.000000e+00> : vector<64x128xf32>
    %39 = tpu.matmul %37, %38, %cst_33 {dimension_numbers = #tpu.dot_dimension_numbers<[1], [0], [0], [1], [0, 0, 1, 1], [], []>} : vector<64x128xbf16>, vector<128x128xbf16>, vector<64x128xf32> -> vector<64x128xf32>
    %40 = arith.addf %35, %39 : vector<64x128xf32>
    %c1_34 = arith.constant 1 : index
    %c2_35 = arith.constant 2 : index
    %c0_36 = arith.constant 0 : index
    %41 = vector.load %arg9[%c1_34, %c2_35, %c0_36] : memref<10x10x128xbf16, #tpu.memory_space<vmem>>, vector<8x8x128xbf16>
    %42 = vector.shape_cast %41 : vector<8x8x128xbf16> to vector<64x128xbf16>
    %c640 = arith.constant 640 : index
    %c0_37 = arith.constant 0 : index
    %43 = vector.load %arg5[%c640, %c0_37] : memref<1152x128xbf16, #tpu.memory_space<vmem>>, vector<128x128xbf16>
    %cst_38 = arith.constant dense<0.000000e+00> : vector<64x128xf32>
    %44 = tpu.matmul %42, %43, %cst_38 {dimension_numbers = #tpu.dot_dimension_numbers<[1], [0], [0], [1], [0, 0, 1, 1], [], []>} : vector<64x128xbf16>, vector<128x128xbf16>, vector<64x128xf32> -> vector<64x128xf32>
    %45 = arith.addf %40, %44 : vector<64x128xf32>
    %c2_39 = arith.constant 2 : index
    %c0_40 = arith.constant 0 : index
    %c0_41 = arith.constant 0 : index
    %46 = vector.load %arg9[%c2_39, %c0_40, %c0_41] : memref<10x10x128xbf16, #tpu.memory_space<vmem>>, vector<8x8x128xbf16>
    %47 = vector.shape_cast %46 : vector<8x8x128xbf16> to vector<64x128xbf16>
    %c768 = arith.constant 768 : index
    %c0_42 = arith.constant 0 : index
    %48 = vector.load %arg5[%c768, %c0_42] : memref<1152x128xbf16, #tpu.memory_space<vmem>>, vector<128x128xbf16>
    %cst_43 = arith.constant dense<0.000000e+00> : vector<64x128xf32>
    %49 = tpu.matmul %47, %48, %cst_43 {dimension_numbers = #tpu.dot_dimension_numbers<[1], [0], [0], [1], [0, 0, 1, 1], [], []>} : vector<64x128xbf16>, vector<128x128xbf16>, vector<64x128xf32> -> vector<64x128xf32>
    %50 = arith.addf %45, %49 : vector<64x128xf32>
    %c2_44 = arith.constant 2 : index
    %c1_45 = arith.constant 1 : index
    %c0_46 = arith.constant 0 : index
    %51 = vector.load %arg9[%c2_44, %c1_45, %c0_46] : memref<10x10x128xbf16, #tpu.memory_space<vmem>>, vector<8x8x128xbf16>
    %52 = vector.shape_cast %51 : vector<8x8x128xbf16> to vector<64x128xbf16>
    %c896 = arith.constant 896 : index
    %c0_47 = arith.constant 0 : index
    %53 = vector.load %arg5[%c896, %c0_47] : memref<1152x128xbf16, #tpu.memory_space<vmem>>, vector<128x128xbf16>
    %cst_48 = arith.constant dense<0.000000e+00> : vector<64x128xf32>
    %54 = tpu.matmul %52, %53, %cst_48 {dimension_numbers = #tpu.dot_dimension_numbers<[1], [0], [0], [1], [0, 0, 1, 1], [], []>} : vector<64x128xbf16>, vector<128x128xbf16>, vector<64x128xf32> -> vector<64x128xf32>
    %55 = arith.addf %50, %54 : vector<64x128xf32>
    %c2_49 = arith.constant 2 : index
    %c2_50 = arith.constant 2 : index
    %c0_51 = arith.constant 0 : index
    %56 = vector.load %arg9[%c2_49, %c2_50, %c0_51] : memref<10x10x128xbf16, #tpu.memory_space<vmem>>, vector<8x8x128xbf16>
    %57 = vector.shape_cast %56 : vector<8x8x128xbf16> to vector<64x128xbf16>
    %c1024 = arith.constant 1024 : index
    %c0_52 = arith.constant 0 : index
    %58 = vector.load %arg5[%c1024, %c0_52] : memref<1152x128xbf16, #tpu.memory_space<vmem>>, vector<128x128xbf16>
    %cst_53 = arith.constant dense<0.000000e+00> : vector<64x128xf32>
    %59 = tpu.matmul %57, %58, %cst_53 {dimension_numbers = #tpu.dot_dimension_numbers<[1], [0], [0], [1], [0, 0, 1, 1], [], []>} : vector<64x128xbf16>, vector<128x128xbf16>, vector<64x128xf32> -> vector<64x128xf32>
    %60 = arith.addf %55, %59 : vector<64x128xf32>
    %61 = arith.truncf %60 : vector<64x128xf32> to vector<64x128xbf16>
    %c0_54 = arith.constant 0 : index
    %c0_55 = arith.constant 0 : index
    %c0_56 = arith.constant 0 : index
    %62 = vector.load %arg6[%c0_54, %c0_55, %c0_56] : memref<1x64x128xbf16, #tpu.memory_space<vmem>>, vector<1x64x128xbf16>
    %63 = vector.shape_cast %62 : vector<1x64x128xbf16> to vector<64x128xbf16>
    %64 = vector.shape_cast %61 : vector<64x128xbf16> to vector<1x64x128xbf16>
    tpu.vector_store %arg6[%c0_54, %c0_55, %c0_56], %64 {strides = array<i32>} : memref<1x64x128xbf16, #tpu.memory_space<vmem>>, vector<1x64x128xbf16>,
    %c0_57 = arith.constant 0 : index
    %c0_58 = arith.constant 0 : index
    %65 = vector.load %arg7[%c0_57, %c0_58] : memref<1x128xf32, #tpu.memory_space<vmem>>, vector<1x128xf32>
    %cst_59 = arith.constant dense<0.000000e+00> : vector<128xf32>
    %66 = vector.multi_reduction <add>, %60, %cst_59 [0] : vector<64x128xf32> to vector<128xf32>
    %67 = vector.shape_cast %66 : vector<128xf32> to vector<1x128xf32>
    %68 = arith.addf %65, %67 : vector<1x128xf32>
    %c0_60 = arith.constant 0 : index
    %c0_61 = arith.constant 0 : index
    %69 = vector.load %arg7[%c0_60, %c0_61] : memref<1x128xf32, #tpu.memory_space<vmem>>, vector<1x128xf32>
    tpu.vector_store %arg7[%c0_60, %c0_61], %68 {strides = array<i32>} : memref<1x128xf32, #tpu.memory_space<vmem>>, vector<1x128xf32>,
    %c0_62 = arith.constant 0 : index
    %c0_63 = arith.constant 0 : index
    %70 = vector.load %arg8[%c0_62, %c0_63] : memref<1x128xf32, #tpu.memory_space<vmem>>, vector<1x128xf32>
    %71 = arith.mulf %60, %60 : vector<64x128xf32>
    %cst_64 = arith.constant dense<0.000000e+00> : vector<128xf32>
    %72 = vector.multi_reduction <add>, %71, %cst_64 [0] : vector<64x128xf32> to vector<128xf32>
    %73 = vector.shape_cast %72 : vector<128xf32> to vector<1x128xf32>
    %74 = arith.addf %70, %73 : vector<1x128xf32>
    %c0_65 = arith.constant 0 : index
    %c0_66 = arith.constant 0 : index
    %75 = vector.load %arg8[%c0_65, %c0_66] : memref<1x128xf32, #tpu.memory_space<vmem>>, vector<1x128xf32>
    tpu.vector_store %arg8[%c0_65, %c0_66], %74 {strides = array<i32>} : memref<1x128xf32, #tpu.memory_space<vmem>>, vector<1x128xf32>,
    return
  }
  func.func @transform_0(%arg0: i32, %arg1: i32) -> (i32, i32, i32) {
    %c0_i32 = arith.constant 0 : i32
    %c0_i32_0 = arith.constant 0 : i32
    %c0_i32_1 = arith.constant 0 : i32
    return %arg1, %c0_i32, %c0_i32_0 : i32, i32, i32
  }
  func.func @transform_1(%arg0: i32, %arg1: i32) -> (i32, i32) {
    %c0_i32 = arith.constant 0 : i32
    %c0_i32_0 = arith.constant 0 : i32
    %c0_i32_1 = arith.constant 0 : i32
    return %c0_i32, %c0_i32_0 : i32, i32
  }
  func.func @transform_2(%arg0: i32, %arg1: i32) -> (i32, i32) {
    %c0_i32 = arith.constant 0 : i32
    %c0_i32_0 = arith.constant 0 : i32
    %c0_i32_1 = arith.constant 0 : i32
    return %c0_i32, %c0_i32_0 : i32, i32
  }
  func.func @transform_3(%arg0: i32, %arg1: i32) -> (i32, i32) {
    %c0_i32 = arith.constant 0 : i32
    %c0_i32_0 = arith.constant 0 : i32
    return %c0_i32, %arg0 : i32, i32
  }
  func.func @transform_4(%arg0: i32, %arg1: i32) -> (i32, i32, i32) {
    %c0_i32 = arith.constant 0 : i32
    %c0_i32_0 = arith.constant 0 : i32
    return %arg1, %c0_i32, %arg0 : i32, i32, i32
  }
  func.func @transform_5(%arg0: i32, %arg1: i32) -> (i32, i32) {
    %c0_i32 = arith.constant 0 : i32
    %c0_i32_0 = arith.constant 0 : i32
    return %c0_i32, %arg0 : i32, i32
  }
  func.func @transform_6(%arg0: i32, %arg1: i32) -> (i32, i32) {
    %c0_i32 = arith.constant 0 : i32
    %c0_i32_0 = arith.constant 0 : i32
    return %c0_i32, %arg0 : i32, i32
  }
}

module attributes {stable_mosaic.version = 11 : i64} {
  func.func @_conv_stats_kernel(%arg0: i32, %arg1: i32, %arg2: memref<1x36x9x4xbf16, #tpu.memory_space<vmem>>, %arg3: memref<36x128xbf16, #tpu.memory_space<vmem>>, %arg4: memref<4x128xbf16, #tpu.memory_space<vmem>>, %arg5: memref<1x64x128xbf16, #tpu.memory_space<vmem>>, %arg6: memref<1x128xf32, #tpu.memory_space<vmem>>, %arg7: memref<1x128xf32, #tpu.memory_space<vmem>>, %arg8: memref<1x64x128xbf16, #tpu.memory_space<vmem>>, %arg9: memref<1x128xf32, #tpu.memory_space<vmem>>, %arg10: memref<1x128xf32, #tpu.memory_space<vmem>>) attributes {dimension_semantics = [#tpu.dimension_semantics<parallel>, #tpu.dimension_semantics<arbitrary>], iteration_bounds = array<i64: 1, 2>, scalar_prefetch = 0 : i64, scratch_operands = 0 : i64, tpu.core_type = #tpu.core_type<tc>, window_params = [{transform_indices = @transform_0, window_bounds = array<i64: 1, 36, 9, 4>}, {transform_indices = @transform_1, window_bounds = array<i64: 36, 128>}, {transform_indices = @transform_2, window_bounds = array<i64: 4, 128>}, {transform_indices = @transform_3, window_bounds = array<i64: 1, 64, 128>}, {transform_indices = @transform_4, window_bounds = array<i64: 1, 128>}, {transform_indices = @transform_5, window_bounds = array<i64: 1, 128>}, {transform_indices = @transform_6, window_bounds = array<i64: 1, 64, 128>}, {transform_indices = @transform_7, window_bounds = array<i64: 1, 128>}, {transform_indices = @transform_8, window_bounds = array<i64: 1, 128>}]} {
    %c0_i32 = arith.constant 0 : i32
    %0 = arith.cmpi eq, %arg1, %c0_i32 : i32
    %1 = arith.extui %0 : i1 to i32
    %c0_i32_0 = arith.constant 0 : i32
    %2 = arith.cmpi ne, %1, %c0_i32_0 : i32
    scf.if %2 {
      %cst_78 = arith.constant 0.000000e+00 : f32
      %88 = vector.broadcast %cst_78 : f32 to vector<1x128xf32>
      %c0_79 = arith.constant 0 : index
      %c0_80 = arith.constant 0 : index
      %89 = vector.load %arg6[%c0_79, %c0_80] : memref<1x128xf32, #tpu.memory_space<vmem>>, vector<1x128xf32>
      tpu.vector_store %arg6[%c0_79, %c0_80], %88 {strides = array<i32>} : memref<1x128xf32, #tpu.memory_space<vmem>>, vector<1x128xf32>,
      %cst_81 = arith.constant 0.000000e+00 : f32
      %90 = vector.broadcast %cst_81 : f32 to vector<1x128xf32>
      %c0_82 = arith.constant 0 : index
      %c0_83 = arith.constant 0 : index
      %91 = vector.load %arg7[%c0_82, %c0_83] : memref<1x128xf32, #tpu.memory_space<vmem>>, vector<1x128xf32>
      tpu.vector_store %arg7[%c0_82, %c0_83], %90 {strides = array<i32>} : memref<1x128xf32, #tpu.memory_space<vmem>>, vector<1x128xf32>,
      %cst_84 = arith.constant 0.000000e+00 : f32
      %92 = vector.broadcast %cst_84 : f32 to vector<1x128xf32>
      %c0_85 = arith.constant 0 : index
      %c0_86 = arith.constant 0 : index
      %93 = vector.load %arg9[%c0_85, %c0_86] : memref<1x128xf32, #tpu.memory_space<vmem>>, vector<1x128xf32>
      tpu.vector_store %arg9[%c0_85, %c0_86], %92 {strides = array<i32>} : memref<1x128xf32, #tpu.memory_space<vmem>>, vector<1x128xf32>,
      %cst_87 = arith.constant 0.000000e+00 : f32
      %94 = vector.broadcast %cst_87 : f32 to vector<1x128xf32>
      %c0_88 = arith.constant 0 : index
      %c0_89 = arith.constant 0 : index
      %95 = vector.load %arg10[%c0_88, %c0_89] : memref<1x128xf32, #tpu.memory_space<vmem>>, vector<1x128xf32>
      tpu.vector_store %arg10[%c0_88, %c0_89], %94 {strides = array<i32>} : memref<1x128xf32, #tpu.memory_space<vmem>>, vector<1x128xf32>,
    } else {
    }
    %c0 = arith.constant 0 : index
    %c0_1 = arith.constant 0 : index
    %c0_2 = arith.constant 0 : index
    %c0_3 = arith.constant 0 : index
    %3 = vector.load %arg2[%c0, %c0_1, %c0_2, %c0_3] : memref<1x36x9x4xbf16, #tpu.memory_space<vmem>>, vector<1x8x8x4xbf16>
    %4 = vector.shape_cast %3 : vector<1x8x8x4xbf16> to vector<8x8x4xbf16>
    %5 = vector.shape_cast %4 : vector<8x8x4xbf16> to vector<64x4xbf16>
    %c0_4 = arith.constant 0 : index
    %c0_5 = arith.constant 0 : index
    %6 = vector.load %arg3[%c0_4, %c0_5] : memref<36x128xbf16, #tpu.memory_space<vmem>>, vector<4x128xbf16>
    %cst = arith.constant dense<0.000000e+00> : vector<64x128xf32>
    %7 = tpu.matmul %5, %6, %cst {dimension_numbers = #tpu.dot_dimension_numbers<[1], [0], [0], [1], [0, 0, 1, 1], [], []>} : vector<64x4xbf16>, vector<4x128xbf16>, vector<64x128xf32> -> vector<64x128xf32>
    %c0_6 = arith.constant 0 : index
    %c9 = arith.constant 9 : index
    %c0_7 = arith.constant 0 : index
    %c0_8 = arith.constant 0 : index
    %8 = vector.load %arg2[%c0_6, %c9, %c0_7, %c0_8] : memref<1x36x9x4xbf16, #tpu.memory_space<vmem>>, vector<1x8x8x4xbf16>
    %9 = vector.shape_cast %8 : vector<1x8x8x4xbf16> to vector<8x8x4xbf16>
    %10 = vector.shape_cast %9 : vector<8x8x4xbf16> to vector<64x4xbf16>
    %c4 = arith.constant 4 : index
    %c0_9 = arith.constant 0 : index
    %11 = vector.load %arg3[%c4, %c0_9] : memref<36x128xbf16, #tpu.memory_space<vmem>>, vector<4x128xbf16>
    %cst_10 = arith.constant dense<0.000000e+00> : vector<64x128xf32>
    %12 = tpu.matmul %10, %11, %cst_10 {dimension_numbers = #tpu.dot_dimension_numbers<[1], [0], [0], [1], [0, 0, 1, 1], [], []>} : vector<64x4xbf16>, vector<4x128xbf16>, vector<64x128xf32> -> vector<64x128xf32>
    %13 = arith.addf %7, %12 : vector<64x128xf32>
    %c0_11 = arith.constant 0 : index
    %c0_12 = arith.constant 0 : index
    %c1 = arith.constant 1 : index
    %c0_13 = arith.constant 0 : index
    %14 = vector.load %arg2[%c0_11, %c0_12, %c1, %c0_13] : memref<1x36x9x4xbf16, #tpu.memory_space<vmem>>, vector<1x8x8x4xbf16>
    %15 = vector.shape_cast %14 : vector<1x8x8x4xbf16> to vector<8x8x4xbf16>
    %16 = vector.shape_cast %15 : vector<8x8x4xbf16> to vector<64x4xbf16>
    %c8 = arith.constant 8 : index
    %c0_14 = arith.constant 0 : index
    %17 = vector.load %arg3[%c8, %c0_14] : memref<36x128xbf16, #tpu.memory_space<vmem>>, vector<4x128xbf16>
    %cst_15 = arith.constant dense<0.000000e+00> : vector<64x128xf32>
    %18 = tpu.matmul %16, %17, %cst_15 {dimension_numbers = #tpu.dot_dimension_numbers<[1], [0], [0], [1], [0, 0, 1, 1], [], []>} : vector<64x4xbf16>, vector<4x128xbf16>, vector<64x128xf32> -> vector<64x128xf32>
    %19 = arith.addf %13, %18 : vector<64x128xf32>
    %c0_16 = arith.constant 0 : index
    %c18 = arith.constant 18 : index
    %c0_17 = arith.constant 0 : index
    %c0_18 = arith.constant 0 : index
    %20 = vector.load %arg2[%c0_16, %c18, %c0_17, %c0_18] : memref<1x36x9x4xbf16, #tpu.memory_space<vmem>>, vector<1x8x8x4xbf16>
    %21 = vector.shape_cast %20 : vector<1x8x8x4xbf16> to vector<8x8x4xbf16>
    %22 = vector.shape_cast %21 : vector<8x8x4xbf16> to vector<64x4xbf16>
    %c12 = arith.constant 12 : index
    %c0_19 = arith.constant 0 : index
    %23 = vector.load %arg3[%c12, %c0_19] : memref<36x128xbf16, #tpu.memory_space<vmem>>, vector<4x128xbf16>
    %cst_20 = arith.constant dense<0.000000e+00> : vector<64x128xf32>
    %24 = tpu.matmul %22, %23, %cst_20 {dimension_numbers = #tpu.dot_dimension_numbers<[1], [0], [0], [1], [0, 0, 1, 1], [], []>} : vector<64x4xbf16>, vector<4x128xbf16>, vector<64x128xf32> -> vector<64x128xf32>
    %25 = arith.addf %19, %24 : vector<64x128xf32>
    %c0_21 = arith.constant 0 : index
    %c27 = arith.constant 27 : index
    %c0_22 = arith.constant 0 : index
    %c0_23 = arith.constant 0 : index
    %26 = vector.load %arg2[%c0_21, %c27, %c0_22, %c0_23] : memref<1x36x9x4xbf16, #tpu.memory_space<vmem>>, vector<1x8x8x4xbf16>
    %27 = vector.shape_cast %26 : vector<1x8x8x4xbf16> to vector<8x8x4xbf16>
    %28 = vector.shape_cast %27 : vector<8x8x4xbf16> to vector<64x4xbf16>
    %c16 = arith.constant 16 : index
    %c0_24 = arith.constant 0 : index
    %29 = vector.load %arg3[%c16, %c0_24] : memref<36x128xbf16, #tpu.memory_space<vmem>>, vector<4x128xbf16>
    %cst_25 = arith.constant dense<0.000000e+00> : vector<64x128xf32>
    %30 = tpu.matmul %28, %29, %cst_25 {dimension_numbers = #tpu.dot_dimension_numbers<[1], [0], [0], [1], [0, 0, 1, 1], [], []>} : vector<64x4xbf16>, vector<4x128xbf16>, vector<64x128xf32> -> vector<64x128xf32>
    %31 = arith.addf %25, %30 : vector<64x128xf32>
    %c0_26 = arith.constant 0 : index
    %c18_27 = arith.constant 18 : index
    %c1_28 = arith.constant 1 : index
    %c0_29 = arith.constant 0 : index
    %32 = vector.load %arg2[%c0_26, %c18_27, %c1_28, %c0_29] : memref<1x36x9x4xbf16, #tpu.memory_space<vmem>>, vector<1x8x8x4xbf16>
    %33 = vector.shape_cast %32 : vector<1x8x8x4xbf16> to vector<8x8x4xbf16>
    %34 = vector.shape_cast %33 : vector<8x8x4xbf16> to vector<64x4xbf16>
    %c20 = arith.constant 20 : index
    %c0_30 = arith.constant 0 : index
    %35 = vector.load %arg3[%c20, %c0_30] : memref<36x128xbf16, #tpu.memory_space<vmem>>, vector<4x128xbf16>
    %cst_31 = arith.constant dense<0.000000e+00> : vector<64x128xf32>
    %36 = tpu.matmul %34, %35, %cst_31 {dimension_numbers = #tpu.dot_dimension_numbers<[1], [0], [0], [1], [0, 0, 1, 1], [], []>} : vector<64x4xbf16>, vector<4x128xbf16>, vector<64x128xf32> -> vector<64x128xf32>
    %37 = arith.addf %31, %36 : vector<64x128xf32>
    %c0_32 = arith.constant 0 : index
    %c1_33 = arith.constant 1 : index
    %c0_34 = arith.constant 0 : index
    %c0_35 = arith.constant 0 : index
    %38 = vector.load %arg2[%c0_32, %c1_33, %c0_34, %c0_35] : memref<1x36x9x4xbf16, #tpu.memory_space<vmem>>, vector<1x8x8x4xbf16>
    %39 = vector.shape_cast %38 : vector<1x8x8x4xbf16> to vector<8x8x4xbf16>
    %40 = vector.shape_cast %39 : vector<8x8x4xbf16> to vector<64x4xbf16>
    %c24 = arith.constant 24 : index
    %c0_36 = arith.constant 0 : index
    %41 = vector.load %arg3[%c24, %c0_36] : memref<36x128xbf16, #tpu.memory_space<vmem>>, vector<4x128xbf16>
    %cst_37 = arith.constant dense<0.000000e+00> : vector<64x128xf32>
    %42 = tpu.matmul %40, %41, %cst_37 {dimension_numbers = #tpu.dot_dimension_numbers<[1], [0], [0], [1], [0, 0, 1, 1], [], []>} : vector<64x4xbf16>, vector<4x128xbf16>, vector<64x128xf32> -> vector<64x128xf32>
    %43 = arith.addf %37, %42 : vector<64x128xf32>
    %c0_38 = arith.constant 0 : index
    %c10 = arith.constant 10 : index
    %c0_39 = arith.constant 0 : index
    %c0_40 = arith.constant 0 : index
    %44 = vector.load %arg2[%c0_38, %c10, %c0_39, %c0_40] : memref<1x36x9x4xbf16, #tpu.memory_space<vmem>>, vector<1x8x8x4xbf16>
    %45 = vector.shape_cast %44 : vector<1x8x8x4xbf16> to vector<8x8x4xbf16>
    %46 = vector.shape_cast %45 : vector<8x8x4xbf16> to vector<64x4xbf16>
    %c28 = arith.constant 28 : index
    %c0_41 = arith.constant 0 : index
    %47 = vector.load %arg3[%c28, %c0_41] : memref<36x128xbf16, #tpu.memory_space<vmem>>, vector<4x128xbf16>
    %cst_42 = arith.constant dense<0.000000e+00> : vector<64x128xf32>
    %48 = tpu.matmul %46, %47, %cst_42 {dimension_numbers = #tpu.dot_dimension_numbers<[1], [0], [0], [1], [0, 0, 1, 1], [], []>} : vector<64x4xbf16>, vector<4x128xbf16>, vector<64x128xf32> -> vector<64x128xf32>
    %49 = arith.addf %43, %48 : vector<64x128xf32>
    %c0_43 = arith.constant 0 : index
    %c1_44 = arith.constant 1 : index
    %c1_45 = arith.constant 1 : index
    %c0_46 = arith.constant 0 : index
    %50 = vector.load %arg2[%c0_43, %c1_44, %c1_45, %c0_46] : memref<1x36x9x4xbf16, #tpu.memory_space<vmem>>, vector<1x8x8x4xbf16>
    %51 = vector.shape_cast %50 : vector<1x8x8x4xbf16> to vector<8x8x4xbf16>
    %52 = vector.shape_cast %51 : vector<8x8x4xbf16> to vector<64x4xbf16>
    %c32 = arith.constant 32 : index
    %c0_47 = arith.constant 0 : index
    %53 = vector.load %arg3[%c32, %c0_47] : memref<36x128xbf16, #tpu.memory_space<vmem>>, vector<4x128xbf16>
    %cst_48 = arith.constant dense<0.000000e+00> : vector<64x128xf32>
    %54 = tpu.matmul %52, %53, %cst_48 {dimension_numbers = #tpu.dot_dimension_numbers<[1], [0], [0], [1], [0, 0, 1, 1], [], []>} : vector<64x4xbf16>, vector<4x128xbf16>, vector<64x128xf32> -> vector<64x128xf32>
    %55 = arith.addf %49, %54 : vector<64x128xf32>
    %56 = arith.truncf %55 : vector<64x128xf32> to vector<64x128xbf16>
    %c0_49 = arith.constant 0 : index
    %c0_50 = arith.constant 0 : index
    %c0_51 = arith.constant 0 : index
    %57 = vector.load %arg5[%c0_49, %c0_50, %c0_51] : memref<1x64x128xbf16, #tpu.memory_space<vmem>>, vector<1x64x128xbf16>
    %58 = vector.shape_cast %57 : vector<1x64x128xbf16> to vector<64x128xbf16>
    %59 = vector.shape_cast %56 : vector<64x128xbf16> to vector<1x64x128xbf16>
    tpu.vector_store %arg5[%c0_49, %c0_50, %c0_51], %59 {strides = array<i32>} : memref<1x64x128xbf16, #tpu.memory_space<vmem>>, vector<1x64x128xbf16>,
    %c0_52 = arith.constant 0 : index
    %c0_53 = arith.constant 0 : index
    %60 = vector.load %arg6[%c0_52, %c0_53] : memref<1x128xf32, #tpu.memory_space<vmem>>, vector<1x128xf32>
    %cst_54 = arith.constant dense<0.000000e+00> : vector<128xf32>
    %61 = vector.multi_reduction <add>, %55, %cst_54 [0] : vector<64x128xf32> to vector<128xf32>
    %62 = vector.shape_cast %61 : vector<128xf32> to vector<1x128xf32>
    %63 = arith.addf %60, %62 : vector<1x128xf32>
    %c0_55 = arith.constant 0 : index
    %c0_56 = arith.constant 0 : index
    %64 = vector.load %arg6[%c0_55, %c0_56] : memref<1x128xf32, #tpu.memory_space<vmem>>, vector<1x128xf32>
    tpu.vector_store %arg6[%c0_55, %c0_56], %63 {strides = array<i32>} : memref<1x128xf32, #tpu.memory_space<vmem>>, vector<1x128xf32>,
    %c0_57 = arith.constant 0 : index
    %c0_58 = arith.constant 0 : index
    %65 = vector.load %arg7[%c0_57, %c0_58] : memref<1x128xf32, #tpu.memory_space<vmem>>, vector<1x128xf32>
    %66 = arith.mulf %55, %55 : vector<64x128xf32>
    %cst_59 = arith.constant dense<0.000000e+00> : vector<128xf32>
    %67 = vector.multi_reduction <add>, %66, %cst_59 [0] : vector<64x128xf32> to vector<128xf32>
    %68 = vector.shape_cast %67 : vector<128xf32> to vector<1x128xf32>
    %69 = arith.addf %65, %68 : vector<1x128xf32>
    %c0_60 = arith.constant 0 : index
    %c0_61 = arith.constant 0 : index
    %70 = vector.load %arg7[%c0_60, %c0_61] : memref<1x128xf32, #tpu.memory_space<vmem>>, vector<1x128xf32>
    tpu.vector_store %arg7[%c0_60, %c0_61], %69 {strides = array<i32>} : memref<1x128xf32, #tpu.memory_space<vmem>>, vector<1x128xf32>,
    %c0_62 = arith.constant 0 : index
    %c0_63 = arith.constant 0 : index
    %71 = vector.load %arg4[%c0_62, %c0_63] : memref<4x128xbf16, #tpu.memory_space<vmem>>, vector<4x128xbf16>
    %cst_64 = arith.constant dense<0.000000e+00> : vector<64x128xf32>
    %72 = tpu.matmul %28, %71, %cst_64 {dimension_numbers = #tpu.dot_dimension_numbers<[1], [0], [0], [1], [0, 0, 1, 1], [], []>} : vector<64x4xbf16>, vector<4x128xbf16>, vector<64x128xf32> -> vector<64x128xf32>
    %73 = arith.truncf %72 : vector<64x128xf32> to vector<64x128xbf16>
    %c0_65 = arith.constant 0 : index
    %c0_66 = arith.constant 0 : index
    %c0_67 = arith.constant 0 : index
    %74 = vector.load %arg8[%c0_65, %c0_66, %c0_67] : memref<1x64x128xbf16, #tpu.memory_space<vmem>>, vector<1x64x128xbf16>
    %75 = vector.shape_cast %74 : vector<1x64x128xbf16> to vector<64x128xbf16>
    %76 = vector.shape_cast %73 : vector<64x128xbf16> to vector<1x64x128xbf16>
    tpu.vector_store %arg8[%c0_65, %c0_66, %c0_67], %76 {strides = array<i32>} : memref<1x64x128xbf16, #tpu.memory_space<vmem>>, vector<1x64x128xbf16>,
    %c0_68 = arith.constant 0 : index
    %c0_69 = arith.constant 0 : index
    %77 = vector.load %arg9[%c0_68, %c0_69] : memref<1x128xf32, #tpu.memory_space<vmem>>, vector<1x128xf32>
    %cst_70 = arith.constant dense<0.000000e+00> : vector<128xf32>
    %78 = vector.multi_reduction <add>, %72, %cst_70 [0] : vector<64x128xf32> to vector<128xf32>
    %79 = vector.shape_cast %78 : vector<128xf32> to vector<1x128xf32>
    %80 = arith.addf %77, %79 : vector<1x128xf32>
    %c0_71 = arith.constant 0 : index
    %c0_72 = arith.constant 0 : index
    %81 = vector.load %arg9[%c0_71, %c0_72] : memref<1x128xf32, #tpu.memory_space<vmem>>, vector<1x128xf32>
    tpu.vector_store %arg9[%c0_71, %c0_72], %80 {strides = array<i32>} : memref<1x128xf32, #tpu.memory_space<vmem>>, vector<1x128xf32>,
    %c0_73 = arith.constant 0 : index
    %c0_74 = arith.constant 0 : index
    %82 = vector.load %arg10[%c0_73, %c0_74] : memref<1x128xf32, #tpu.memory_space<vmem>>, vector<1x128xf32>
    %83 = arith.mulf %72, %72 : vector<64x128xf32>
    %cst_75 = arith.constant dense<0.000000e+00> : vector<128xf32>
    %84 = vector.multi_reduction <add>, %83, %cst_75 [0] : vector<64x128xf32> to vector<128xf32>
    %85 = vector.shape_cast %84 : vector<128xf32> to vector<1x128xf32>
    %86 = arith.addf %82, %85 : vector<1x128xf32>
    %c0_76 = arith.constant 0 : index
    %c0_77 = arith.constant 0 : index
    %87 = vector.load %arg10[%c0_76, %c0_77] : memref<1x128xf32, #tpu.memory_space<vmem>>, vector<1x128xf32>
    tpu.vector_store %arg10[%c0_76, %c0_77], %86 {strides = array<i32>} : memref<1x128xf32, #tpu.memory_space<vmem>>, vector<1x128xf32>,
    return
  }
  func.func @transform_0(%arg0: i32, %arg1: i32) -> (i32, i32, i32, i32) {
    %c0_i32 = arith.constant 0 : i32
    %c0_i32_0 = arith.constant 0 : i32
    %c0_i32_1 = arith.constant 0 : i32
    %c0_i32_2 = arith.constant 0 : i32
    return %arg1, %c0_i32, %c0_i32_0, %c0_i32_1 : i32, i32, i32, i32
  }
  func.func @transform_1(%arg0: i32, %arg1: i32) -> (i32, i32) {
    %c0_i32 = arith.constant 0 : i32
    %c0_i32_0 = arith.constant 0 : i32
    return %c0_i32, %arg0 : i32, i32
  }
  func.func @transform_2(%arg0: i32, %arg1: i32) -> (i32, i32) {
    %c0_i32 = arith.constant 0 : i32
    %c0_i32_0 = arith.constant 0 : i32
    return %c0_i32, %arg0 : i32, i32
  }
  func.func @transform_3(%arg0: i32, %arg1: i32) -> (i32, i32, i32) {
    %c0_i32 = arith.constant 0 : i32
    %c0_i32_0 = arith.constant 0 : i32
    return %arg1, %c0_i32, %arg0 : i32, i32, i32
  }
  func.func @transform_4(%arg0: i32, %arg1: i32) -> (i32, i32) {
    %c0_i32 = arith.constant 0 : i32
    %c0_i32_0 = arith.constant 0 : i32
    return %c0_i32, %arg0 : i32, i32
  }
  func.func @transform_5(%arg0: i32, %arg1: i32) -> (i32, i32) {
    %c0_i32 = arith.constant 0 : i32
    %c0_i32_0 = arith.constant 0 : i32
    return %c0_i32, %arg0 : i32, i32
  }
  func.func @transform_6(%arg0: i32, %arg1: i32) -> (i32, i32, i32) {
    %c0_i32 = arith.constant 0 : i32
    %c0_i32_0 = arith.constant 0 : i32
    return %arg1, %c0_i32, %arg0 : i32, i32, i32
  }
  func.func @transform_7(%arg0: i32, %arg1: i32) -> (i32, i32) {
    %c0_i32 = arith.constant 0 : i32
    %c0_i32_0 = arith.constant 0 : i32
    return %c0_i32, %arg0 : i32, i32
  }
  func.func @transform_8(%arg0: i32, %arg1: i32) -> (i32, i32) {
    %c0_i32 = arith.constant 0 : i32
    %c0_i32_0 = arith.constant 0 : i32
    return %c0_i32, %arg0 : i32, i32
  }
}

module attributes {stable_mosaic.version = 11 : i64} {
  func.func @_bn_add_relu_kernel(%arg0: i32, %arg1: memref<128x128xbf16, #tpu.memory_space<vmem>>, %arg2: memref<128x128xbf16, #tpu.memory_space<vmem>>, %arg3: memref<1x128xf32, #tpu.memory_space<vmem>>, %arg4: memref<1x128xf32, #tpu.memory_space<vmem>>, %arg5: memref<1x128xf32, #tpu.memory_space<vmem>>, %arg6: memref<1x128xf32, #tpu.memory_space<vmem>>, %arg7: memref<128x128xf32, #tpu.memory_space<vmem>>) attributes {dimension_semantics = [#tpu.dimension_semantics<parallel>], iteration_bounds = array<i64: 1>, scalar_prefetch = 0 : i64, scratch_operands = 0 : i64, tpu.core_type = #tpu.core_type<tc>, window_params = [{transform_indices = @transform_0, window_bounds = array<i64: 128, 128>}, {transform_indices = @transform_1, window_bounds = array<i64: 128, 128>}, {pipeline_mode = #tpu.pipeline_mode<synchronous>, transform_indices = @transform_2, window_bounds = array<i64: 1, 128>}, {pipeline_mode = #tpu.pipeline_mode<synchronous>, transform_indices = @transform_3, window_bounds = array<i64: 1, 128>}, {pipeline_mode = #tpu.pipeline_mode<synchronous>, transform_indices = @transform_4, window_bounds = array<i64: 1, 128>}, {pipeline_mode = #tpu.pipeline_mode<synchronous>, transform_indices = @transform_5, window_bounds = array<i64: 1, 128>}, {transform_indices = @transform_6, window_bounds = array<i64: 128, 128>}]} {
    %c0 = arith.constant 0 : index
    %c0_0 = arith.constant 0 : index
    %0 = vector.load %arg1[%c0, %c0_0] : memref<128x128xbf16, #tpu.memory_space<vmem>>, vector<128x128xbf16>
    %1 = arith.extf %0 : vector<128x128xbf16> to vector<128x128xf32>
    %c0_1 = arith.constant 0 : index
    %c0_2 = arith.constant 0 : index
    %2 = vector.load %arg3[%c0_1, %c0_2] : memref<1x128xf32, #tpu.memory_space<vmem>>, vector<1x128xf32>
    %3 = vector.broadcast %2 : vector<1x128xf32> to vector<128x128xf32>
    %4 = arith.mulf %1, %3 : vector<128x128xf32>
    %c0_3 = arith.constant 0 : index
    %c0_4 = arith.constant 0 : index
    %5 = vector.load %arg4[%c0_3, %c0_4] : memref<1x128xf32, #tpu.memory_space<vmem>>, vector<1x128xf32>
    %6 = vector.broadcast %5 : vector<1x128xf32> to vector<128x128xf32>
    %7 = arith.addf %4, %6 : vector<128x128xf32>
    %c0_5 = arith.constant 0 : index
    %c0_6 = arith.constant 0 : index
    %8 = vector.load %arg2[%c0_5, %c0_6] : memref<128x128xbf16, #tpu.memory_space<vmem>>, vector<128x128xbf16>
    %9 = arith.extf %8 : vector<128x128xbf16> to vector<128x128xf32>
    %c0_7 = arith.constant 0 : index
    %c0_8 = arith.constant 0 : index
    %10 = vector.load %arg5[%c0_7, %c0_8] : memref<1x128xf32, #tpu.memory_space<vmem>>, vector<1x128xf32>
    %11 = vector.broadcast %10 : vector<1x128xf32> to vector<128x128xf32>
    %12 = arith.mulf %9, %11 : vector<128x128xf32>
    %c0_9 = arith.constant 0 : index
    %c0_10 = arith.constant 0 : index
    %13 = vector.load %arg6[%c0_9, %c0_10] : memref<1x128xf32, #tpu.memory_space<vmem>>, vector<1x128xf32>
    %14 = vector.broadcast %13 : vector<1x128xf32> to vector<128x128xf32>
    %15 = arith.addf %12, %14 : vector<128x128xf32>
    %16 = arith.addf %7, %15 : vector<128x128xf32>
    %cst = arith.constant 0.000000e+00 : f32
    %17 = vector.broadcast %cst : f32 to vector<128x128xf32>
    %18 = arith.maximumf %16, %17 : vector<128x128xf32>
    %c0_11 = arith.constant 0 : index
    %c0_12 = arith.constant 0 : index
    %19 = vector.load %arg7[%c0_11, %c0_12] : memref<128x128xf32, #tpu.memory_space<vmem>>, vector<128x128xf32>
    tpu.vector_store %arg7[%c0_11, %c0_12], %18 {strides = array<i32>} : memref<128x128xf32, #tpu.memory_space<vmem>>, vector<128x128xf32>,
    return
  }
  func.func @transform_0(%arg0: i32) -> (i32, i32) {
    %c0_i32 = arith.constant 0 : i32
    %c0_i32_0 = arith.constant 0 : i32
    return %arg0, %c0_i32 : i32, i32
  }
  func.func @transform_1(%arg0: i32) -> (i32, i32) {
    %c0_i32 = arith.constant 0 : i32
    %c0_i32_0 = arith.constant 0 : i32
    return %arg0, %c0_i32 : i32, i32
  }
  func.func @transform_2(%arg0: i32) -> (i32, i32) {
    %c0_i32 = arith.constant 0 : i32
    %c0_i32_0 = arith.constant 0 : i32
    %c0_i32_1 = arith.constant 0 : i32
    return %c0_i32, %c0_i32_0 : i32, i32
  }
  func.func @transform_3(%arg0: i32) -> (i32, i32) {
    %c0_i32 = arith.constant 0 : i32
    %c0_i32_0 = arith.constant 0 : i32
    %c0_i32_1 = arith.constant 0 : i32
    return %c0_i32, %c0_i32_0 : i32, i32
  }
  func.func @transform_4(%arg0: i32) -> (i32, i32) {
    %c0_i32 = arith.constant 0 : i32
    %c0_i32_0 = arith.constant 0 : i32
    %c0_i32_1 = arith.constant 0 : i32
    return %c0_i32, %c0_i32_0 : i32, i32
  }
  func.func @transform_5(%arg0: i32) -> (i32, i32) {
    %c0_i32 = arith.constant 0 : i32
    %c0_i32_0 = arith.constant 0 : i32
    %c0_i32_1 = arith.constant 0 : i32
    return %c0_i32, %c0_i32_0 : i32, i32
  }
  func.func @transform_6(%arg0: i32) -> (i32, i32) {
    %c0_i32 = arith.constant 0 : i32
    %c0_i32_0 = arith.constant 0 : i32
    return %arg0, %c0_i32 : i32, i32
  }
}

</mosaic_0001>

<llo_original>
// kernel: basic_block_forward.5
$region0: #{basic_block_forward.5}
  #allocation0 [shape = 'u32[]', space=smem, size = 0x4, offset = 0x4, fixed_abs, tag = 'smem constant byte address 0x4 - core index']
  #allocation1 [shape = 'u32[144,128]{1,0:T(1,128)}', space=vmem, size = 0x12000, scoped, tag = 'internal scratch']
  %s0 = inlined_call_operand.vmem [shape: bf16[128,128], index: 0, kind: input, shape index: {}]
  %s1 = inlined_call_operand.vmem [shape: bf16[128,128], index: 1, kind: input, shape index: {}]
  %s2 = inlined_call_operand.vmem [shape: f32[1,128], index: 2, kind: input, shape index: {}]
  %s3 = inlined_call_operand.vmem [shape: f32[1,128], index: 3, kind: input, shape index: {}]
  %s4 = inlined_call_operand.vmem [shape: f32[1,128], index: 4, kind: input, shape index: {}]
  %s5 = inlined_call_operand.vmem [shape: f32[1,128], index: 5, kind: input, shape index: {}]
  %s6 = inlined_call_operand.vmem [shape: f32[128,128], index: 6, kind: output, shape index: {}]
  %s7 = sld [smem:[#allocation0]]
  $region34: #{basic_block_forward.5} parent=0
    _
  %s9 = ssub.s32 1, %s7
  %s10 = scalar_select 0, %s9, %s7
  // Predicated region
  $region2: #{basic_block_forward.5} parent=0 // pred_check
    _
  $region3: #{basic_block_forward.5} parent=0 // pred_check_branch
    %12 = sbr.rel (0) target = $region5
  $region4: #{basic_block_forward.5} parent=0 // pred_region
    _
  $region5: #{basic_block_forward.5} parent=0 // pred_fallthru
    _
  // Predicated region
  $region6: #{basic_block_forward.5} parent=0 // pred_check
    _
  $region7: #{basic_block_forward.5} parent=0 // pred_check_branch
    %14 = sbr.rel (0) target = $region9
  $region8: #{basic_block_forward.5} parent=0 // pred_region
    _
  $region9: #{basic_block_forward.5} parent=0 // pred_fallthru
    _
  // Predicated region
  $region10: #{basic_block_forward.5} parent=0 // pred_check
    _
  $region11: #{basic_block_forward.5} parent=0 // pred_check_branch
    %16 = sbr.rel (0) target = $region13
  $region12: #{basic_block_forward.5} parent=0 // pred_region
    _
  $region13: #{basic_block_forward.5} parent=0 // pred_fallthru
    _
  // Predicated region
  $region14: #{basic_block_forward.5} parent=0 // pred_check
    _
  $region15: #{basic_block_forward.5} parent=0 // pred_check_branch
    %18 = sbr.rel (0) target = $region17
  $region16: #{basic_block_forward.5} parent=0 // pred_region
    _
  $region17: #{basic_block_forward.5} parent=0 // pred_fallthru
    _
  // Predicated region
  $region18: #{basic_block_forward.5} parent=0 // pred_check
    _
  $region19: #{basic_block_forward.5} parent=0 // pred_check_branch
    %20 = sbr.rel (0) target = $region21
  $region20: #{basic_block_forward.5} parent=0 // pred_region
    _
  $region21: #{basic_block_forward.5} parent=0 // pred_fallthru
    _
  // Predicated region
  $region22: #{basic_block_forward.5} parent=0 // pred_check
    _
  $region23: #{basic_block_forward.5} parent=0 // pred_check_branch
    %22 = sbr.rel (0) target = $region25
  $region24: #{basic_block_forward.5} parent=0 // pred_region
    _
  $region25: #{basic_block_forward.5} parent=0 // pred_fallthru
    _
  %v23 = vld [vmem:[%s0] sm:$0xf]
  %v24 = vld [vmem:[%s0 + $0x4] sm:$0xf]
  %v25 = vld [vmem:[%s0 + $0x8] sm:$0xf]
  %v26 = vld [vmem:[%s0 + $0xc] sm:$0xf]
  %v27 = vld [vmem:[%s0 + $0x10] sm:$0xf]
  %v28 = vld [vmem:[%s0 + $0x14] sm:$0xf]
  %v29 = vld [vmem:[%s0 + $0x18] sm:$0xf]
  %v30 = vld [vmem:[%s0 + $0x1c] sm:$0xf]
  %v31 = vld [vmem:[%s0 + $0x20] sm:$0xf]
  %v32 = vld [vmem:[%s0 + $0x24] sm:$0xf]
  %v33 = vld [vmem:[%s0 + $0x28] sm:$0xf]
  %v34 = vld [vmem:[%s0 + $0x2c] sm:$0xf]
  %v35 = vld [vmem:[%s0 + $0x30] sm:$0xf]
  %v36 = vld [vmem:[%s0 + $0x34] sm:$0xf]
  %v37 = vld [vmem:[%s0 + $0x38] sm:$0xf]
  %v38 = vld [vmem:[%s0 + $0x3c] sm:$0xf]
  %v39 = vunpack.c.l.bf16 %v23
  %v40 = vunpack.c.l.bf16 %v24
  %v41 = vunpack.c.l.bf16 %v25
  %v42 = vunpack.c.l.bf16 %v26
  %v43 = vunpack.c.l.bf16 %v27
  %v44 = vunpack.c.l.bf16 %v28
  %v45 = vunpack.c.l.bf16 %v29
  %v46 = vunpack.c.l.bf16 %v30
  %v47 = vunpack.c.l.bf16 %v31
  %v48 = vunpack.c.l.bf16 %v32
  %v49 = vunpack.c.l.bf16 %v33
  %v50 = vunpack.c.l.bf16 %v34
  %v51 = vunpack.c.l.bf16 %v35
  %v52 = vunpack.c.l.bf16 %v36
  %v53 = vunpack.c.l.bf16 %v37
  %v54 = vunpack.c.l.bf16 %v38
  %v55 = vld [vmem:[%s2] sm:$0x1]
  %v57 = vlaneseq
  %v58 = vshrl.u32 %v57, 7
  %v59 = vsub.s32 0, %v58
  %v60 = vrot.slane %v55, %v59
  %v62 = vmul.f32 %v39, %v60
  %v63 = vmul.f32 %v40, %v60
  %v64 = vmul.f32 %v41, %v60
  %v65 = vmul.f32 %v42, %v60
  %v66 = vmul.f32 %v43, %v60
  %v67 = vmul.f32 %v44, %v60
  %v68 = vmul.f32 %v45, %v60
  %v69 = vmul.f32 %v46, %v60
  %v70 = vmul.f32 %v47, %v60
  %v71 = vmul.f32 %v48, %v60
  %v72 = vmul.f32 %v49, %v60
  %v73 = vmul.f32 %v50, %v60
  %v74 = vmul.f32 %v51, %v60
  %v75 = vmul.f32 %v52, %v60
  %v76 = vmul.f32 %v53, %v60
  %v77 = vmul.f32 %v54, %v60
  %v78 = vld [vmem:[%s3] sm:$0x1]
  %v80 = vlaneseq
  %v81 = vshrl.u32 %v80, 7
  %v82 = vsub.s32 0, %v81
  %v83 = vrot.slane %v78, %v82
  %v85 = vadd.f32 %v62, %v83
  %v86 = vadd.f32 %v63, %v83
  %v87 = vadd.f32 %v64, %v83
  %v88 = vadd.f32 %v65, %v83
  %v89 = vadd.f32 %v66, %v83
  %v90 = vadd.f32 %v67, %v83
  %v91 = vadd.f32 %v68, %v83
  %v92 = vadd.f32 %v69, %v83
  %v93 = vadd.f32 %v70, %v83
  %v94 = vadd.f32 %v71, %v83
  %v95 = vadd.f32 %v72, %v83
  %v96 = vadd.f32 %v73, %v83
  %v97 = vadd.f32 %v74, %v83
  %v98 = vadd.f32 %v75, %v83
  %v99 = vadd.f32 %v76, %v83
  %v100 = vadd.f32 %v77, %v83
  %v101 = vld [vmem:[%s1] sm:$0xf]
  %v102 = vld [vmem:[%s1 + $0x4] sm:$0xf]
  %v103 = vld [vmem:[%s1 + $0x8] sm:$0xf]
  %v104 = vld [vmem:[%s1 + $0xc] sm:$0xf]
  %v105 = vld [vmem:[%s1 + $0x10] sm:$0xf]
  %v106 = vld [vmem:[%s1 + $0x14] sm:$0xf]
  %v107 = vld [vmem:[%s1 + $0x18] sm:$0xf]
  %v108 = vld [vmem:[%s1 + $0x1c] sm:$0xf]
  %v109 = vld [vmem:[%s1 + $0x20] sm:$0xf]
  %v110 = vld [vmem:[%s1 + $0x24] sm:$0xf]
  %v111 = vld [vmem:[%s1 + $0x28] sm:$0xf]
  %v112 = vld [vmem:[%s1 + $0x2c] sm:$0xf]
  %v113 = vld [vmem:[%s1 + $0x30] sm:$0xf]
  %v114 = vld [vmem:[%s1 + $0x34] sm:$0xf]
  %v115 = vld [vmem:[%s1 + $0x38] sm:$0xf]
  %v116 = vld [vmem:[%s1 + $0x3c] sm:$0xf]
  %v117 = vunpack.c.l.bf16 %v101
  %v118 = vunpack.c.l.bf16 %v102
  %v119 = vunpack.c.l.bf16 %v103
  %v120 = vunpack.c.l.bf16 %v104
  %v121 = vunpack.c.l.bf16 %v105
  %v122 = vunpack.c.l.bf16 %v106
  %v123 = vunpack.c.l.bf16 %v107
  %v124 = vunpack.c.l.bf16 %v108
  %v125 = vunpack.c.l.bf16 %v109
  %v126 = vunpack.c.l.bf16 %v110
  %v127 = vunpack.c.l.bf16 %v111
  %v128 = vunpack.c.l.bf16 %v112
  %v129 = vunpack.c.l.bf16 %v113
  %v130 = vunpack.c.l.bf16 %v114
  %v131 = vunpack.c.l.bf16 %v115
  %v132 = vunpack.c.l.bf16 %v116
  %v133 = vld [vmem:[%s4] sm:$0x1]
  %v135 = vlaneseq
  %v136 = vshrl.u32 %v135, 7
  %v137 = vsub.s32 0, %v136
  %v138 = vrot.slane %v133, %v137
  %v140 = vmul.f32 %v117, %v138
  %v141 = vmul.f32 %v118, %v138
  %v142 = vmul.f32 %v119, %v138
  %v143 = vmul.f32 %v120, %v138
  %v144 = vmul.f32 %v121, %v138
  %v145 = vmul.f32 %v122, %v138
  %v146 = vmul.f32 %v123, %v138
  %v147 = vmul.f32 %v124, %v138
  %v148 = vmul.f32 %v125, %v138
  %v149 = vmul.f32 %v126, %v138
  %v150 = vmul.f32 %v127, %v138
  %v151 = vmul.f32 %v128, %v138
  %v152 = vmul.f32 %v129, %v138
  %v153 = vmul.f32 %v130, %v138
  %v154 = vmul.f32 %v131, %v138
  %v155 = vmul.f32 %v132, %v138
  %v156 = vld [vmem:[%s5] sm:$0x1]
  %v158 = vlaneseq
  %v159 = vshrl.u32 %v158, 7
  %v160 = vsub.s32 0, %v159
  %v161 = vrot.slane %v156, %v160
  %v163 = vadd.f32 %v140, %v161
  %v164 = vadd.f32 %v141, %v161
  %v165 = vadd.f32 %v142, %v161
  %v166 = vadd.f32 %v143, %v161
  %v167 = vadd.f32 %v144, %v161
  %v168 = vadd.f32 %v145, %v161
  %v169 = vadd.f32 %v146, %v161
  %v170 = vadd.f32 %v147, %v161
  %v171 = vadd.f32 %v148, %v161
  %v172 = vadd.f32 %v149, %v161
  %v173 = vadd.f32 %v150, %v161
  %v174 = vadd.f32 %v151, %v161
  %v175 = vadd.f32 %v152, %v161
  %v176 = vadd.f32 %v153, %v161
  %v177 = vadd.f32 %v154, %v161
  %v178 = vadd.f32 %v155, %v161
  %v179 = vadd.f32 %v85, %v163
  %v180 = vadd.f32 %v86, %v164
  %v181 = vadd.f32 %v87, %v165
  %v182 = vadd.f32 %v88, %v166
  %v183 = vadd.f32 %v89, %v167
  %v184 = vadd.f32 %v90, %v168
  %v185 = vadd.f32 %v91, %v169
  %v186 = vadd.f32 %v92, %v170
  %v187 = vadd.f32 %v93, %v171
  %v188 = vadd.f32 %v94, %v172
  %v189 = vadd.f32 %v95, %v173
  %v190 = vadd.f32 %v96, %v174
  %v191 = vadd.f32 %v97, %v175
  %v192 = vadd.f32 %v98, %v176
  %v193 = vadd.f32 %v99, %v177
  %v194 = vadd.f32 %v100, %v178
  %v195 = vmax.f32 %v179, 0.0
  %v196 = vmax.f32 %v180, 0.0
  %v197 = vmax.f32 %v181, 0.0
  %v198 = vmax.f32 %v182, 0.0
  %v199 = vmax.f32 %v183, 0.0
  %v200 = vmax.f32 %v184, 0.0
  %v201 = vmax.f32 %v185, 0.0
  %v202 = vmax.f32 %v186, 0.0
  %v203 = vmax.f32 %v187, 0.0
  %v204 = vmax.f32 %v188, 0.0
  %v205 = vmax.f32 %v189, 0.0
  %v206 = vmax.f32 %v190, 0.0
  %v207 = vmax.f32 %v191, 0.0
  %v208 = vmax.f32 %v192, 0.0
  %v209 = vmax.f32 %v193, 0.0
  %v210 = vmax.f32 %v194, 0.0
  %211 = vst [vmem:[%s6] sm:$0xff] %v195
  %212 = vst [vmem:[%s6 + $0x8] sm:$0xff] %v196
  %213 = vst [vmem:[%s6 + $0x10] sm:$0xff] %v197
  %214 = vst [vmem:[%s6 + $0x18] sm:$0xff] %v198
  %215 = vst [vmem:[%s6 + $0x20] sm:$0xff] %v199
  %216 = vst [vmem:[%s6 + $0x28] sm:$0xff] %v200
  %217 = vst [vmem:[%s6 + $0x30] sm:$0xff] %v201
  %218 = vst [vmem:[%s6 + $0x38] sm:$0xff] %v202
  %219 = vst [vmem:[%s6 + $0x40] sm:$0xff] %v203
  %220 = vst [vmem:[%s6 + $0x48] sm:$0xff] %v204
  %221 = vst [vmem:[%s6 + $0x50] sm:$0xff] %v205
  %222 = vst [vmem:[%s6 + $0x58] sm:$0xff] %v206
  %223 = vst [vmem:[%s6 + $0x60] sm:$0xff] %v207
  %224 = vst [vmem:[%s6 + $0x68] sm:$0xff] %v208
  %225 = vst [vmem:[%s6 + $0x70] sm:$0xff] %v209
  %226 = vst [vmem:[%s6 + $0x78] sm:$0xff] %v210
  // Predicated region
  $region26: #{basic_block_forward.5} parent=0 // pred_check
    _
  $region27: #{basic_block_forward.5} parent=0 // pred_check_branch
    %228 = sbr.rel (0) target = $region29
  $region28: #{basic_block_forward.5} parent=0 // pred_region
    _
  $region29: #{basic_block_forward.5} parent=0 // pred_fallthru
    _
  // Predicated region
  $region30: #{basic_block_forward.5} parent=0 // pred_check
    _
  $region31: #{basic_block_forward.5} parent=0 // pred_check_branch
    %230 = sbr.rel (0) target = $region33
  $region32: #{basic_block_forward.5} parent=0 // pred_region
    _
  $region33: #{basic_block_forward.5} parent=0 // pred_fallthru
    _

// kernel: basic_block_forward.3
$region0: #{basic_block_forward.3}
  #allocation0 [shape = 'u32[]', space=smem, size = 0x4, offset = 0x4, fixed_abs, tag = 'smem constant byte address 0x4 - core index']
  #allocation1 [shape = 'u32[144,128]{1,0:T(1,128)}', space=vmem, size = 0x12000, scoped, tag = 'internal scratch']
  %s0 = inlined_call_operand.vmem [shape: bf16[2,36,9,4], index: 0, kind: input, shape index: {}]
  %s1 = inlined_call_operand.vmem [shape: bf16[36,128], index: 1, kind: input, shape index: {}]
  %s2 = inlined_call_operand.vmem [shape: bf16[4,128], index: 2, kind: input, shape index: {}]
  %s3 = inlined_call_operand.vmem [shape: bf16[2,64,128], index: 3, kind: output, shape index: {0}]
  %s4 = inlined_call_operand.vmem [shape: f32[1,128], index: 4, kind: output, shape index: {1}]
  %s5 = inlined_call_operand.vmem [shape: f32[1,128], index: 5, kind: output, shape index: {2}]
  %s6 = inlined_call_operand.vmem [shape: bf16[2,64,128], index: 6, kind: output, shape index: {3}]
  %s7 = inlined_call_operand.vmem [shape: f32[1,128], index: 7, kind: output, shape index: {4}]
  %s8 = inlined_call_operand.vmem [shape: f32[1,128], index: 8, kind: output, shape index: {5}]
  %9 = xla_tuple %s3, %s4, %s5, %s6, %s7, %s8
  %s10 = sld [smem:[#allocation0]]
  $region89: #{basic_block_forward.3} parent=0
    _
  %s12 = ssub.s32 1, %s10
  %s13 = scalar_select 0, %s12, %s10
  loop: start=0, step=1, limit=4
  $region2: #{basic_block_forward.3} parent=0 // loop_pre_header
    _
  $region3: #{basic_block_forward.3} parent=0 // loop_header
    %s15 = sphi 0, %s19
    %p16 = scmp.ge.s32.totalorder %s15, 4
    %s22 = sphi 0, %s34
    %s23 = sphi 0, %s30
    %s24 = sphi 0, %s22
    %s25 = sphi 0, %s23
    %s26 = sphi 0, %s24
    %s27 = sphi 0, %s25
    %s37 = sphi 0, %s39
    %s40 = sphi 0, %s37
    %s41 = sphi 0, %s40
    %s57 = sphi 0, %s41
    %s63 = sphi 0, %s65
    %s66 = sphi 0, %s63
    %s67 = sphi 0, %s66
    %s83 = sphi 0, %s67
    %s89 = sphi 0, %s91
    %s92 = sphi 0, %s89
    %s93 = sphi 0, %s92
    %s109 = sphi 0, %s93
    %s117 = sphi 0, %s119
    %s120 = sphi 0, %s117
    %s121 = sphi 0, %s120
    %s137 = sphi 0, %s121
    %s143 = sphi 0, %s145
    %s146 = sphi 0, %s143
    %s147 = sphi 0, %s146
    %s163 = sphi 0, %s147
    %s169 = sphi 0, %s171
    %s172 = sphi 0, %s169
    %s173 = sphi 0, %s172
    %s189 = sphi 0, %s173
    %s197 = sphi 0, %s199
    %s200 = sphi 0, %s197
    %s201 = sphi 0, %s200
    %s217 = sphi 0, %s201
    %s223 = sphi 0, %s225
    %s226 = sphi 0, %s223
    %s227 = sphi 0, %s226
    %s243 = sphi 0, %s227
    %s249 = sphi 0, %s251
    %s252 = sphi 0, %s249
    %s253 = sphi 0, %s252
    %s269 = sphi 0, %s253
  $region4: #{basic_block_forward.3} parent=0 // loop_header_branch
    %18 = sbr.rel (%p16) target = $region8
  $region5: #{basic_block_forward.3} parent=0 // loop_body
    %s20 = ssub.s32 %s15, 1
    %s21 = ssub.s32 %s15, 2
    %s28 = sadd.s32 1, %s23
    %p29 = scmp.ge.s32.totalorder %s28, 2
    %s30 = scalar_select %p29, 0, %s28
    %s31 = sadd.s32 1, %s22
    %s32 = scalar_select %p29, %s31, %s22
    %p33 = scmp.ge.s32.totalorder %s32, 1
    %s34 = scalar_select %p33, 0, %s32
    %s35 = ssub.s32 %s23, %s30
    %p36 = scmp.eq.s32.totalorder %s35, 0
    %s38 = sadd.s32 %s37, 1
    %s39 = scalar_select %p36, %s37, %s38
    %p42 = pneg %p36
    %p43 = scmp.eq.s32.totalorder %s15, 1
    %p44 = por %p42, %p43
    %p45 = scmp.ne.s32.totalorder %s37, %s40
    %p46 = scmp.eq.s32.totalorder %s15, 0
    %p47 = por %p45, %p46
    %p48 = scmp.ne.s32.totalorder %s37, %s40
    %p49 = scmp.eq.s32.totalorder %s20, 1
    %p50 = por %p48, %p49
    %p51 = scmp.ne.s32.totalorder %s40, %s41
    %p52 = scmp.eq.s32.totalorder %s20, 0
    %p53 = por %p51, %p52
    %p54 = scmp.ne.s32.totalorder %s40, %s41
    %p55 = scmp.eq.s32.totalorder %s21, 1
    %p56 = por %p54, %p55
    %p58 = scmp.ne.s32.totalorder %s41, %s57
    %p59 = scmp.eq.s32.totalorder %s21, 0
    %p60 = por %p58, %p59
    %s61 = ssub.s32 %s22, %s34
    %p62 = scmp.eq.s32.totalorder %s61, 0
    %s64 = sadd.s32 %s63, 1
    %s65 = scalar_select %p62, %s63, %s64
    %p68 = pneg %p62
    %p69 = scmp.eq.s32.totalorder %s15, 1
    %p70 = por %p68, %p69
    %p71 = scmp.ne.s32.totalorder %s63, %s66
    %p72 = scmp.eq.s32.totalorder %s15, 0
    %p73 = por %p71, %p72
    %p74 = scmp.ne.s32.totalorder %s63, %s66
    %p75 = scmp.eq.s32.totalorder %s20, 1
    %p76 = por %p74, %p75
    %p77 = scmp.ne.s32.totalorder %s66, %s67
    %p78 = scmp.eq.s32.totalorder %s20, 0
    %p79 = por %p77, %p78
    %p80 = scmp.ne.s32.totalorder %s66, %s67
    %p81 = scmp.eq.s32.totalorder %s21, 1
    %p82 = por %p80, %p81
    %p84 = scmp.ne.s32.totalorder %s67, %s83
    %p85 = scmp.eq.s32.totalorder %s21, 0
    %p86 = por %p84, %p85
    %s87 = ssub.s32 %s22, %s34
    %p88 = scmp.eq.s32.totalorder %s87, 0
    %s90 = sadd.s32 %s89, 1
    %s91 = scalar_select %p88, %s89, %s90
    %p94 = pneg %p88
    %p95 = scmp.eq.s32.totalorder %s15, 1
    %p96 = por %p94, %p95
    %p97 = scmp.ne.s32.totalorder %s89, %s92
    %p98 = scmp.eq.s32.totalorder %s15, 0
    %p99 = por %p97, %p98
    %p100 = scmp.ne.s32.totalorder %s89, %s92
    %p101 = scmp.eq.s32.totalorder %s20, 1
    %p102 = por %p100, %p101
    %p103 = scmp.ne.s32.totalorder %s92, %s93
    %p104 = scmp.eq.s32.totalorder %s20, 0
    %p105 = por %p103, %p104
    %p106 = scmp.ne.s32.totalorder %s92, %s93
    %p107 = scmp.eq.s32.totalorder %s21, 1
    %p108 = por %p106, %p107
    %p110 = scmp.ne.s32.totalorder %s93, %s109
    %p111 = scmp.eq.s32.totalorder %s21, 0
    %p112 = por %p110, %p111
    %s113 = ssub.s32 %s23, %s30
    %s114 = ssub.s32 %s22, %s34
    %s115 = sor.u32 %s113, %s114
    %p116 = scmp.eq.s32.totalorder %s115, 0
    %s118 = sadd.s32 %s117, 1
    %s119 = scalar_select %p116, %s117, %s118
    %p122 = pneg %p116
    %p123 = scmp.eq.s32.totalorder %s15, 1
    %p124 = por %p122, %p123
    %p125 = scmp.ne.s32.totalorder %s117, %s120
    %p126 = scmp.eq.s32.totalorder %s15, 0
    %p127 = por %p125, %p126
    %p128 = scmp.ne.s32.totalorder %s117, %s120
    %p129 = scmp.eq.s32.totalorder %s20, 1
    %p130 = por %p128, %p129
    %p131 = scmp.ne.s32.totalorder %s120, %s121
    %p132 = scmp.eq.s32.totalorder %s20, 0
    %p133 = por %p131, %p132
    %p134 = scmp.ne.s32.totalorder %s120, %s121
    %p135 = scmp.eq.s32.totalorder %s21, 1
    %p136 = por %p134, %p135
    %p138 = scmp.ne.s32.totalorder %s121, %s137
    %p139 = scmp.eq.s32.totalorder %s21, 0
    %p140 = por %p138, %p139
    %s141 = ssub.s32 %s22, %s34
    %p142 = scmp.eq.s32.totalorder %s141, 0
    %s144 = sadd.s32 %s143, 1
    %s145 = scalar_select %p142, %s143, %s144
    %p148 = pneg %p142
    %p149 = scmp.eq.s32.totalorder %s15, 1
    %p150 = por %p148, %p149
    %p151 = scmp.ne.s32.totalorder %s143, %s146
    %p152 = scmp.eq.s32.totalorder %s15, 0
    %p153 = por %p151, %p152
    %p154 = scmp.ne.s32.totalorder %s143, %s146
    %p155 = scmp.eq.s32.totalorder %s20, 1
    %p156 = por %p154, %p155
    %p157 = scmp.ne.s32.totalorder %s146, %s147
    %p158 = scmp.eq.s32.totalorder %s20, 0
    %p159 = por %p157, %p158
    %p160 = scmp.ne.s32.totalorder %s146, %s147
    %p161 = scmp.eq.s32.totalorder %s21, 1
    %p162 = por %p160, %p161
    %p164 = scmp.ne.s32.totalorder %s147, %s163
    %p165 = scmp.eq.s32.totalorder %s21, 0
    %p166 = por %p164, %p165
    %s167 = ssub.s32 %s22, %s34
    %p168 = scmp.eq.s32.totalorder %s167, 0
    %s170 = sadd.s32 %s169, 1
    %s171 = scalar_select %p168, %s169, %s170
    %p174 = pneg %p168
    %p175 = scmp.eq.s32.totalorder %s15, 1
    %p176 = por %p174, %p175
    %p177 = scmp.ne.s32.totalorder %s169, %s172
    %p178 = scmp.eq.s32.totalorder %s15, 0
    %p179 = por %p177, %p178
    %p180 = scmp.ne.s32.totalorder %s169, %s172
    %p181 = scmp.eq.s32.totalorder %s20, 1
    %p182 = por %p180, %p181
    %p183 = scmp.ne.s32.totalorder %s172, %s173
    %p184 = scmp.eq.s32.totalorder %s20, 0
    %p185 = por %p183, %p184
    %p186 = scmp.ne.s32.totalorder %s172, %s173
    %p187 = scmp.eq.s32.totalorder %s21, 1
    %p188 = por %p186, %p187
    %p190 = scmp.ne.s32.totalorder %s173, %s189
    %p191 = scmp.eq.s32.totalorder %s21, 0
    %p192 = por %p190, %p191
    %s193 = ssub.s32 %s23, %s30
    %s194 = ssub.s32 %s22, %s34
    %s195 = sor.u32 %s193, %s194
    %p196 = scmp.eq.s32.totalorder %s195, 0
    %s198 = sadd.s32 %s197, 1
    %s199 = scalar_select %p196, %s197, %s198
    %p202 = pneg %p196
    %p203 = scmp.eq.s32.totalorder %s15, 1
    %p204 = por %p202, %p203
    %p205 = scmp.ne.s32.totalorder %s197, %s200
    %p206 = scmp.eq.s32.totalorder %s15, 0
    %p207 = por %p205, %p206
    %p208 = scmp.ne.s32.totalorder %s197, %s200
    %p209 = scmp.eq.s32.totalorder %s20, 1
    %p210 = por %p208, %p209
    %p211 = scmp.ne.s32.totalorder %s200, %s201
    %p212 = scmp.eq.s32.totalorder %s20, 0
    %p213 = por %p211, %p212
    %p214 = scmp.ne.s32.totalorder %s200, %s201
    %p215 = scmp.eq.s32.totalorder %s21, 1
    %p216 = por %p214, %p215
    %p218 = scmp.ne.s32.totalorder %s201, %s217
    %p219 = scmp.eq.s32.totalorder %s21, 0
    %p220 = por %p218, %p219
    %s221 = ssub.s32 %s22, %s34
    %p222 = scmp.eq.s32.totalorder %s221, 0
    %s224 = sadd.s32 %s223, 1
    %s225 = scalar_select %p222, %s223, %s224
    %p228 = pneg %p222
    %p229 = scmp.eq.s32.totalorder %s15, 1
    %p230 = por %p228, %p229
    %p231 = scmp.ne.s32.totalorder %s223, %s226
    %p232 = scmp.eq.s32.totalorder %s15, 0
    %p233 = por %p231, %p232
    %p234 = scmp.ne.s32.totalorder %s223, %s226
    %p235 = scmp.eq.s32.totalorder %s20, 1
    %p236 = por %p234, %p235
    %p237 = scmp.ne.s32.totalorder %s226, %s227
    %p238 = scmp.eq.s32.totalorder %s20, 0
    %p239 = por %p237, %p238
    %p240 = scmp.ne.s32.totalorder %s226, %s227
    %p241 = scmp.eq.s32.totalorder %s21, 1
    %p242 = por %p240, %p241
    %p244 = scmp.ne.s32.totalorder %s227, %s243
    %p245 = scmp.eq.s32.totalorder %s21, 0
    %p246 = por %p244, %p245
    %s247 = ssub.s32 %s22, %s34
    %p248 = scmp.eq.s32.totalorder %s247, 0
    %s250 = sadd.s32 %s249, 1
    %s251 = scalar_select %p248, %s249, %s250
    %p254 = pneg %p248
    %p255 = scmp.eq.s32.totalorder %s15, 1
    %p256 = por %p254, %p255
    %p257 = scmp.ne.s32.totalorder %s249, %s252
    %p258 = scmp.eq.s32.totalorder %s15, 0
    %p259 = por %p257, %p258
    %p260 = scmp.ne.s32.totalorder %s249, %s252
    %p261 = scmp.eq.s32.totalorder %s20, 1
    %p262 = por %p260, %p261
    %p263 = scmp.ne.s32.totalorder %s252, %s253
    %p264 = scmp.eq.s32.totalorder %s20, 0
    %p265 = por %p263, %p264
    %p266 = scmp.ne.s32.totalorder %s252, %s253
    %p267 = scmp.eq.s32.totalorder %s21, 1
    %p268 = por %p266, %p267
    %p270 = scmp.ne.s32.totalorder %s253, %s269
    %p271 = scmp.eq.s32.totalorder %s21, 0
    %p272 = por %p270, %p271
    %p273 = scmp.le.s32.totalorder 1, %s15
    %p274 = scmp.lt.s32.totalorder %s15, 3
    %p275 = pnand %p273, %p274
    %p276 = pneg %p275
    // Predicated region
    $region9: #{basic_block_forward.3} parent=5 // pred_check
      _
    $region10: #{basic_block_forward.3} parent=5 // pred_check_branch
      %278 = sbr.rel (%p275) target = $region12
    $region11: #{basic_block_forward.3} parent=5 // pred_region
      %s279 = ssub.s32 %s15, 1
      // Predicated region
      $region13: #{basic_block_forward.3} parent=11 // pred_check
        %p280 = pneg %p79
      $region14: #{basic_block_forward.3} parent=11 // pred_check_branch
        %282 = sbr.rel (%p280) target = $region16
      $region15: #{basic_block_forward.3} parent=11 // pred_region
        %p283 = scmp.lt.s32.totalorder %s24, 0
        %s284 = scalar_select %p283, %s24, 0
        %s285 = smul.addr %s284, 4
        %s286 = scalar_lea.vmem %s1, %s285
      $region16: #{basic_block_forward.3} parent=11 // pred_fallthru
        _
      // Predicated region
      $region17: #{basic_block_forward.3} parent=11 // pred_check
        %p287 = pneg %p105
      $region18: #{basic_block_forward.3} parent=11 // pred_check_branch
        %289 = sbr.rel (%p287) target = $region20
      $region19: #{basic_block_forward.3} parent=11 // pred_region
        %p290 = scmp.lt.s32.totalorder %s24, 0
        %s291 = scalar_select %p290, %s24, 0
        %s292 = smul.addr %s291, 2
        %s293 = scalar_lea.vmem %s2, %s292
      $region20: #{basic_block_forward.3} parent=11 // pred_fallthru
        _
    $region12: #{basic_block_forward.3} parent=5 // pred_fallthru
      _
    %p294 = scmp.lt.s32.totalorder %s15, 2
    // Predicated region
    $region21: #{basic_block_forward.3} parent=5 // pred_check
      %p295 = pneg %p294
    $region22: #{basic_block_forward.3} parent=5 // pred_check_branch
      %297 = sbr.rel (%p295) target = $region24
    $region23: #{basic_block_forward.3} parent=5 // pred_region
      // Predicated region
      $region25: #{basic_block_forward.3} parent=23 // pred_check
        %p298 = pneg %p47
      $region26: #{basic_block_forward.3} parent=23 // pred_check_branch
        %300 = sbr.rel (%p298) target = $region28
      $region27: #{basic_block_forward.3} parent=23 // pred_region
        %p301 = scmp.lt.s32.totalorder %s23, 1
        %s302 = scalar_select %p301, %s23, 1
        %s303 = smul.addr %s302, 72
        %s304 = smul.addr %s303, 4
        %s305 = scalar_lea.vmem %s0, %s304
      $region28: #{basic_block_forward.3} parent=23 // pred_fallthru
        _
    $region24: #{basic_block_forward.3} parent=5 // pred_fallthru
      _
    %p306 = scmp.le.s32.totalorder 1, %s15
    %p307 = scmp.lt.s32.totalorder %s15, 3
    %p308 = pnand %p306, %p307
    %p309 = pneg %p308
    // Predicated region
    $region29: #{basic_block_forward.3} parent=5 // pred_check
      _
    $region30: #{basic_block_forward.3} parent=5 // pred_check_branch
      %311 = sbr.rel (%p308) target = $region32
    $region31: #{basic_block_forward.3} parent=5 // pred_region
      %s312 = ssub.s32 %s15, 1
      %p313 = scmp.lt.s32.totalorder %s25, 1
      %s314 = scalar_select %p313, %s25, 1
      %s315 = smul.addr %s314, 72
      %s316 = smul.addr %s315, 4
      %s317 = scalar_lea.vmem %s0, %s316
      %p318 = pneg %p53
      %p319 = pneg %p50
      %p320 = scmp.lt.s32.totalorder %s24, 0
      %s321 = scalar_select %p320, %s24, 0
      %s322 = smul.addr %s321, 4
      %s323 = scalar_lea.vmem %s1, %s322
      %p324 = pneg %p79
      %p325 = pneg %p76
      %p326 = scmp.lt.s32.totalorder %s24, 0
      %s327 = scalar_select %p326, %s24, 0
      %s328 = smul.addr %s327, 2
      %s329 = scalar_lea.vmem %s2, %s328
      %p330 = pneg %p105
      %p331 = pneg %p102
      %p332 = pneg %p133
      %p333 = pneg %p130
      %p334 = scmp.lt.s32.totalorder %s25, 1
      %s335 = scalar_select %p334, %s25, 1
      %p336 = scmp.lt.s32.totalorder %s24, 0
      %s337 = scalar_select %p336, %s24, 0
      %s338 = smul.addr %s335, 8
      %s339 = sadd.s32 %s337, %s338
      %s340 = smul.addr %s339, 4
      %s341 = scalar_lea.vmem %s3, %s340
      %p342 = pneg %p159
      %p343 = pneg %p156
      %p344 = scmp.lt.s32.totalorder %s24, 0
      %s345 = scalar_select %p344, %s24, 0
      %s346 = scalar_lea.vmem %s4, %s345
      %p347 = pneg %p185
      %p348 = pneg %p182
      %p349 = scmp.lt.s32.totalorder %s24, 0
      %s350 = scalar_select %p349, %s24, 0
      %s351 = scalar_lea.vmem %s5, %s350
      %p352 = pneg %p213
      %p353 = pneg %p210
      %p354 = scmp.lt.s32.totalorder %s25, 1
      %s355 = scalar_select %p354, %s25, 1
      %p356 = scmp.lt.s32.totalorder %s24, 0
      %s357 = scalar_select %p356, %s24, 0
      %s358 = smul.addr %s355, 8
      %s359 = sadd.s32 %s357, %s358
      %s360 = smul.addr %s359, 4
      %s361 = scalar_lea.vmem %s6, %s360
      %p362 = pneg %p239
      %p363 = pneg %p236
      %p364 = scmp.lt.s32.totalorder %s24, 0
      %s365 = scalar_select %p364, %s24, 0
      %s366 = scalar_lea.vmem %s7, %s365
      %p367 = pneg %p265
      %p368 = pneg %p262
      %p369 = scmp.lt.s32.totalorder %s24, 0
      %s370 = scalar_select %p369, %s24, 0
      %s371 = scalar_lea.vmem %s8, %s370
      %p372 = scmp.lt.s32.totalorder %s25, 1
      %s373 = scalar_select %p372, %s25, 1
      %s374 = smul.addr %s373, 72
      %s375 = smul.addr %s374, 4
      %s376 = scalar_lea.vmem %s0, %s375
      %p377 = scmp.lt.s32.totalorder %s24, 0
      %s378 = scalar_select %p377, %s24, 0
      %s379 = smul.addr %s378, 4
      %s380 = scalar_lea.vmem %s1, %s379
      %p381 = scmp.lt.s32.totalorder %s24, 0
      %s382 = scalar_select %p381, %s24, 0
      %s383 = smul.addr %s382, 2
      %s384 = scalar_lea.vmem %s2, %s383
      %p385 = scmp.lt.s32.totalorder %s25, 1
      %s386 = scalar_select %p385, %s25, 1
      %p387 = scmp.lt.s32.totalorder %s24, 0
      %s388 = scalar_select %p387, %s24, 0
      %s389 = smul.addr %s386, 8
      %s390 = sadd.s32 %s388, %s389
      %s391 = smul.addr %s390, 4
      %s392 = scalar_lea.vmem %s3, %s391
      %p393 = scmp.lt.s32.totalorder %s24, 0
      %s394 = scalar_select %p393, %s24, 0
      %s395 = scalar_lea.vmem %s4, %s394
      %p396 = scmp.lt.s32.totalorder %s24, 0
      %s397 = scalar_select %p396, %s24, 0
      %s398 = scalar_lea.vmem %s5, %s397
      %p399 = scmp.lt.s32.totalorder %s25, 1
      %s400 = scalar_select %p399, %s25, 1
      %p401 = scmp.lt.s32.totalorder %s24, 0
      %s402 = scalar_select %p401, %s24, 0
      %s403 = smul.addr %s400, 8
      %s404 = sadd.s32 %s402, %s403
      %s405 = smul.addr %s404, 4
      %s406 = scalar_lea.vmem %s6, %s405
      %p407 = scmp.lt.s32.totalorder %s24, 0
      %s408 = scalar_select %p407, %s24, 0
      %s409 = scalar_lea.vmem %s7, %s408
      %p410 = scmp.lt.s32.totalorder %s24, 0
      %s411 = scalar_select %p410, %s24, 0
      %s412 = scalar_lea.vmem %s8, %s411
      %p414 = scmp.eq.s32.totalorder %s25, 0
      // Predicated region
      $region33: #{basic_block_forward.3} parent=31 // pred_check
        %p415 = pneg %p414
      $region34: #{basic_block_forward.3} parent=31 // pred_check_branch
        %417 = sbr.rel (%p415) target = $region36
      $region35: #{basic_block_forward.3} parent=31 // pred_region
        %418 = vst [vmem:[%s395] sm:$0x1] 0.0
        %419 = vst [vmem:[%s398] sm:$0x1] 0.0
        %420 = vst [vmem:[%s409] sm:$0x1] 0.0
        %421 = vst [vmem:[%s412] sm:$0x1] 0.0
      $region36: #{basic_block_forward.3} parent=31 // pred_fallthru
        _
      %v422 = vld [vmem:[%s376] sm:$0xf]
      %v423 = vld [vmem:[%s376 + $0x8] sm:$0xf]
      %v424 = vld [vmem:[%s376 + $0x10] sm:$0xf]
      %v425 = vld [vmem:[%s376 + $0x18] sm:$0xf]
      %v426 = vld [vmem:[%s376 + $0x20] sm:$0xf]
      %v427 = vld [vmem:[%s376 + $0x28] sm:$0xf]
      %v428 = vld [vmem:[%s376 + $0x30] sm:$0xf]
      %v429 = vld [vmem:[%s376 + $0x38] sm:$0xf]
      %v430 = vld [vmem:[%s380] sm:$0x3]
      %s431 = scalar_lea.vmem %s376, 72
      %v432 = vld [vmem:[%s431] sm:$0xf]
      %v433 = vld [vmem:[%s431 + $0x8] sm:$0xf]
      %v434 = vld [vmem:[%s431 + $0x10] sm:$0xf]
      %v435 = vld [vmem:[%s431 + $0x18] sm:$0xf]
      %v436 = vld [vmem:[%s431 + $0x20] sm:$0xf]
      %v437 = vld [vmem:[%s431 + $0x28] sm:$0xf]
      %v438 = vld [vmem:[%s431 + $0x30] sm:$0xf]
      %v439 = vld [vmem:[%s431 + $0x38] sm:$0xf]
      %v440 = vld [vmem:[%s380] sm:$0xc]
      %v449 = vunpack.c.l.b16 %v432
      %v450 = vunpack.c.l.b16 %v433
      %v451 = vunpack.c.l.b16 %v434
      %v452 = vunpack.c.l.b16 %v435
      %v453 = vunpack.c.l.b16 %v436
      %v454 = vunpack.c.l.b16 %v437
      %v455 = vunpack.c.l.b16 %v438
      %v456 = vunpack.c.l.b16 %v439
      %v457 = vpack.c.b16 %v450, %v449
      %v458 = vpack.c.b16 %v452, %v451
      %v459 = vpack.c.b16 %v454, %v453
      %v460 = vpack.c.b16 %v456, %v455
      %v462 = vunpack.c.l.b16 %v440
      %v463 = vpack.c.b16 %v462, %v462
      %v464 = vrot.slane %v463, 2
      %vm465 = vcmask 31744
      %v467 = vsel %vm465, %v457, 0
      %v470 = vsel %vm465, %v458, 0
      %v473 = vsel %vm465, %v459, 0
      %v476 = vsel %vm465, %v460, 0
      %vm478 = vcmask 1041408
      %v480 = vsel %vm478, %v464, 0
      %482 = vmatprep.subr.bf16.mxu0 0
      %483 = vmatpush1.bf16.msra.mxu0 %v480
      %484 = vmatprep.subr.bf16.mxu0 0
      %485 = vmatpush1.bf16.msra.mxu0 0
      %486 = vmatprep.subr.bf16.mxu0 0
      %487 = vmatpush1.bf16.msra.mxu0 0
      %488 = vmatprep.subr.bf16.mxu0 0
      %489 = vmatpush1.bf16.msra.mxu0 0
      %490 = vmatprep.subr.bf16.mxu0 0
      %491 = vmatpush1.bf16.msra.mxu0 0
      %492 = vmatprep.subr.bf16.mxu0 0
      %493 = vmatpush1.bf16.msra.mxu0 0
      %494 = vmatprep.subr.bf16.mxu0 0
      %495 = vmatpush1.bf16.msra.mxu0 0
      %496 = vmatprep.subr.bf16.mxu0 0
      %497 = vmatpush1.bf16.msra.mxu0 0
      %498 = vmatprep.subr.bf16.mxu0 0
      %499 = vmatpush1.bf16.msra.mxu0 0
      %500 = vmatprep.subr.bf16.mxu0 0
      %501 = vmatpush1.bf16.msra.mxu0 0
      %502 = vmatprep.subr.bf16.mxu0 0
      %503 = vmatpush1.bf16.msra.mxu0 0
      %504 = vmatprep.subr.bf16.mxu0 0
      %505 = vmatpush1.bf16.msra.mxu0 0
      %506 = vmatprep.subr.bf16.mxu0 0
      %507 = vmatpush1.bf16.msra.mxu0 0
      %508 = vmatprep.subr.bf16.mxu0 0
      %509 = vmatpush1.bf16.msra.mxu0 0
      %510 = vmatprep.subr.bf16.mxu0 0
      %511 = vmatpush1.bf16.msra.mxu0 0
      %512 = vmatprep.subr.bf16.mxu0 0
      %513 = vmatpush1.bf16.msra.mxu0 0
      %514 = vmatprep.mubr.bf16.mxu0 0
      %515 = vmatmul.mubr.bf16.gmra.mrb[0].mxu0 %v467
      %v516 = vpop.f32.mrb[0].mxu0
      %v517 = vadd.f32 0.0, %v516
      %v518 = vpop.f32.mrb[0].mxu0
      %v519 = vpop.f32.mrb[0].mxu0
      %v520 = vadd.f32 0.0, %v519
      %v521 = vpop.f32.mrb[0].mxu0
      %522 = vmatprep.mubr.bf16.mxu0 0
      %523 = vmatmul.mubr.bf16.gmra.mrb[0].mxu0 %v470
      %v524 = vpop.f32.mrb[0].mxu0
      %v525 = vadd.f32 0.0, %v524
      %v526 = vpop.f32.mrb[0].mxu0
      %v527 = vpop.f32.mrb[0].mxu0
      %v528 = vadd.f32 0.0, %v527
      %v529 = vpop.f32.mrb[0].mxu0
      %530 = vmatprep.mubr.bf16.mxu0 0
      %531 = vmatmul.mubr.bf16.gmra.mrb[0].mxu0 %v473
      %v532 = vpop.f32.mrb[0].mxu0
      %v533 = vadd.f32 0.0, %v532
      %v534 = vpop.f32.mrb[0].mxu0
      %v535 = vpop.f32.mrb[0].mxu0
      %v536 = vadd.f32 0.0, %v535
      %v537 = vpop.f32.mrb[0].mxu0
      %538 = vmatprep.mubr.bf16.mxu0 0
      %539 = vmatmul.mubr.bf16.gmra.mrb[0].mxu0 %v476
      %v540 = vpop.f32.mrb[0].mxu0
      %v541 = vadd.f32 0.0, %v540
      %v542 = vpop.f32.mrb[0].mxu0
      %v543 = vpop.f32.mrb[0].mxu0
      %v544 = vadd.f32 0.0, %v543
      %v545 = vpop.f32.mrb[0].mxu0
      %546 = vdwg.mxu0
      %v555 = vunpack.c.l.b16 %v422
      %v556 = vunpack.c.l.b16 %v423
      %v557 = vunpack.c.l.b16 %v424
      %v558 = vunpack.c.l.b16 %v425
      %v559 = vunpack.c.l.b16 %v426
      %v560 = vunpack.c.l.b16 %v427
      %v561 = vunpack.c.l.b16 %v428
      %v562 = vunpack.c.l.b16 %v429
      %v563 = vpack.c.b16 %v556, %v555
      %v564 = vpack.c.b16 %v558, %v557
      %v565 = vpack.c.b16 %v560, %v559
      %v566 = vpack.c.b16 %v562, %v561
      %v568 = vsel %vm465, %v563, 0
      %v571 = vsel %vm465, %v564, 0
      %v574 = vsel %vm465, %v565, 0
      %v577 = vsel %vm465, %v566, 0
      %v580 = vsel %vm478, %v430, 0
      %582 = vmatprep.subr.bf16.mxu0 0
      %583 = vmatpush1.bf16.msra.mxu0 %v580
      %584 = vmatprep.subr.bf16.mxu0 0
      %585 = vmatpush1.bf16.msra.mxu0 0
      %586 = vmatprep.subr.bf16.mxu0 0
      %587 = vmatpush1.bf16.msra.mxu0 0
      %588 = vmatprep.subr.bf16.mxu0 0
      %589 = vmatpush1.bf16.msra.mxu0 0
      %590 = vmatprep.subr.bf16.mxu0 0
      %591 = vmatpush1.bf16.msra.mxu0 0
      %592 = vmatprep.subr.bf16.mxu0 0
      %593 = vmatpush1.bf16.msra.mxu0 0
      %594 = vmatprep.subr.bf16.mxu0 0
      %595 = vmatpush1.bf16.msra.mxu0 0
      %596 = vmatprep.subr.bf16.mxu0 0
      %597 = vmatpush1.bf16.msra.mxu0 0
      %598 = vmatprep.subr.bf16.mxu0 0
      %599 = vmatpush1.bf16.msra.mxu0 0
      %600 = vmatprep.subr.bf16.mxu0 0
      %601 = vmatpush1.bf16.msra.mxu0 0
      %602 = vmatprep.subr.bf16.mxu0 0
      %603 = vmatpush1.bf16.msra.mxu0 0
      %604 = vmatprep.subr.bf16.mxu0 0
      %605 = vmatpush1.bf16.msra.mxu0 0
      %606 = vmatprep.subr.bf16.mxu0 0
      %607 = vmatpush1.bf16.msra.mxu0 0
      %608 = vmatprep.subr.bf16.mxu0 0
      %609 = vmatpush1.bf16.msra.mxu0 0
      %610 = vmatprep.subr.bf16.mxu0 0
      %611 = vmatpush1.bf16.msra.mxu0 0
      %612 = vmatprep.subr.bf16.mxu0 0
      %613 = vmatpush1.bf16.msra.mxu0 0
      %614 = vmatprep.mubr.bf16.mxu0 0
      %615 = vmatmul.mubr.bf16.gmra.mrb[0].mxu0 %v568
      %v616 = vpop.f32.mrb[0].mxu0
      %v617 = vadd.f32 %v517, %v616
      %v618 = vpop.f32.mrb[0].mxu0
      %v619 = vpop.f32.mrb[0].mxu0
      %v620 = vadd.f32 %v520, %v619
      %v621 = vpop.f32.mrb[0].mxu0
      %622 = vmatprep.mubr.bf16.mxu0 0
      %623 = vmatmul.mubr.bf16.gmra.mrb[0].mxu0 %v571
      %v624 = vpop.f32.mrb[0].mxu0
      %v625 = vadd.f32 %v525, %v624
      %v626 = vpop.f32.mrb[0].mxu0
      %v627 = vpop.f32.mrb[0].mxu0
      %v628 = vadd.f32 %v528, %v627
      %v629 = vpop.f32.mrb[0].mxu0
      %630 = vmatprep.mubr.bf16.mxu0 0
      %631 = vmatmul.mubr.bf16.gmra.mrb[0].mxu0 %v574
      %v632 = vpop.f32.mrb[0].mxu0
      %v633 = vadd.f32 %v533, %v632
      %v634 = vpop.f32.mrb[0].mxu0
      %v635 = vpop.f32.mrb[0].mxu0
      %v636 = vadd.f32 %v536, %v635
      %v637 = vpop.f32.mrb[0].mxu0
      %638 = vmatprep.mubr.bf16.mxu0 0
      %639 = vmatmul.mubr.bf16.gmra.mrb[0].mxu0 %v577
      %v640 = vpop.f32.mrb[0].mxu0
      %v641 = vadd.f32 %v541, %v640
      %v642 = vpop.f32.mrb[0].mxu0
      %v643 = vpop.f32.mrb[0].mxu0
      %v644 = vadd.f32 %v544, %v643
      %v645 = vpop.f32.mrb[0].mxu0
      %646 = vdwg.mxu0
      %v647 = vld [vmem:[%s376] sm:$0xf]
      %v648 = vld [vmem:[%s376 + $0x4] sm:$0x1]
      %v649 = vld [vmem:[%s376 + $0x8] sm:$0xf]
      %v650 = vld [vmem:[%s376 + $0xc] sm:$0x1]
      %v651 = vld [vmem:[%s376 + $0x10] sm:$0xf]
      %v652 = vld [vmem:[%s376 + $0x14] sm:$0x1]
      %v653 = vld [vmem:[%s376 + $0x18] sm:$0xf]
      %v654 = vld [vmem:[%s376 + $0x1c] sm:$0x1]
      %v655 = vld [vmem:[%s376 + $0x20] sm:$0xf]
      %v656 = vld [vmem:[%s376 + $0x24] sm:$0x1]
      %v657 = vld [vmem:[%s376 + $0x28] sm:$0xf]
      %v658 = vld [vmem:[%s376 + $0x2c] sm:$0x1]
      %v659 = vld [vmem:[%s376 + $0x30] sm:$0xf]
      %v660 = vld [vmem:[%s376 + $0x34] sm:$0x1]
      %v661 = vld [vmem:[%s376 + $0x38] sm:$0xf]
      %v662 = vld [vmem:[%s376 + $0x3c] sm:$0x1]
      %vm663 = vsmask.f32 3328
      %vm664 = vsmask.f32 7440
      %vm665 = vmor %vm663, %vm664
      %v667 = vshrl.u32 %v647, 16
      %v669 = vrot.slane %v667, 4
      %v670 = vshll.u32 %v647, 16
      %v672 = vrot.slane %v670, 5
      %v673 = vor.u32 %v669, %v672
      %v674 = vrot.slane %v673, 4
      %v676 = vshll.u32 %v648, 16
      %v678 = vrot.slane %v676, 5
      %v679 = vsel %vm665, %v674, %v678
      %v681 = vshrl.u32 %v649, 16
      %v683 = vrot.slane %v681, 4
      %v684 = vshll.u32 %v649, 16
      %v686 = vrot.slane %v684, 5
      %v687 = vor.u32 %v683, %v686
      %v688 = vrot.slane %v687, 4
      %v690 = vshll.u32 %v650, 16
      %v692 = vrot.slane %v690, 5
      %v693 = vsel %vm665, %v688, %v692
      %v695 = vshrl.u32 %v651, 16
      %v697 = vrot.slane %v695, 4
      %v698 = vshll.u32 %v651, 16
      %v700 = vrot.slane %v698, 5
      %v701 = vor.u32 %v697, %v700
      %v702 = vrot.slane %v701, 4
      %v704 = vshll.u32 %v652, 16
      %v706 = vrot.slane %v704, 5
      %v707 = vsel %vm665, %v702, %v706
      %v709 = vshrl.u32 %v653, 16
      %v711 = vrot.slane %v709, 4
      %v712 = vshll.u32 %v653, 16
      %v714 = vrot.slane %v712, 5
      %v715 = vor.u32 %v711, %v714
      %v716 = vrot.slane %v715, 4
      %v718 = vshll.u32 %v654, 16
      %v720 = vrot.slane %v718, 5
      %v721 = vsel %vm665, %v716, %v720
      %v723 = vshrl.u32 %v655, 16
      %v725 = vrot.slane %v723, 4
      %v726 = vshll.u32 %v655, 16
      %v728 = vrot.slane %v726, 5
      %v729 = vor.u32 %v725, %v728
      %v730 = vrot.slane %v729, 4
      %v732 = vshll.u32 %v656, 16
      %v734 = vrot.slane %v732, 5
      %v735 = vsel %vm665, %v730, %v734
      %v737 = vshrl.u32 %v657, 16
      %v739 = vrot.slane %v737, 4
      %v740 = vshll.u32 %v657, 16
      %v742 = vrot.slane %v740, 5
      %v743 = vor.u32 %v739, %v742
      %v744 = vrot.slane %v743, 4
      %v746 = vshll.u32 %v658, 16
      %v748 = vrot.slane %v746, 5
      %v749 = vsel %vm665, %v744, %v748
      %v751 = vshrl.u32 %v659, 16
      %v753 = vrot.slane %v751, 4
      %v754 = vshll.u32 %v659, 16
      %v756 = vrot.slane %v754, 5
      %v757 = vor.u32 %v753, %v756
      %v758 = vrot.slane %v757, 4
      %v760 = vshll.u32 %v660, 16
      %v762 = vrot.slane %v760, 5
      %v763 = vsel %vm665, %v758, %v762
      %v765 = vshrl.u32 %v661, 16
      %v767 = vrot.slane %v765, 4
      %v768 = vshll.u32 %v661, 16
      %v770 = vrot.slane %v768, 5
      %v771 = vor.u32 %v767, %v770
      %v772 = vrot.slane %v771, 4
      %v774 = vshll.u32 %v662, 16
      %v776 = vrot.slane %v774, 5
      %v777 = vsel %vm665, %v772, %v776
      %v778 = vld [vmem:[%s380 + $0x4] sm:$0x3]
      %v779 = vunpack.c.l.b16 %v679
      %v780 = vunpack.c.l.b16 %v693
      %v781 = vunpack.c.l.b16 %v707
      %v782 = vunpack.c.l.b16 %v721
      %v783 = vunpack.c.l.b16 %v735
      %v784 = vunpack.c.l.b16 %v749
      %v785 = vunpack.c.l.b16 %v763
      %v786 = vunpack.c.l.b16 %v777
      %v787 = vpack.c.b16 %v780, %v779
      %v788 = vpack.c.b16 %v782, %v781
      %v789 = vpack.c.b16 %v784, %v783
      %v790 = vpack.c.b16 %v786, %v785
      %v792 = vsel %vm465, %v787, 0
      %v795 = vsel %vm465, %v788, 0
      %v798 = vsel %vm465, %v789, 0
      %v801 = vsel %vm465, %v790, 0
      %v804 = vsel %vm478, %v778, 0
      %806 = vmatprep.subr.bf16.mxu0 0
      %807 = vmatpush1.bf16.msra.mxu0 %v804
      %808 = vmatprep.subr.bf16.mxu0 0
      %809 = vmatpush1.bf16.msra.mxu0 0
      %810 = vmatprep.subr.bf16.mxu0 0
      %811 = vmatpush1.bf16.msra.mxu0 0
      %812 = vmatprep.subr.bf16.mxu0 0
      %813 = vmatpush1.bf16.msra.mxu0 0
      %814 = vmatprep.subr.bf16.mxu0 0
      %815 = vmatpush1.bf16.msra.mxu0 0
      %816 = vmatprep.subr.bf16.mxu0 0
      %817 = vmatpush1.bf16.msra.mxu0 0
      %818 = vmatprep.subr.bf16.mxu0 0
      %819 = vmatpush1.bf16.msra.mxu0 0
      %820 = vmatprep.subr.bf16.mxu0 0
      %821 = vmatpush1.bf16.msra.mxu0 0
      %822 = vmatprep.subr.bf16.mxu0 0
      %823 = vmatpush1.bf16.msra.mxu0 0
      %824 = vmatprep.subr.bf16.mxu0 0
      %825 = vmatpush1.bf16.msra.mxu0 0
      %826 = vmatprep.subr.bf16.mxu0 0
      %827 = vmatpush1.bf16.msra.mxu0 0
      %828 = vmatprep.subr.bf16.mxu0 0
      %829 = vmatpush1.bf16.msra.mxu0 0
      %830 = vmatprep.subr.bf16.mxu0 0
      %831 = vmatpush1.bf16.msra.mxu0 0
      %832 = vmatprep.subr.bf16.mxu0 0
      %833 = vmatpush1.bf16.msra.mxu0 0
      %834 = vmatprep.subr.bf16.mxu0 0
      %835 = vmatpush1.bf16.msra.mxu0 0
      %836 = vmatprep.subr.bf16.mxu0 0
      %837 = vmatpush1.bf16.msra.mxu0 0
      %838 = vmatprep.mubr.bf16.mxu0 0
      %839 = vmatmul.mubr.bf16.gmra.mrb[0].mxu0 %v792
      %v840 = vpop.f32.mrb[0].mxu0
      %v841 = vadd.f32 0.0, %v840
      %v842 = vpop.f32.mrb[0].mxu0
      %v843 = vpop.f32.mrb[0].mxu0
      %v844 = vadd.f32 0.0, %v843
      %v845 = vpop.f32.mrb[0].mxu0
      %846 = vmatprep.mubr.bf16.mxu0 0
      %847 = vmatmul.mubr.bf16.gmra.mrb[0].mxu0 %v795
      %v848 = vpop.f32.mrb[0].mxu0
      %v849 = vadd.f32 0.0, %v848
      %v850 = vpop.f32.mrb[0].mxu0
      %v851 = vpop.f32.mrb[0].mxu0
      %v852 = vadd.f32 0.0, %v851
      %v853 = vpop.f32.mrb[0].mxu0
      %854 = vmatprep.mubr.bf16.mxu0 0
      %855 = vmatmul.mubr.bf16.gmra.mrb[0].mxu0 %v798
      %v856 = vpop.f32.mrb[0].mxu0
      %v857 = vadd.f32 0.0, %v856
      %v858 = vpop.f32.mrb[0].mxu0
      %v859 = vpop.f32.mrb[0].mxu0
      %v860 = vadd.f32 0.0, %v859
      %v861 = vpop.f32.mrb[0].mxu0
      %862 = vmatprep.mubr.bf16.mxu0 0
      %863 = vmatmul.mubr.bf16.gmra.mrb[0].mxu0 %v801
      %v864 = vpop.f32.mrb[0].mxu0
      %v865 = vadd.f32 0.0, %v864
      %v866 = vpop.f32.mrb[0].mxu0
      %v867 = vpop.f32.mrb[0].mxu0
      %v868 = vadd.f32 0.0, %v867
      %v869 = vpop.f32.mrb[0].mxu0
      %870 = vdwg.mxu0
      %v871 = vadd.f32 %v617, %v841
      %v872 = vadd.f32 %v620, %v844
      %v873 = vadd.f32 %v625, %v849
      %v874 = vadd.f32 %v628, %v852
      %v875 = vadd.f32 %v633, %v857
      %v876 = vadd.f32 %v636, %v860
      %v877 = vadd.f32 %v641, %v865
      %v878 = vadd.f32 %v644, %v868
      %s879 = scalar_lea.vmem %s376, 144
      %v880 = vld [vmem:[%s879] sm:$0xf]
      %v881 = vld [vmem:[%s879 + $0x8] sm:$0xf]
      %v882 = vld [vmem:[%s879 + $0x10] sm:$0xf]
      %v883 = vld [vmem:[%s879 + $0x18] sm:$0xf]
      %v884 = vld [vmem:[%s879 + $0x20] sm:$0xf]
      %v885 = vld [vmem:[%s879 + $0x28] sm:$0xf]
      %v886 = vld [vmem:[%s879 + $0x30] sm:$0xf]
      %v887 = vld [vmem:[%s879 + $0x38] sm:$0xf]
      %v888 = vld [vmem:[%s380 + $0x4] sm:$0xc]
      %v897 = vunpack.c.l.b16 %v880
      %v898 = vunpack.c.l.b16 %v881
      %v899 = vunpack.c.l.b16 %v882
      %v900 = vunpack.c.l.b16 %v883
      %v901 = vunpack.c.l.b16 %v884
      %v902 = vunpack.c.l.b16 %v885
      %v903 = vunpack.c.l.b16 %v886
      %v904 = vunpack.c.l.b16 %v887
      %v905 = vpack.c.b16 %v898, %v897
      %v906 = vpack.c.b16 %v900, %v899
      %v907 = vpack.c.b16 %v902, %v901
      %v908 = vpack.c.b16 %v904, %v903
      %v910 = vunpack.c.l.b16 %v888
      %v911 = vpack.c.b16 %v910, %v910
      %v912 = vrot.slane %v911, 2
      %v914 = vsel %vm465, %v905, 0
      %v917 = vsel %vm465, %v906, 0
      %v920 = vsel %vm465, %v907, 0
      %v923 = vsel %vm465, %v908, 0
      %v926 = vsel %vm478, %v912, 0
      %928 = vmatprep.subr.bf16.mxu0 0
      %929 = vmatpush1.bf16.msra.mxu0 %v926
      %930 = vmatprep.subr.bf16.mxu0 0
      %931 = vmatpush1.bf16.msra.mxu0 0
      %932 = vmatprep.subr.bf16.mxu0 0
      %933 = vmatpush1.bf16.msra.mxu0 0
      %934 = vmatprep.subr.bf16.mxu0 0
      %935 = vmatpush1.bf16.msra.mxu0 0
      %936 = vmatprep.subr.bf16.mxu0 0
      %937 = vmatpush1.bf16.msra.mxu0 0
      %938 = vmatprep.subr.bf16.mxu0 0
      %939 = vmatpush1.bf16.msra.mxu0 0
      %940 = vmatprep.subr.bf16.mxu0 0
      %941 = vmatpush1.bf16.msra.mxu0 0
      %942 = vmatprep.subr.bf16.mxu0 0
      %943 = vmatpush1.bf16.msra.mxu0 0
      %944 = vmatprep.subr.bf16.mxu0 0
      %945 = vmatpush1.bf16.msra.mxu0 0
      %946 = vmatprep.subr.bf16.mxu0 0
      %947 = vmatpush1.bf16.msra.mxu0 0
      %948 = vmatprep.subr.bf16.mxu0 0
      %949 = vmatpush1.bf16.msra.mxu0 0
      %950 = vmatprep.subr.bf16.mxu0 0
      %951 = vmatpush1.bf16.msra.mxu0 0
      %952 = vmatprep.subr.bf16.mxu0 0
      %953 = vmatpush1.bf16.msra.mxu0 0
      %954 = vmatprep.subr.bf16.mxu0 0
      %955 = vmatpush1.bf16.msra.mxu0 0
      %956 = vmatprep.subr.bf16.mxu0 0
      %957 = vmatpush1.bf16.msra.mxu0 0
      %958 = vmatprep.subr.bf16.mxu0 0
      %959 = vmatpush1.bf16.msra.mxu0 0
      %960 = vmatprep.mubr.bf16.mxu0 0
      %961 = vmatmul.mubr.bf16.gmra.mrb[0].mxu0 %v914
      %v962 = vpop.f32.mrb[0].mxu0
      %v963 = vadd.f32 0.0, %v962
      %v964 = vpop.f32.mrb[0].mxu0
      %v965 = vpop.f32.mrb[0].mxu0
      %v966 = vadd.f32 0.0, %v965
      %v967 = vpop.f32.mrb[0].mxu0
      %968 = vmatprep.mubr.bf16.mxu0 0
      %969 = vmatmul.mubr.bf16.gmra.mrb[0].mxu0 %v917
      %v970 = vpop.f32.mrb[0].mxu0
      %v971 = vadd.f32 0.0, %v970
      %v972 = vpop.f32.mrb[0].mxu0
      %v973 = vpop.f32.mrb[0].mxu0
      %v974 = vadd.f32 0.0, %v973
      %v975 = vpop.f32.mrb[0].mxu0
      %976 = vmatprep.mubr.bf16.mxu0 0
      %977 = vmatmul.mubr.bf16.gmra.mrb[0].mxu0 %v920
      %v978 = vpop.f32.mrb[0].mxu0
      %v979 = vadd.f32 0.0, %v978
      %v980 = vpop.f32.mrb[0].mxu0
      %v981 = vpop.f32.mrb[0].mxu0
      %v982 = vadd.f32 0.0, %v981
      %v983 = vpop.f32.mrb[0].mxu0
      %984 = vmatprep.mubr.bf16.mxu0 0
      %985 = vmatmul.mubr.bf16.gmra.mrb[0].mxu0 %v923
      %v986 = vpop.f32.mrb[0].mxu0
      %v987 = vadd.f32 0.0, %v986
      %v988 = vpop.f32.mrb[0].mxu0
      %v989 = vpop.f32.mrb[0].mxu0
      %v990 = vadd.f32 0.0, %v989
      %v991 = vpop.f32.mrb[0].mxu0
      %992 = vdwg.mxu0
      %v993 = vadd.f32 %v871, %v963
      %v994 = vadd.f32 %v872, %v966
      %v995 = vadd.f32 %v873, %v971
      %v996 = vadd.f32 %v874, %v974
      %v997 = vadd.f32 %v875, %v979
      %v998 = vadd.f32 %v876, %v982
      %v999 = vadd.f32 %v877, %v987
      %v1000 = vadd.f32 %v878, %v990
      %s1001 = scalar_lea.vmem %s376, 216
      %v1002 = vld [vmem:[%s1001] sm:$0xf]
      %v1003 = vld [vmem:[%s1001 + $0x8] sm:$0xf]
      %v1004 = vld [vmem:[%s1001 + $0x10] sm:$0xf]
      %v1005 = vld [vmem:[%s1001 + $0x18] sm:$0xf]
      %v1006 = vld [vmem:[%s1001 + $0x20] sm:$0xf]
      %v1007 = vld [vmem:[%s1001 + $0x28] sm:$0xf]
      %v1008 = vld [vmem:[%s1001 + $0x30] sm:$0xf]
      %v1009 = vld [vmem:[%s1001 + $0x38] sm:$0xf]
      %v1010 = vld [vmem:[%s380 + $0x8] sm:$0x3]
      %v1019 = vunpack.c.l.b16 %v1002
      %v1020 = vunpack.c.l.b16 %v1003
      %v1021 = vunpack.c.l.b16 %v1004
      %v1022 = vunpack.c.l.b16 %v1005
      %v1023 = vunpack.c.l.b16 %v1006
      %v1024 = vunpack.c.l.b16 %v1007
      %v1025 = vunpack.c.l.b16 %v1008
      %v1026 = vunpack.c.l.b16 %v1009
      %v1027 = vpack.c.b16 %v1020, %v1019
      %v1028 = vpack.c.b16 %v1022, %v1021
      %v1029 = vpack.c.b16 %v1024, %v1023
      %v1030 = vpack.c.b16 %v1026, %v1025
      %v1032 = vsel %vm465, %v1027, 0
      %v1035 = vsel %vm465, %v1028, 0
      %v1038 = vsel %vm465, %v1029, 0
      %v1041 = vsel %vm465, %v1030, 0
      %v1044 = vsel %vm478, %v1010, 0
      %1046 = vmatprep.subr.bf16.mxu0 0
      %1047 = vmatpush1.bf16.msra.mxu0 %v1044
      %1048 = vmatprep.subr.bf16.mxu0 0
      %1049 = vmatpush1.bf16.msra.mxu0 0
      %1050 = vmatprep.subr.bf16.mxu0 0
      %1051 = vmatpush1.bf16.msra.mxu0 0
      %1052 = vmatprep.subr.bf16.mxu0 0
      %1053 = vmatpush1.bf16.msra.mxu0 0
      %1054 = vmatprep.subr.bf16.mxu0 0
      %1055 = vmatpush1.bf16.msra.mxu0 0
      %1056 = vmatprep.subr.bf16.mxu0 0
      %1057 = vmatpush1.bf16.msra.mxu0 0
      %1058 = vmatprep.subr.bf16.mxu0 0
      %1059 = vmatpush1.bf16.msra.mxu0 0
      %1060 = vmatprep.subr.bf16.mxu0 0
      %1061 = vmatpush1.bf16.msra.mxu0 0
      %1062 = vmatprep.subr.bf16.mxu0 0
      %1063 = vmatpush1.bf16.msra.mxu0 0
      %1064 = vmatprep.subr.bf16.mxu0 0
      %1065 = vmatpush1.bf16.msra.mxu0 0
      %1066 = vmatprep.subr.bf16.mxu0 0
      %1067 = vmatpush1.bf16.msra.mxu0 0
      %1068 = vmatprep.subr.bf16.mxu0 0
      %1069 = vmatpush1.bf16.msra.mxu0 0
      %1070 = vmatprep.subr.bf16.mxu0 0
      %1071 = vmatpush1.bf16.msra.mxu0 0
      %1072 = vmatprep.subr.bf16.mxu0 0
      %1073 = vmatpush1.bf16.msra.mxu0 0
      %1074 = vmatprep.subr.bf16.mxu0 0
      %1075 = vmatpush1.bf16.msra.mxu0 0
      %1076 = vmatprep.subr.bf16.mxu0 0
      %1077 = vmatpush1.bf16.msra.mxu0 0
      %1078 = vmatprep.mubr.bf16.mxu0 0
      %1079 = vmatmul.mubr.bf16.gmra.mrb[0].mxu0 %v1032
      %v1080 = vpop.f32.mrb[0].mxu0
      %v1081 = vadd.f32 0.0, %v1080
      %v1082 = vpop.f32.mrb[0].mxu0
      %v1083 = vpop.f32.mrb[0].mxu0
      %v1084 = vadd.f32 0.0, %v1083
      %v1085 = vpop.f32.mrb[0].mxu0
      %1086 = vmatprep.mubr.bf16.mxu0 0
      %1087 = vmatmul.mubr.bf16.gmra.mrb[0].mxu0 %v1035
      %v1088 = vpop.f32.mrb[0].mxu0
      %v1089 = vadd.f32 0.0, %v1088
      %v1090 = vpop.f32.mrb[0].mxu0
      %v1091 = vpop.f32.mrb[0].mxu0
      %v1092 = vadd.f32 0.0, %v1091
      %v1093 = vpop.f32.mrb[0].mxu0
      %1094 = vmatprep.mubr.bf16.mxu0 0
      %1095 = vmatmul.mubr.bf16.gmra.mrb[0].mxu0 %v1038
      %v1096 = vpop.f32.mrb[0].mxu0
      %v1097 = vadd.f32 0.0, %v1096
      %v1098 = vpop.f32.mrb[0].mxu0
      %v1099 = vpop.f32.mrb[0].mxu0
      %v1100 = vadd.f32 0.0, %v1099
      %v1101 = vpop.f32.mrb[0].mxu0
      %1102 = vmatprep.mubr.bf16.mxu0 0
      %1103 = vmatmul.mubr.bf16.gmra.mrb[0].mxu0 %v1041
      %v1104 = vpop.f32.mrb[0].mxu0
      %v1105 = vadd.f32 0.0, %v1104
      %v1106 = vpop.f32.mrb[0].mxu0
      %v1107 = vpop.f32.mrb[0].mxu0
      %v1108 = vadd.f32 0.0, %v1107
      %v1109 = vpop.f32.mrb[0].mxu0
      %1110 = vdwg.mxu0
      %v1111 = vadd.f32 %v993, %v1081
      %v1112 = vadd.f32 %v994, %v1084
      %v1113 = vadd.f32 %v995, %v1089
      %v1114 = vadd.f32 %v996, %v1092
      %v1115 = vadd.f32 %v997, %v1097
      %v1116 = vadd.f32 %v998, %v1100
      %v1117 = vadd.f32 %v999, %v1105
      %v1118 = vadd.f32 %v1000, %v1108
      %v1119 = vld [vmem:[%s879] sm:$0xf]
      %v1120 = vld [vmem:[%s879 + $0x4] sm:$0x1]
      %v1121 = vld [vmem:[%s879 + $0x8] sm:$0xf]
      %v1122 = vld [vmem:[%s879 + $0xc] sm:$0x1]
      %v1123 = vld [vmem:[%s879 + $0x10] sm:$0xf]
      %v1124 = vld [vmem:[%s879 + $0x14] sm:$0x1]
      %v1125 = vld [vmem:[%s879 + $0x18] sm:$0xf]
      %v1126 = vld [vmem:[%s879 + $0x1c] sm:$0x1]
      %v1127 = vld [vmem:[%s879 + $0x20] sm:$0xf]
      %v1128 = vld [vmem:[%s879 + $0x24] sm:$0x1]
      %v1129 = vld [vmem:[%s879 + $0x28] sm:$0xf]
      %v1130 = vld [vmem:[%s879 + $0x2c] sm:$0x1]
      %v1131 = vld [vmem:[%s879 + $0x30] sm:$0xf]
      %v1132 = vld [vmem:[%s879 + $0x34] sm:$0x1]
      %v1133 = vld [vmem:[%s879 + $0x38] sm:$0xf]
      %v1134 = vld [vmem:[%s879 + $0x3c] sm:$0x1]
      %v1136 = vshrl.u32 %v1119, 16
      %v1138 = vrot.slane %v1136, 4
      %v1139 = vshll.u32 %v1119, 16
      %v1141 = vrot.slane %v1139, 5
      %v1142 = vor.u32 %v1138, %v1141
      %v1143 = vrot.slane %v1142, 4
      %v1145 = vshll.u32 %v1120, 16
      %v1147 = vrot.slane %v1145, 5
      %v1148 = vsel %vm665, %v1143, %v1147
      %v1150 = vshrl.u32 %v1121, 16
      %v1152 = vrot.slane %v1150, 4
      %v1153 = vshll.u32 %v1121, 16
      %v1155 = vrot.slane %v1153, 5
      %v1156 = vor.u32 %v1152, %v1155
      %v1157 = vrot.slane %v1156, 4
      %v1159 = vshll.u32 %v1122, 16
      %v1161 = vrot.slane %v1159, 5
      %v1162 = vsel %vm665, %v1157, %v1161
      %v1164 = vshrl.u32 %v1123, 16
      %v1166 = vrot.slane %v1164, 4
      %v1167 = vshll.u32 %v1123, 16
      %v1169 = vrot.slane %v1167, 5
      %v1170 = vor.u32 %v1166, %v1169
      %v1171 = vrot.slane %v1170, 4
      %v1173 = vshll.u32 %v1124, 16
      %v1175 = vrot.slane %v1173, 5
      %v1176 = vsel %vm665, %v1171, %v1175
      %v1178 = vshrl.u32 %v1125, 16
      %v1180 = vrot.slane %v1178, 4
      %v1181 = vshll.u32 %v1125, 16
      %v1183 = vrot.slane %v1181, 5
      %v1184 = vor.u32 %v1180, %v1183
      %v1185 = vrot.slane %v1184, 4
      %v1187 = vshll.u32 %v1126, 16
      %v1189 = vrot.slane %v1187, 5
      %v1190 = vsel %vm665, %v1185, %v1189
      %v1192 = vshrl.u32 %v1127, 16
      %v1194 = vrot.slane %v1192, 4
      %v1195 = vshll.u32 %v1127, 16
      %v1197 = vrot.slane %v1195, 5
      %v1198 = vor.u32 %v1194, %v1197
      %v1199 = vrot.slane %v1198, 4
      %v1201 = vshll.u32 %v1128, 16
      %v1203 = vrot.slane %v1201, 5
      %v1204 = vsel %vm665, %v1199, %v1203
      %v1206 = vshrl.u32 %v1129, 16
      %v1208 = vrot.slane %v1206, 4
      %v1209 = vshll.u32 %v1129, 16
      %v1211 = vrot.slane %v1209, 5
      %v1212 = vor.u32 %v1208, %v1211
      %v1213 = vrot.slane %v1212, 4
      %v1215 = vshll.u32 %v1130, 16
      %v1217 = vrot.slane %v1215, 5
      %v1218 = vsel %vm665, %v1213, %v1217
      %v1220 = vshrl.u32 %v1131, 16
      %v1222 = vrot.slane %v1220, 4
      %v1223 = vshll.u32 %v1131, 16
      %v1225 = vrot.slane %v1223, 5
      %v1226 = vor.u32 %v1222, %v1225
      %v1227 = vrot.slane %v1226, 4
      %v1229 = vshll.u32 %v1132, 16
      %v1231 = vrot.slane %v1229, 5
      %v1232 = vsel %vm665, %v1227, %v1231
      %v1234 = vshrl.u32 %v1133, 16
      %v1236 = vrot.slane %v1234, 4
      %v1237 = vshll.u32 %v1133, 16
      %v1239 = vrot.slane %v1237, 5
      %v1240 = vor.u32 %v1236, %v1239
      %v1241 = vrot.slane %v1240, 4
      %v1243 = vshll.u32 %v1134, 16
      %v1245 = vrot.slane %v1243, 5
      %v1246 = vsel %vm665, %v1241, %v1245
      %v1247 = vld [vmem:[%s380 + $0x8] sm:$0xc]
      %v1248 = vunpack.c.l.b16 %v1148
      %v1249 = vunpack.c.l.b16 %v1162
      %v1250 = vunpack.c.l.b16 %v1176
      %v1251 = vunpack.c.l.b16 %v1190
      %v1252 = vunpack.c.l.b16 %v1204
      %v1253 = vunpack.c.l.b16 %v1218
      %v1254 = vunpack.c.l.b16 %v1232
      %v1255 = vunpack.c.l.b16 %v1246
      %v1256 = vpack.c.b16 %v1249, %v1248
      %v1257 = vpack.c.b16 %v1251, %v1250
      %v1258 = vpack.c.b16 %v1253, %v1252
      %v1259 = vpack.c.b16 %v1255, %v1254
      %v1261 = vunpack.c.l.b16 %v1247
      %v1262 = vpack.c.b16 %v1261, %v1261
      %v1263 = vrot.slane %v1262, 2
      %v1265 = vsel %vm465, %v1256, 0
      %v1268 = vsel %vm465, %v1257, 0
      %v1271 = vsel %vm465, %v1258, 0
      %v1274 = vsel %vm465, %v1259, 0
      %v1277 = vsel %vm478, %v1263, 0
      %1279 = vmatprep.subr.bf16.mxu0 0
      %1280 = vmatpush1.bf16.msra.mxu0 %v1277
      %1281 = vmatprep.subr.bf16.mxu0 0
      %1282 = vmatpush1.bf16.msra.mxu0 0
      %1283 = vmatprep.subr.bf16.mxu0 0
      %1284 = vmatpush1.bf16.msra.mxu0 0
      %1285 = vmatprep.subr.bf16.mxu0 0
      %1286 = vmatpush1.bf16.msra.mxu0 0
      %1287 = vmatprep.subr.bf16.mxu0 0
      %1288 = vmatpush1.bf16.msra.mxu0 0
      %1289 = vmatprep.subr.bf16.mxu0 0
      %1290 = vmatpush1.bf16.msra.mxu0 0
      %1291 = vmatprep.subr.bf16.mxu0 0
      %1292 = vmatpush1.bf16.msra.mxu0 0
      %1293 = vmatprep.subr.bf16.mxu0 0
      %1294 = vmatpush1.bf16.msra.mxu0 0
      %1295 = vmatprep.subr.bf16.mxu0 0
      %1296 = vmatpush1.bf16.msra.mxu0 0
      %1297 = vmatprep.subr.bf16.mxu0 0
      %1298 = vmatpush1.bf16.msra.mxu0 0
      %1299 = vmatprep.subr.bf16.mxu0 0
      %1300 = vmatpush1.bf16.msra.mxu0 0
      %1301 = vmatprep.subr.bf16.mxu0 0
      %1302 = vmatpush1.bf16.msra.mxu0 0
      %1303 = vmatprep.subr.bf16.mxu0 0
      %1304 = vmatpush1.bf16.msra.mxu0 0
      %1305 = vmatprep.subr.bf16.mxu0 0
      %1306 = vmatpush1.bf16.msra.mxu0 0
      %1307 = vmatprep.subr.bf16.mxu0 0
      %1308 = vmatpush1.bf16.msra.mxu0 0
      %1309 = vmatprep.subr.bf16.mxu0 0
      %1310 = vmatpush1.bf16.msra.mxu0 0
      %1311 = vmatprep.mubr.bf16.mxu0 0
      %1312 = vmatmul.mubr.bf16.gmra.mrb[0].mxu0 %v1265
      %v1313 = vpop.f32.mrb[0].mxu0
      %v1314 = vadd.f32 0.0, %v1313
      %v1315 = vpop.f32.mrb[0].mxu0
      %v1316 = vpop.f32.mrb[0].mxu0
      %v1317 = vadd.f32 0.0, %v1316
      %v1318 = vpop.f32.mrb[0].mxu0
      %1319 = vmatprep.mubr.bf16.mxu0 0
      %1320 = vmatmul.mubr.bf16.gmra.mrb[0].mxu0 %v1268
      %v1321 = vpop.f32.mrb[0].mxu0
      %v1322 = vadd.f32 0.0, %v1321
      %v1323 = vpop.f32.mrb[0].mxu0
      %v1324 = vpop.f32.mrb[0].mxu0
      %v1325 = vadd.f32 0.0, %v1324
      %v1326 = vpop.f32.mrb[0].mxu0
      %1327 = vmatprep.mubr.bf16.mxu0 0
      %1328 = vmatmul.mubr.bf16.gmra.mrb[0].mxu0 %v1271
      %v1329 = vpop.f32.mrb[0].mxu0
      %v1330 = vadd.f32 0.0, %v1329
      %v1331 = vpop.f32.mrb[0].mxu0
      %v1332 = vpop.f32.mrb[0].mxu0
      %v1333 = vadd.f32 0.0, %v1332
      %v1334 = vpop.f32.mrb[0].mxu0
      %1335 = vmatprep.mubr.bf16.mxu0 0
      %1336 = vmatmul.mubr.bf16.gmra.mrb[0].mxu0 %v1274
      %v1337 = vpop.f32.mrb[0].mxu0
      %v1338 = vadd.f32 0.0, %v1337
      %v1339 = vpop.f32.mrb[0].mxu0
      %v1340 = vpop.f32.mrb[0].mxu0
      %v1341 = vadd.f32 0.0, %v1340
      %v1342 = vpop.f32.mrb[0].mxu0
      %1343 = vdwg.mxu0
      %v1344 = vadd.f32 %v1111, %v1314
      %v1345 = vadd.f32 %v1112, %v1317
      %v1346 = vadd.f32 %v1113, %v1322
      %v1347 = vadd.f32 %v1114, %v1325
      %v1348 = vadd.f32 %v1115, %v1330
      %v1349 = vadd.f32 %v1116, %v1333
      %v1350 = vadd.f32 %v1117, %v1338
      %v1351 = vadd.f32 %v1118, %v1341
      %s1352 = scalar_lea.vmem %s376, 8
      %v1353 = vld [vmem:[%s1352] sm:$0xf]
      %v1354 = vld [vmem:[%s1352 + $0x8] sm:$0xf]
      %v1355 = vld [vmem:[%s1352 + $0x10] sm:$0xf]
      %v1356 = vld [vmem:[%s1352 + $0x18] sm:$0xf]
      %v1357 = vld [vmem:[%s1352 + $0x20] sm:$0xf]
      %v1358 = vld [vmem:[%s1352 + $0x28] sm:$0xf]
      %v1359 = vld [vmem:[%s1352 + $0x30] sm:$0xf]
      %v1360 = vld [vmem:[%s1352 + $0x38] sm:$0xf]
      %v1361 = vld [vmem:[%s380 + $0xc] sm:$0x3]
      %v1370 = vunpack.c.l.b16 %v1353
      %v1371 = vunpack.c.l.b16 %v1354
      %v1372 = vunpack.c.l.b16 %v1355
      %v1373 = vunpack.c.l.b16 %v1356
      %v1374 = vunpack.c.l.b16 %v1357
      %v1375 = vunpack.c.l.b16 %v1358
      %v1376 = vunpack.c.l.b16 %v1359
      %v1377 = vunpack.c.l.b16 %v1360
      %v1378 = vpack.c.b16 %v1371, %v1370
      %v1379 = vpack.c.b16 %v1373, %v1372
      %v1380 = vpack.c.b16 %v1375, %v1374
      %v1381 = vpack.c.b16 %v1377, %v1376
      %v1383 = vsel %vm465, %v1378, 0
      %v1386 = vsel %vm465, %v1379, 0
      %v1389 = vsel %vm465, %v1380, 0
      %v1392 = vsel %vm465, %v1381, 0
      %v1395 = vsel %vm478, %v1361, 0
      %1397 = vmatprep.subr.bf16.mxu0 0
      %1398 = vmatpush1.bf16.msra.mxu0 %v1395
      %1399 = vmatprep.subr.bf16.mxu0 0
      %1400 = vmatpush1.bf16.msra.mxu0 0
      %1401 = vmatprep.subr.bf16.mxu0 0
      %1402 = vmatpush1.bf16.msra.mxu0 0
      %1403 = vmatprep.subr.bf16.mxu0 0
      %1404 = vmatpush1.bf16.msra.mxu0 0
      %1405 = vmatprep.subr.bf16.mxu0 0
      %1406 = vmatpush1.bf16.msra.mxu0 0
      %1407 = vmatprep.subr.bf16.mxu0 0
      %1408 = vmatpush1.bf16.msra.mxu0 0
      %1409 = vmatprep.subr.bf16.mxu0 0
      %1410 = vmatpush1.bf16.msra.mxu0 0
      %1411 = vmatprep.subr.bf16.mxu0 0
      %1412 = vmatpush1.bf16.msra.mxu0 0
      %1413 = vmatprep.subr.bf16.mxu0 0
      %1414 = vmatpush1.bf16.msra.mxu0 0
      %1415 = vmatprep.subr.bf16.mxu0 0
      %1416 = vmatpush1.bf16.msra.mxu0 0
      %1417 = vmatprep.subr.bf16.mxu0 0
      %1418 = vmatpush1.bf16.msra.mxu0 0
      %1419 = vmatprep.subr.bf16.mxu0 0
      %1420 = vmatpush1.bf16.msra.mxu0 0
      %1421 = vmatprep.subr.bf16.mxu0 0
      %1422 = vmatpush1.bf16.msra.mxu0 0
      %1423 = vmatprep.subr.bf16.mxu0 0
      %1424 = vmatpush1.bf16.msra.mxu0 0
      %1425 = vmatprep.subr.bf16.mxu0 0
      %1426 = vmatpush1.bf16.msra.mxu0 0
      %1427 = vmatprep.subr.bf16.mxu0 0
      %1428 = vmatpush1.bf16.msra.mxu0 0
      %1429 = vmatprep.mubr.bf16.mxu0 0
      %1430 = vmatmul.mubr.bf16.gmra.mrb[0].mxu0 %v1383
      %v1431 = vpop.f32.mrb[0].mxu0
      %v1432 = vadd.f32 0.0, %v1431
      %v1433 = vpop.f32.mrb[0].mxu0
      %v1434 = vpop.f32.mrb[0].mxu0
      %v1435 = vadd.f32 0.0, %v1434
      %v1436 = vpop.f32.mrb[0].mxu0
      %1437 = vmatprep.mubr.bf16.mxu0 0
      %1438 = vmatmul.mubr.bf16.gmra.mrb[0].mxu0 %v1386
      %v1439 = vpop.f32.mrb[0].mxu0
      %v1440 = vadd.f32 0.0, %v1439
      %v1441 = vpop.f32.mrb[0].mxu0
      %v1442 = vpop.f32.mrb[0].mxu0
      %v1443 = vadd.f32 0.0, %v1442
      %v1444 = vpop.f32.mrb[0].mxu0
      %1445 = vmatprep.mubr.bf16.mxu0 0
      %1446 = vmatmul.mubr.bf16.gmra.mrb[0].mxu0 %v1389
      %v1447 = vpop.f32.mrb[0].mxu0
      %v1448 = vadd.f32 0.0, %v1447
      %v1449 = vpop.f32.mrb[0].mxu0
      %v1450 = vpop.f32.mrb[0].mxu0
      %v1451 = vadd.f32 0.0, %v1450
      %v1452 = vpop.f32.mrb[0].mxu0
      %1453 = vmatprep.mubr.bf16.mxu0 0
      %1454 = vmatmul.mubr.bf16.gmra.mrb[0].mxu0 %v1392
      %v1455 = vpop.f32.mrb[0].mxu0
      %v1456 = vadd.f32 0.0, %v1455
      %v1457 = vpop.f32.mrb[0].mxu0
      %v1458 = vpop.f32.mrb[0].mxu0
      %v1459 = vadd.f32 0.0, %v1458
      %v1460 = vpop.f32.mrb[0].mxu0
      %1461 = vdwg.mxu0
      %v1462 = vadd.f32 %v1344, %v1432
      %v1463 = vadd.f32 %v1345, %v1435
      %v1464 = vadd.f32 %v1346, %v1440
      %v1465 = vadd.f32 %v1347, %v1443
      %v1466 = vadd.f32 %v1348, %v1448
      %v1467 = vadd.f32 %v1349, %v1451
      %v1468 = vadd.f32 %v1350, %v1456
      %v1469 = vadd.f32 %v1351, %v1459
      %s1470 = scalar_lea.vmem %s376, 80
      %v1471 = vld [vmem:[%s1470] sm:$0xf]
      %v1472 = vld [vmem:[%s1470 + $0x8] sm:$0xf]
      %v1473 = vld [vmem:[%s1470 + $0x10] sm:$0xf]
      %v1474 = vld [vmem:[%s1470 + $0x18] sm:$0xf]
      %v1475 = vld [vmem:[%s1470 + $0x20] sm:$0xf]
      %v1476 = vld [vmem:[%s1470 + $0x28] sm:$0xf]
      %v1477 = vld [vmem:[%s1470 + $0x30] sm:$0xf]
      %v1478 = vld [vmem:[%s1470 + $0x38] sm:$0xf]
      %v1479 = vld [vmem:[%s380 + $0xc] sm:$0xc]
      %v1488 = vunpack.c.l.b16 %v1471
      %v1489 = vunpack.c.l.b16 %v1472
      %v1490 = vunpack.c.l.b16 %v1473
      %v1491 = vunpack.c.l.b16 %v1474
      %v1492 = vunpack.c.l.b16 %v1475
      %v1493 = vunpack.c.l.b16 %v1476
      %v1494 = vunpack.c.l.b16 %v1477
      %v1495 = vunpack.c.l.b16 %v1478
      %v1496 = vpack.c.b16 %v1489, %v1488
      %v1497 = vpack.c.b16 %v1491, %v1490
      %v1498 = vpack.c.b16 %v1493, %v1492
      %v1499 = vpack.c.b16 %v1495, %v1494
      %v1501 = vunpack.c.l.b16 %v1479
      %v1502 = vpack.c.b16 %v1501, %v1501
      %v1503 = vrot.slane %v1502, 2
      %v1505 = vsel %vm465, %v1496, 0
      %v1508 = vsel %vm465, %v1497, 0
      %v1511 = vsel %vm465, %v1498, 0
      %v1514 = vsel %vm465, %v1499, 0
      %v1517 = vsel %vm478, %v1503, 0
      %1519 = vmatprep.subr.bf16.mxu0 0
      %1520 = vmatpush1.bf16.msra.mxu0 %v1517
      %1521 = vmatprep.subr.bf16.mxu0 0
      %1522 = vmatpush1.bf16.msra.mxu0 0
      %1523 = vmatprep.subr.bf16.mxu0 0
      %1524 = vmatpush1.bf16.msra.mxu0 0
      %1525 = vmatprep.subr.bf16.mxu0 0
      %1526 = vmatpush1.bf16.msra.mxu0 0
      %1527 = vmatprep.subr.bf16.mxu0 0
      %1528 = vmatpush1.bf16.msra.mxu0 0
      %1529 = vmatprep.subr.bf16.mxu0 0
      %1530 = vmatpush1.bf16.msra.mxu0 0
      %1531 = vmatprep.subr.bf16.mxu0 0
      %1532 = vmatpush1.bf16.msra.mxu0 0
      %1533 = vmatprep.subr.bf16.mxu0 0
      %1534 = vmatpush1.bf16.msra.mxu0 0
      %1535 = vmatprep.subr.bf16.mxu0 0
      %1536 = vmatpush1.bf16.msra.mxu0 0
      %1537 = vmatprep.subr.bf16.mxu0 0
      %1538 = vmatpush1.bf16.msra.mxu0 0
      %1539 = vmatprep.subr.bf16.mxu0 0
      %1540 = vmatpush1.bf16.msra.mxu0 0
      %1541 = vmatprep.subr.bf16.mxu0 0
      %1542 = vmatpush1.bf16.msra.mxu0 0
      %1543 = vmatprep.subr.bf16.mxu0 0
      %1544 = vmatpush1.bf16.msra.mxu0 0
      %1545 = vmatprep.subr.bf16.mxu0 0
      %1546 = vmatpush1.bf16.msra.mxu0 0
      %1547 = vmatprep.subr.bf16.mxu0 0
      %1548 = vmatpush1.bf16.msra.mxu0 0
      %1549 = vmatprep.subr.bf16.mxu0 0
      %1550 = vmatpush1.bf16.msra.mxu0 0
      %1551 = vmatprep.mubr.bf16.mxu0 0
      %1552 = vmatmul.mubr.bf16.gmra.mrb[0].mxu0 %v1505
      %v1553 = vpop.f32.mrb[0].mxu0
      %v1554 = vadd.f32 0.0, %v1553
      %v1555 = vpop.f32.mrb[0].mxu0
      %v1556 = vpop.f32.mrb[0].mxu0
      %v1557 = vadd.f32 0.0, %v1556
      %v1558 = vpop.f32.mrb[0].mxu0
      %1559 = vmatprep.mubr.bf16.mxu0 0
      %1560 = vmatmul.mubr.bf16.gmra.mrb[0].mxu0 %v1508
      %v1561 = vpop.f32.mrb[0].mxu0
      %v1562 = vadd.f32 0.0, %v1561
      %v1563 = vpop.f32.mrb[0].mxu0
      %v1564 = vpop.f32.mrb[0].mxu0
      %v1565 = vadd.f32 0.0, %v1564
      %v1566 = vpop.f32.mrb[0].mxu0
      %1567 = vmatprep.mubr.bf16.mxu0 0
      %1568 = vmatmul.mubr.bf16.gmra.mrb[0].mxu0 %v1511
      %v1569 = vpop.f32.mrb[0].mxu0
      %v1570 = vadd.f32 0.0, %v1569
      %v1571 = vpop.f32.mrb[0].mxu0
      %v1572 = vpop.f32.mrb[0].mxu0
      %v1573 = vadd.f32 0.0, %v1572
      %v1574 = vpop.f32.mrb[0].mxu0
      %1575 = vmatprep.mubr.bf16.mxu0 0
      %1576 = vmatmul.mubr.bf16.gmra.mrb[0].mxu0 %v1514
      %v1577 = vpop.f32.mrb[0].mxu0
      %v1578 = vadd.f32 0.0, %v1577
      %v1579 = vpop.f32.mrb[0].mxu0
      %v1580 = vpop.f32.mrb[0].mxu0
      %v1581 = vadd.f32 0.0, %v1580
      %v1582 = vpop.f32.mrb[0].mxu0
      %1583 = vdwg.mxu0
      %v1584 = vadd.f32 %v1462, %v1554
      %v1585 = vadd.f32 %v1463, %v1557
      %v1586 = vadd.f32 %v1464, %v1562
      %v1587 = vadd.f32 %v1465, %v1565
      %v1588 = vadd.f32 %v1466, %v1570
      %v1589 = vadd.f32 %v1467, %v1573
      %v1590 = vadd.f32 %v1468, %v1578
      %v1591 = vadd.f32 %v1469, %v1581
      %v1592 = vld [vmem:[%s1352] sm:$0xf]
      %v1593 = vld [vmem:[%s1352 + $0x4] sm:$0x1]
      %v1594 = vld [vmem:[%s1352 + $0x8] sm:$0xf]
      %v1595 = vld [vmem:[%s1352 + $0xc] sm:$0x1]
      %v1596 = vld [vmem:[%s1352 + $0x10] sm:$0xf]
      %v1597 = vld [vmem:[%s1352 + $0x14] sm:$0x1]
      %v1598 = vld [vmem:[%s1352 + $0x18] sm:$0xf]
      %v1599 = vld [vmem:[%s1352 + $0x1c] sm:$0x1]
      %v1600 = vld [vmem:[%s1352 + $0x20] sm:$0xf]
      %v1601 = vld [vmem:[%s1352 + $0x24] sm:$0x1]
      %v1602 = vld [vmem:[%s1352 + $0x28] sm:$0xf]
      %v1603 = vld [vmem:[%s1352 + $0x2c] sm:$0x1]
      %v1604 = vld [vmem:[%s1352 + $0x30] sm:$0xf]
      %v1605 = vld [vmem:[%s1352 + $0x34] sm:$0x1]
      %v1606 = vld [vmem:[%s1352 + $0x38] sm:$0xf]
      %v1607 = vld [vmem:[%s1352 + $0x3c] sm:$0x1]
      %v1609 = vshrl.u32 %v1592, 16
      %v1611 = vrot.slane %v1609, 4
      %v1612 = vshll.u32 %v1592, 16
      %v1614 = vrot.slane %v1612, 5
      %v1615 = vor.u32 %v1611, %v1614
      %v1616 = vrot.slane %v1615, 4
      %v1618 = vshll.u32 %v1593, 16
      %v1620 = vrot.slane %v1618, 5
      %v1621 = vsel %vm665, %v1616, %v1620
      %v1623 = vshrl.u32 %v1594, 16
      %v1625 = vrot.slane %v1623, 4
      %v1626 = vshll.u32 %v1594, 16
      %v1628 = vrot.slane %v1626, 5
      %v1629 = vor.u32 %v1625, %v1628
      %v1630 = vrot.slane %v1629, 4
      %v1632 = vshll.u32 %v1595, 16
      %v1634 = vrot.slane %v1632, 5
      %v1635 = vsel %vm665, %v1630, %v1634
      %v1637 = vshrl.u32 %v1596, 16
      %v1639 = vrot.slane %v1637, 4
      %v1640 = vshll.u32 %v1596, 16
      %v1642 = vrot.slane %v1640, 5
      %v1643 = vor.u32 %v1639, %v1642
      %v1644 = vrot.slane %v1643, 4
      %v1646 = vshll.u32 %v1597, 16
      %v1648 = vrot.slane %v1646, 5
      %v1649 = vsel %vm665, %v1644, %v1648
      %v1651 = vshrl.u32 %v1598, 16
      %v1653 = vrot.slane %v1651, 4
      %v1654 = vshll.u32 %v1598, 16
      %v1656 = vrot.slane %v1654, 5
      %v1657 = vor.u32 %v1653, %v1656
      %v1658 = vrot.slane %v1657, 4
      %v1660 = vshll.u32 %v1599, 16
      %v1662 = vrot.slane %v1660, 5
      %v1663 = vsel %vm665, %v1658, %v1662
      %v1665 = vshrl.u32 %v1600, 16
      %v1667 = vrot.slane %v1665, 4
      %v1668 = vshll.u32 %v1600, 16
      %v1670 = vrot.slane %v1668, 5
      %v1671 = vor.u32 %v1667, %v1670
      %v1672 = vrot.slane %v1671, 4
      %v1674 = vshll.u32 %v1601, 16
      %v1676 = vrot.slane %v1674, 5
      %v1677 = vsel %vm665, %v1672, %v1676
      %v1679 = vshrl.u32 %v1602, 16
      %v1681 = vrot.slane %v1679, 4
      %v1682 = vshll.u32 %v1602, 16
      %v1684 = vrot.slane %v1682, 5
      %v1685 = vor.u32 %v1681, %v1684
      %v1686 = vrot.slane %v1685, 4
      %v1688 = vshll.u32 %v1603, 16
      %v1690 = vrot.slane %v1688, 5
      %v1691 = vsel %vm665, %v1686, %v1690
      %v1693 = vshrl.u32 %v1604, 16
      %v1695 = vrot.slane %v1693, 4
      %v1696 = vshll.u32 %v1604, 16
      %v1698 = vrot.slane %v1696, 5
      %v1699 = vor.u32 %v1695, %v1698
      %v1700 = vrot.slane %v1699, 4
      %v1702 = vshll.u32 %v1605, 16
      %v1704 = vrot.slane %v1702, 5
      %v1705 = vsel %vm665, %v1700, %v1704
      %v1707 = vshrl.u32 %v1606, 16
      %v1709 = vrot.slane %v1707, 4
      %v1710 = vshll.u32 %v1606, 16
      %v1712 = vrot.slane %v1710, 5
      %v1713 = vor.u32 %v1709, %v1712
      %v1714 = vrot.slane %v1713, 4
      %v1716 = vshll.u32 %v1607, 16
      %v1718 = vrot.slane %v1716, 5
      %v1719 = vsel %vm665, %v1714, %v1718
      %v1720 = vld [vmem:[%s380 + $0x10] sm:$0x3]
      %v1721 = vunpack.c.l.b16 %v1621
      %v1722 = vunpack.c.l.b16 %v1635
      %v1723 = vunpack.c.l.b16 %v1649
      %v1724 = vunpack.c.l.b16 %v1663
      %v1725 = vunpack.c.l.b16 %v1677
      %v1726 = vunpack.c.l.b16 %v1691
      %v1727 = vunpack.c.l.b16 %v1705
      %v1728 = vunpack.c.l.b16 %v1719
      %v1729 = vpack.c.b16 %v1722, %v1721
      %v1730 = vpack.c.b16 %v1724, %v1723
      %v1731 = vpack.c.b16 %v1726, %v1725
      %v1732 = vpack.c.b16 %v1728, %v1727
      %v1734 = vsel %vm465, %v1729, 0
      %v1737 = vsel %vm465, %v1730, 0
      %v1740 = vsel %vm465, %v1731, 0
      %v1743 = vsel %vm465, %v1732, 0
      %v1746 = vsel %vm478, %v1720, 0
      %1748 = vmatprep.subr.bf16.mxu0 0
      %1749 = vmatpush1.bf16.msra.mxu0 %v1746
      %1750 = vmatprep.subr.bf16.mxu0 0
      %1751 = vmatpush1.bf16.msra.mxu0 0
      %1752 = vmatprep.subr.bf16.mxu0 0
      %1753 = vmatpush1.bf16.msra.mxu0 0
      %1754 = vmatprep.subr.bf16.mxu0 0
      %1755 = vmatpush1.bf16.msra.mxu0 0
      %1756 = vmatprep.subr.bf16.mxu0 0
      %1757 = vmatpush1.bf16.msra.mxu0 0
      %1758 = vmatprep.subr.bf16.mxu0 0
      %1759 = vmatpush1.bf16.msra.mxu0 0
      %1760 = vmatprep.subr.bf16.mxu0 0
      %1761 = vmatpush1.bf16.msra.mxu0 0
      %1762 = vmatprep.subr.bf16.mxu0 0
      %1763 = vmatpush1.bf16.msra.mxu0 0
      %1764 = vmatprep.subr.bf16.mxu0 0
      %1765 = vmatpush1.bf16.msra.mxu0 0
      %1766 = vmatprep.subr.bf16.mxu0 0
      %1767 = vmatpush1.bf16.msra.mxu0 0
      %1768 = vmatprep.subr.bf16.mxu0 0
      %1769 = vmatpush1.bf16.msra.mxu0 0
      %1770 = vmatprep.subr.bf16.mxu0 0
      %1771 = vmatpush1.bf16.msra.mxu0 0
      %1772 = vmatprep.subr.bf16.mxu0 0
      %1773 = vmatpush1.bf16.msra.mxu0 0
      %1774 = vmatprep.subr.bf16.mxu0 0
      %1775 = vmatpush1.bf16.msra.mxu0 0
      %1776 = vmatprep.subr.bf16.mxu0 0
      %1777 = vmatpush1.bf16.msra.mxu0 0
      %1778 = vmatprep.subr.bf16.mxu0 0
      %1779 = vmatpush1.bf16.msra.mxu0 0
      %1780 = vmatprep.mubr.bf16.mxu0 0
      %1781 = vmatmul.mubr.bf16.gmra.mrb[0].mxu0 %v1734
      %v1782 = vpop.f32.mrb[0].mxu0
      %v1783 = vadd.f32 0.0, %v1782
      %v1784 = vpop.f32.mrb[0].mxu0
      %v1785 = vpop.f32.mrb[0].mxu0
      %v1786 = vadd.f32 0.0, %v1785
      %v1787 = vpop.f32.mrb[0].mxu0
      %1788 = vmatprep.mubr.bf16.mxu0 0
      %1789 = vmatmul.mubr.bf16.gmra.mrb[0].mxu0 %v1737
      %v1790 = vpop.f32.mrb[0].mxu0
      %v1791 = vadd.f32 0.0, %v1790
      %v1792 = vpop.f32.mrb[0].mxu0
      %v1793 = vpop.f32.mrb[0].mxu0
      %v1794 = vadd.f32 0.0, %v1793
      %v1795 = vpop.f32.mrb[0].mxu0
      %1796 = vmatprep.mubr.bf16.mxu0 0
      %1797 = vmatmul.mubr.bf16.gmra.mrb[0].mxu0 %v1740
      %v1798 = vpop.f32.mrb[0].mxu0
      %v1799 = vadd.f32 0.0, %v1798
      %v1800 = vpop.f32.mrb[0].mxu0
      %v1801 = vpop.f32.mrb[0].mxu0
      %v1802 = vadd.f32 0.0, %v1801
      %v1803 = vpop.f32.mrb[0].mxu0
      %1804 = vmatprep.mubr.bf16.mxu0 0
      %1805 = vmatmul.mubr.bf16.gmra.mrb[0].mxu0 %v1743
      %v1806 = vpop.f32.mrb[0].mxu0
      %v1807 = vadd.f32 0.0, %v1806
      %v1808 = vpop.f32.mrb[0].mxu0
      %v1809 = vpop.f32.mrb[0].mxu0
      %v1810 = vadd.f32 0.0, %v1809
      %v1811 = vpop.f32.mrb[0].mxu0
      %1812 = vdwg.mxu0
      %v1813 = vadd.f32 %v1584, %v1783
      %v1814 = vadd.f32 %v1585, %v1786
      %v1815 = vadd.f32 %v1586, %v1791
      %v1816 = vadd.f32 %v1587, %v1794
      %v1817 = vadd.f32 %v1588, %v1799
      %v1818 = vadd.f32 %v1589, %v1802
      %v1819 = vadd.f32 %v1590, %v1807
      %v1820 = vadd.f32 %v1591, %v1810
      %v1821 = vpack.c.bf16 %v1814, %v1813
      %v1822 = vpack.c.bf16 %v1816, %v1815
      %v1823 = vpack.c.bf16 %v1818, %v1817
      %v1824 = vpack.c.bf16 %v1820, %v1819
      %v1829 = vunpack.c.l.b16 %v1821
      %v1830 = vunpack.c.h.b16 %v1821
      %v1831 = vunpack.c.l.b16 %v1822
      %v1832 = vunpack.c.h.b16 %v1822
      %v1833 = vunpack.c.l.b16 %v1823
      %v1834 = vunpack.c.h.b16 %v1823
      %v1835 = vunpack.c.l.b16 %v1824
      %v1836 = vunpack.c.h.b16 %v1824
      %v1837 = vpack.c.b16 %v1829, %v1829
      %v1838 = vpack.c.b16 %v1830, %v1830
      %v1839 = vpack.c.b16 %v1831, %v1831
      %v1840 = vpack.c.b16 %v1832, %v1832
      %v1841 = vpack.c.b16 %v1833, %v1833
      %v1842 = vpack.c.b16 %v1834, %v1834
      %v1843 = vpack.c.b16 %v1835, %v1835
      %v1844 = vpack.c.b16 %v1836, %v1836
      %1853 = vst [vmem:[%s392] sm:$0xf] %v1837
      %1854 = vst [vmem:[%s392 + $0x4] sm:$0xf] %v1838
      %1855 = vst [vmem:[%s392 + $0x8] sm:$0xf] %v1839
      %1856 = vst [vmem:[%s392 + $0xc] sm:$0xf] %v1840
      %1857 = vst [vmem:[%s392 + $0x10] sm:$0xf] %v1841
      %1858 = vst [vmem:[%s392 + $0x14] sm:$0xf] %v1842
      %1859 = vst [vmem:[%s392 + $0x18] sm:$0xf] %v1843
      %1860 = vst [vmem:[%s392 + $0x1c] sm:$0xf] %v1844
      %v1861 = vld [vmem:[%s395] sm:$0x1]
      %v1862 = vadd.f32 %v1813, %v1814
      %v1863 = vadd.f32 %v1862, %v1815
      %v1864 = vadd.f32 %v1863, %v1816
      %v1865 = vadd.f32 %v1864, %v1817
      %v1866 = vadd.f32 %v1865, %v1818
      %v1867 = vadd.f32 %v1866, %v1819
      %v1868 = vadd.f32 %v1867, %v1820
      %v1869 = vrot.slane %v1868, 4
      %v1870 = vadd.f32 %v1868, %v1869
      %v1871 = vrot.slane %v1870, 2
      %v1872 = vadd.f32 %v1870, %v1871
      %v1873 = vrot.slane %v1872, 1
      %v1874 = vadd.f32 %v1872, %v1873
      %v1875 = vadd.f32 %v1861, %v1874
      %1876 = vst [vmem:[%s395] sm:$0x1] %v1875
      %v1877 = vld [vmem:[%s398] sm:$0x1]
      %v1878 = vmul.f32 %v1813, %v1813
      %v1879 = vmul.f32 %v1814, %v1814
      %v1880 = vmul.f32 %v1815, %v1815
      %v1881 = vmul.f32 %v1816, %v1816
      %v1882 = vmul.f32 %v1817, %v1817
      %v1883 = vmul.f32 %v1818, %v1818
      %v1884 = vmul.f32 %v1819, %v1819
      %v1885 = vmul.f32 %v1820, %v1820
      %v1886 = vadd.f32 %v1878, %v1879
      %v1887 = vadd.f32 %v1886, %v1880
      %v1888 = vadd.f32 %v1887, %v1881
      %v1889 = vadd.f32 %v1888, %v1882
      %v1890 = vadd.f32 %v1889, %v1883
      %v1891 = vadd.f32 %v1890, %v1884
      %v1892 = vadd.f32 %v1891, %v1885
      %v1893 = vrot.slane %v1892, 4
      %v1894 = vadd.f32 %v1892, %v1893
      %v1895 = vrot.slane %v1894, 2
      %v1896 = vadd.f32 %v1894, %v1895
      %v1897 = vrot.slane %v1896, 1
      %v1898 = vadd.f32 %v1896, %v1897
      %v1899 = vadd.f32 %v1877, %v1898
      %1900 = vst [vmem:[%s398] sm:$0x1] %v1899
      %v1901 = vld [vmem:[%s384] sm:$0x3]
      %v1903 = vsel %vm478, %v1901, 0
      %1905 = vmatprep.subr.bf16.mxu0 0
      %1906 = vmatpush1.bf16.msra.mxu0 %v1903
      %1907 = vmatprep.subr.bf16.mxu0 0
      %1908 = vmatpush1.bf16.msra.mxu0 0
      %1909 = vmatprep.subr.bf16.mxu0 0
      %1910 = vmatpush1.bf16.msra.mxu0 0
      %1911 = vmatprep.subr.bf16.mxu0 0
      %1912 = vmatpush1.bf16.msra.mxu0 0
      %1913 = vmatprep.subr.bf16.mxu0 0
      %1914 = vmatpush1.bf16.msra.mxu0 0
      %1915 = vmatprep.subr.bf16.mxu0 0
      %1916 = vmatpush1.bf16.msra.mxu0 0
      %1917 = vmatprep.subr.bf16.mxu0 0
      %1918 = vmatpush1.bf16.msra.mxu0 0
      %1919 = vmatprep.subr.bf16.mxu0 0
      %1920 = vmatpush1.bf16.msra.mxu0 0
      %1921 = vmatprep.subr.bf16.mxu0 0
      %1922 = vmatpush1.bf16.msra.mxu0 0
      %1923 = vmatprep.subr.bf16.mxu0 0
      %1924 = vmatpush1.bf16.msra.mxu0 0
      %1925 = vmatprep.subr.bf16.mxu0 0
      %1926 = vmatpush1.bf16.msra.mxu0 0
      %1927 = vmatprep.subr.bf16.mxu0 0
      %1928 = vmatpush1.bf16.msra.mxu0 0
      %1929 = vmatprep.subr.bf16.mxu0 0
      %1930 = vmatpush1.bf16.msra.mxu0 0
      %1931 = vmatprep.subr.bf16.mxu0 0
      %1932 = vmatpush1.bf16.msra.mxu0 0
      %1933 = vmatprep.subr.bf16.mxu0 0
      %1934 = vmatpush1.bf16.msra.mxu0 0
      %1935 = vmatprep.subr.bf16.mxu0 0
      %1936 = vmatpush1.bf16.msra.mxu0 0
      %1937 = vmatprep.mubr.bf16.mxu0 0
      %1938 = vmatmul.mubr.bf16.gmra.mrb[0].mxu0 %v1032
      %v1939 = vpop.f32.mrb[0].mxu0
      %v1940 = vadd.f32 0.0, %v1939
      %v1941 = vpop.f32.mrb[0].mxu0
      %v1942 = vpop.f32.mrb[0].mxu0
      %v1943 = vadd.f32 0.0, %v1942
      %v1944 = vpop.f32.mrb[0].mxu0
      %1945 = vmatprep.mubr.bf16.mxu0 0
      %1946 = vmatmul.mubr.bf16.gmra.mrb[0].mxu0 %v1035
      %v1947 = vpop.f32.mrb[0].mxu0
      %v1948 = vadd.f32 0.0, %v1947
      %v1949 = vpop.f32.mrb[0].mxu0
      %v1950 = vpop.f32.mrb[0].mxu0
      %v1951 = vadd.f32 0.0, %v1950
      %v1952 = vpop.f32.mrb[0].mxu0
      %1953 = vmatprep.mubr.bf16.mxu0 0
      %1954 = vmatmul.mubr.bf16.gmra.mrb[0].mxu0 %v1038
      %v1955 = vpop.f32.mrb[0].mxu0
      %v1956 = vadd.f32 0.0, %v1955
      %v1957 = vpop.f32.mrb[0].mxu0
      %v1958 = vpop.f32.mrb[0].mxu0
      %v1959 = vadd.f32 0.0, %v1958
      %v1960 = vpop.f32.mrb[0].mxu0
      %1961 = vmatprep.mubr.bf16.mxu0 0
      %1962 = vmatmul.mubr.bf16.gmra.mrb[0].mxu0 %v1041
      %v1963 = vpop.f32.mrb[0].mxu0
      %v1964 = vadd.f32 0.0, %v1963
      %v1965 = vpop.f32.mrb[0].mxu0
      %v1966 = vpop.f32.mrb[0].mxu0
      %v1967 = vadd.f32 0.0, %v1966
      %v1968 = vpop.f32.mrb[0].mxu0
      %1969 = vdwg.mxu0
      %v1970 = vpack.c.bf16 %v1943, %v1940
      %v1971 = vpack.c.bf16 %v1951, %v1948
      %v1972 = vpack.c.bf16 %v1959, %v1956
      %v1973 = vpack.c.bf16 %v1967, %v1964
      %v1978 = vunpack.c.l.b16 %v1970
      %v1979 = vunpack.c.h.b16 %v1970
      %v1980 = vunpack.c.l.b16 %v1971
      %v1981 = vunpack.c.h.b16 %v1971
      %v1982 = vunpack.c.l.b16 %v1972
      %v1983 = vunpack.c.h.b16 %v1972
      %v1984 = vunpack.c.l.b16 %v1973
      %v1985 = vunpack.c.h.b16 %v1973
      %v1986 = vpack.c.b16 %v1978, %v1978
      %v1987 = vpack.c.b16 %v1979, %v1979
      %v1988 = vpack.c.b16 %v1980, %v1980
      %v1989 = vpack.c.b16 %v1981, %v1981
      %v1990 = vpack.c.b16 %v1982, %v1982
      %v1991 = vpack.c.b16 %v1983, %v1983
      %v1992 = vpack.c.b16 %v1984, %v1984
      %v1993 = vpack.c.b16 %v1985, %v1985
      %2002 = vst [vmem:[%s406] sm:$0xf] %v1986
      %2003 = vst [vmem:[%s406 + $0x4] sm:$0xf] %v1987
      %2004 = vst [vmem:[%s406 + $0x8] sm:$0xf] %v1988
      %2005 = vst [vmem:[%s406 + $0xc] sm:$0xf] %v1989
      %2006 = vst [vmem:[%s406 + $0x10] sm:$0xf] %v1990
      %2007 = vst [vmem:[%s406 + $0x14] sm:$0xf] %v1991
      %2008 = vst [vmem:[%s406 + $0x18] sm:$0xf] %v1992
      %2009 = vst [vmem:[%s406 + $0x1c] sm:$0xf] %v1993
      %v2010 = vld [vmem:[%s409] sm:$0x1]
      %v2011 = vadd.f32 %v1940, %v1943
      %v2012 = vadd.f32 %v2011, %v1948
      %v2013 = vadd.f32 %v2012, %v1951
      %v2014 = vadd.f32 %v2013, %v1956
      %v2015 = vadd.f32 %v2014, %v1959
      %v2016 = vadd.f32 %v2015, %v1964
      %v2017 = vadd.f32 %v2016, %v1967
      %v2018 = vrot.slane %v2017, 4
      %v2019 = vadd.f32 %v2017, %v2018
      %v2020 = vrot.slane %v2019, 2
      %v2021 = vadd.f32 %v2019, %v2020
      %v2022 = vrot.slane %v2021, 1
      %v2023 = vadd.f32 %v2021, %v2022
      %v2024 = vadd.f32 %v2010, %v2023
      %2025 = vst [vmem:[%s409] sm:$0x1] %v2024
      %v2026 = vld [vmem:[%s412] sm:$0x1]
      %v2027 = vmul.f32 %v1940, %v1940
      %v2028 = vmul.f32 %v1943, %v1943
      %v2029 = vmul.f32 %v1948, %v1948
      %v2030 = vmul.f32 %v1951, %v1951
      %v2031 = vmul.f32 %v1956, %v1956
      %v2032 = vmul.f32 %v1959, %v1959
      %v2033 = vmul.f32 %v1964, %v1964
      %v2034 = vmul.f32 %v1967, %v1967
      %v2035 = vadd.f32 %v2027, %v2028
      %v2036 = vadd.f32 %v2035, %v2029
      %v2037 = vadd.f32 %v2036, %v2030
      %v2038 = vadd.f32 %v2037, %v2031
      %v2039 = vadd.f32 %v2038, %v2032
      %v2040 = vadd.f32 %v2039, %v2033
      %v2041 = vadd.f32 %v2040, %v2034
      %v2042 = vrot.slane %v2041, 4
      %v2043 = vadd.f32 %v2041, %v2042
      %v2044 = vrot.slane %v2043, 2
      %v2045 = vadd.f32 %v2043, %v2044
      %v2046 = vrot.slane %v2045, 1
      %v2047 = vadd.f32 %v2045, %v2046
      %v2048 = vadd.f32 %v2026, %v2047
      %2049 = vst [vmem:[%s412] sm:$0x1] %v2048
      %p2050 = scmp.lt.s32.totalorder %s25, 1
      %s2051 = scalar_select %p2050, %s25, 1
      %p2052 = scmp.lt.s32.totalorder %s24, 0
      %s2053 = scalar_select %p2052, %s24, 0
      %s2054 = smul.addr %s2051, 8
      %s2055 = sadd.s32 %s2053, %s2054
      %s2056 = smul.addr %s2055, 4
      %s2057 = scalar_lea.vmem %s3, %s2056
      %p2058 = scmp.lt.s32.totalorder %s24, 0
      %s2059 = scalar_select %p2058, %s24, 0
      %s2060 = scalar_lea.vmem %s4, %s2059
      %p2061 = scmp.lt.s32.totalorder %s24, 0
      %s2062 = scalar_select %p2061, %s24, 0
      %s2063 = scalar_lea.vmem %s5, %s2062
      %p2064 = scmp.lt.s32.totalorder %s25, 1
      %s2065 = scalar_select %p2064, %s25, 1
      %p2066 = scmp.lt.s32.totalorder %s24, 0
      %s2067 = scalar_select %p2066, %s24, 0
      %s2068 = smul.addr %s2065, 8
      %s2069 = sadd.s32 %s2067, %s2068
      %s2070 = smul.addr %s2069, 4
      %s2071 = scalar_lea.vmem %s6, %s2070
      %p2072 = scmp.lt.s32.totalorder %s24, 0
      %s2073 = scalar_select %p2072, %s24, 0
      %s2074 = scalar_lea.vmem %s7, %s2073
      %p2075 = scmp.lt.s32.totalorder %s24, 0
      %s2076 = scalar_select %p2075, %s24, 0
      %s2077 = scalar_lea.vmem %s8, %s2076
      // Predicated region
      $region37: #{basic_block_forward.3} parent=31 // pred_check
        %p2078 = pneg %p130
      $region38: #{basic_block_forward.3} parent=31 // pred_check_branch
        %2080 = sbr.rel (%p2078) target = $region40
      $region39: #{basic_block_forward.3} parent=31 // pred_region
        _
      $region40: #{basic_block_forward.3} parent=31 // pred_fallthru
        _
      // Predicated region
      $region41: #{basic_block_forward.3} parent=31 // pred_check
        %p2081 = pneg %p156
      $region42: #{basic_block_forward.3} parent=31 // pred_check_branch
        %2083 = sbr.rel (%p2081) target = $region44
      $region43: #{basic_block_forward.3} parent=31 // pred_region
        _
      $region44: #{basic_block_forward.3} parent=31 // pred_fallthru
        _
      // Predicated region
      $region45: #{basic_block_forward.3} parent=31 // pred_check
        %p2084 = pneg %p182
      $region46: #{basic_block_forward.3} parent=31 // pred_check_branch
        %2086 = sbr.rel (%p2084) target = $region48
      $region47: #{basic_block_forward.3} parent=31 // pred_region
        _
      $region48: #{basic_block_forward.3} parent=31 // pred_fallthru
        _
      // Predicated region
      $region49: #{basic_block_forward.3} parent=31 // pred_check
        %p2087 = pneg %p210
      $region50: #{basic_block_forward.3} parent=31 // pred_check_branch
        %2089 = sbr.rel (%p2087) target = $region52
      $region51: #{basic_block_forward.3} parent=31 // pred_region
        _
      $region52: #{basic_block_forward.3} parent=31 // pred_fallthru
        _
      // Predicated region
      $region53: #{basic_block_forward.3} parent=31 // pred_check
        %p2090 = pneg %p236
      $region54: #{basic_block_forward.3} parent=31 // pred_check_branch
        %2092 = sbr.rel (%p2090) target = $region56
      $region55: #{basic_block_forward.3} parent=31 // pred_region
        _
      $region56: #{basic_block_forward.3} parent=31 // pred_fallthru
        _
      // Predicated region
      $region57: #{basic_block_forward.3} parent=31 // pred_check
        %p2093 = pneg %p262
      $region58: #{basic_block_forward.3} parent=31 // pred_check_branch
        %2095 = sbr.rel (%p2093) target = $region60
      $region59: #{basic_block_forward.3} parent=31 // pred_region
        _
      $region60: #{basic_block_forward.3} parent=31 // pred_fallthru
        _
      // Predicated region
      $region61: #{basic_block_forward.3} parent=31 // pred_check
        %p2096 = pneg %p156
      $region62: #{basic_block_forward.3} parent=31 // pred_check_branch
        %2098 = sbr.rel (%p2096) target = $region64
      $region63: #{basic_block_forward.3} parent=31 // pred_region
        %p2099 = scmp.lt.s32.totalorder %s24, 0
        %s2100 = scalar_select %p2099, %s24, 0
        %s2101 = scalar_lea.vmem %s4, %s2100
      $region64: #{basic_block_forward.3} parent=31 // pred_fallthru
        _
      // Predicated region
      $region65: #{basic_block_forward.3} parent=31 // pred_check
        %p2102 = pneg %p182
      $region66: #{basic_block_forward.3} parent=31 // pred_check_branch
        %2104 = sbr.rel (%p2102) target = $region68
      $region67: #{basic_block_forward.3} parent=31 // pred_region
        %p2105 = scmp.lt.s32.totalorder %s24, 0
        %s2106 = scalar_select %p2105, %s24, 0
        %s2107 = scalar_lea.vmem %s5, %s2106
      $region68: #{basic_block_forward.3} parent=31 // pred_fallthru
        _
      // Predicated region
      $region69: #{basic_block_forward.3} parent=31 // pred_check
        %p2108 = pneg %p236
      $region70: #{basic_block_forward.3} parent=31 // pred_check_branch
        %2110 = sbr.rel (%p2108) target = $region72
      $region71: #{basic_block_forward.3} parent=31 // pred_region
        %p2111 = scmp.lt.s32.totalorder %s24, 0
        %s2112 = scalar_select %p2111, %s24, 0
        %s2113 = scalar_lea.vmem %s7, %s2112
      $region72: #{basic_block_forward.3} parent=31 // pred_fallthru
        _
      // Predicated region
      $region73: #{basic_block_forward.3} parent=31 // pred_check
        %p2114 = pneg %p262
      $region74: #{basic_block_forward.3} parent=31 // pred_check_branch
        %2116 = sbr.rel (%p2114) target = $region76
      $region75: #{basic_block_forward.3} parent=31 // pred_region
        %p2117 = scmp.lt.s32.totalorder %s24, 0
        %s2118 = scalar_select %p2117, %s24, 0
        %s2119 = scalar_lea.vmem %s8, %s2118
      $region76: #{basic_block_forward.3} parent=31 // pred_fallthru
        _
    $region32: #{basic_block_forward.3} parent=5 // pred_fallthru
      _
    %p2120 = scmp.le.s32.totalorder 2, %s15
    // Predicated region
    $region77: #{basic_block_forward.3} parent=5 // pred_check
      %p2121 = pneg %p2120
    $region78: #{basic_block_forward.3} parent=5 // pred_check_branch
      %2123 = sbr.rel (%p2121) target = $region80
    $region79: #{basic_block_forward.3} parent=5 // pred_region
      %s2124 = ssub.s32 %s15, 2
      // Predicated region
      $region81: #{basic_block_forward.3} parent=79 // pred_check
        %p2125 = pneg %p136
      $region82: #{basic_block_forward.3} parent=79 // pred_check_branch
        %2127 = sbr.rel (%p2125) target = $region84
      $region83: #{basic_block_forward.3} parent=79 // pred_region
        %p2128 = scmp.lt.s32.totalorder %s27, 1
        %s2129 = scalar_select %p2128, %s27, 1
        %p2130 = scmp.lt.s32.totalorder %s26, 0
        %s2131 = scalar_select %p2130, %s26, 0
        %s2132 = smul.addr %s2129, 8
        %s2133 = sadd.s32 %s2131, %s2132
        %s2134 = smul.addr %s2133, 4
        %s2135 = scalar_lea.vmem %s3, %s2134
      $region84: #{basic_block_forward.3} parent=79 // pred_fallthru
        _
      // Predicated region
      $region85: #{basic_block_forward.3} parent=79 // pred_check
        %p2136 = pneg %p216
      $region86: #{basic_block_forward.3} parent=79 // pred_check_branch
        %2138 = sbr.rel (%p2136) target = $region88
      $region87: #{basic_block_forward.3} parent=79 // pred_region
        %p2139 = scmp.lt.s32.totalorder %s27, 1
        %s2140 = scalar_select %p2139, %s27, 1
        %p2141 = scmp.lt.s32.totalorder %s26, 0
        %s2142 = scalar_select %p2141, %s26, 0
        %s2143 = smul.addr %s2140, 8
        %s2144 = sadd.s32 %s2142, %s2143
        %s2145 = smul.addr %s2144, 4
        %s2146 = scalar_lea.vmem %s6, %s2145
      $region88: #{basic_block_forward.3} parent=79 // pred_fallthru
        _
    $region80: #{basic_block_forward.3} parent=5 // pred_fallthru
      _
  $region6: #{basic_block_forward.3} parent=0 // loop_footer
    %s19 = sadd.s32 1, %s15
  $region7: #{basic_block_forward.3} parent=0 // loop_footer_branch
    %14 = sbr.rel target = $region3
  $region8: #{basic_block_forward.3} parent=0 // loop_exit
    _

// kernel: basic_block_forward.4
$region0: #{basic_block_forward.4}
  #allocation0 [shape = 'u32[]', space=smem, size = 0x4, offset = 0x4, fixed_abs, tag = 'smem constant byte address 0x4 - core index']
  #allocation1 [shape = 'u32[144,128]{1,0:T(1,128)}', space=vmem, size = 0x12000, scoped, tag = 'internal scratch']
  #allocation2 [shape = 'bf16[10,10,128]{2,1,0:T(8,128)(2,1)}', space=vmem, size = 0xa000, scoped, tag = 'scratch operand']
  %s0 = inlined_call_operand.vmem [shape: bf16[2,64,128], index: 0, kind: input, shape index: {}]
  %s1 = inlined_call_operand.vmem [shape: f32[1,128], index: 1, kind: input, shape index: {}]
  %s2 = inlined_call_operand.vmem [shape: f32[1,128], index: 2, kind: input, shape index: {}]
  %s3 = inlined_call_operand.vmem [shape: bf16[1152,128], index: 3, kind: input, shape index: {}]
  %s4 = inlined_call_operand.vmem [shape: bf16[2,64,128], index: 4, kind: output, shape index: {0}]
  %s5 = inlined_call_operand.vmem [shape: f32[1,128], index: 5, kind: output, shape index: {1}]
  %s6 = inlined_call_operand.vmem [shape: f32[1,128], index: 6, kind: output, shape index: {2}]
  %7 = xla_tuple %s4, %s5, %s6
  %s8 = sld [smem:[#allocation0]]
  $region69: #{basic_block_forward.4} parent=0
    _
  %s10 = ssub.s32 1, %s8
  %s11 = scalar_select 0, %s10, %s8
  loop: start=0, step=1, limit=4
  $region2: #{basic_block_forward.4} parent=0 // loop_pre_header
    _
  $region3: #{basic_block_forward.4} parent=0 // loop_header
    %s13 = sphi 0, %s17
    %p14 = scmp.ge.s32.totalorder %s13, 4
    %s20 = sphi 0, %s32
    %s21 = sphi 0, %s28
    %s22 = sphi 0, %s20
    %s23 = sphi 0, %s21
    %s24 = sphi 0, %s22
    %s25 = sphi 0, %s23
    %s35 = sphi 0, %s37
    %s38 = sphi 0, %s35
    %s39 = sphi 0, %s38
    %s55 = sphi 0, %s39
    %s59 = sphi 0, %s59
    %s61 = sphi 0, %s59
    %s62 = sphi 0, %s61
    %s76 = sphi 0, %s62
    %s80 = sphi 0, %s80
    %s82 = sphi 0, %s80
    %s83 = sphi 0, %s82
    %s97 = sphi 0, %s83
    %s103 = sphi 0, %s105
    %s106 = sphi 0, %s103
    %s107 = sphi 0, %s106
    %s123 = sphi 0, %s107
    %s131 = sphi 0, %s133
    %s134 = sphi 0, %s131
    %s135 = sphi 0, %s134
    %s151 = sphi 0, %s135
    %s157 = sphi 0, %s159
    %s160 = sphi 0, %s157
    %s161 = sphi 0, %s160
    %s177 = sphi 0, %s161
    %s183 = sphi 0, %s185
    %s186 = sphi 0, %s183
    %s187 = sphi 0, %s186
    %s203 = sphi 0, %s187
  $region4: #{basic_block_forward.4} parent=0 // loop_header_branch
    %16 = sbr.rel (%p14) target = $region8
  $region5: #{basic_block_forward.4} parent=0 // loop_body
    %s18 = ssub.s32 %s13, 1
    %s19 = ssub.s32 %s13, 2
    %s26 = sadd.s32 1, %s21
    %p27 = scmp.ge.s32.totalorder %s26, 2
    %s28 = scalar_select %p27, 0, %s26
    %s29 = sadd.s32 1, %s20
    %s30 = scalar_select %p27, %s29, %s20
    %p31 = scmp.ge.s32.totalorder %s30, 1
    %s32 = scalar_select %p31, 0, %s30
    %s33 = ssub.s32 %s21, %s28
    %p34 = scmp.eq.s32.totalorder %s33, 0
    %s36 = sadd.s32 %s35, 1
    %s37 = scalar_select %p34, %s35, %s36
    %p40 = pneg %p34
    %p41 = scmp.eq.s32.totalorder %s13, 1
    %p42 = por %p40, %p41
    %p43 = scmp.ne.s32.totalorder %s35, %s38
    %p44 = scmp.eq.s32.totalorder %s13, 0
    %p45 = por %p43, %p44
    %p46 = scmp.ne.s32.totalorder %s35, %s38
    %p47 = scmp.eq.s32.totalorder %s18, 1
    %p48 = por %p46, %p47
    %p49 = scmp.ne.s32.totalorder %s38, %s39
    %p50 = scmp.eq.s32.totalorder %s18, 0
    %p51 = por %p49, %p50
    %p52 = scmp.ne.s32.totalorder %s38, %s39
    %p53 = scmp.eq.s32.totalorder %s19, 1
    %p54 = por %p52, %p53
    %p56 = scmp.ne.s32.totalorder %s39, %s55
    %p57 = scmp.eq.s32.totalorder %s19, 0
    %p58 = por %p56, %p57
    %s60 = sadd.s32 %s59, 1
    %p63 = scmp.eq.s32.totalorder %s13, 1
    %p64 = scmp.ne.s32.totalorder %s59, %s61
    %p65 = scmp.eq.s32.totalorder %s13, 0
    %p66 = por %p64, %p65
    %p67 = scmp.ne.s32.totalorder %s59, %s61
    %p68 = scmp.eq.s32.totalorder %s18, 1
    %p69 = por %p67, %p68
    %p70 = scmp.ne.s32.totalorder %s61, %s62
    %p71 = scmp.eq.s32.totalorder %s18, 0
    %p72 = por %p70, %p71
    %p73 = scmp.ne.s32.totalorder %s61, %s62
    %p74 = scmp.eq.s32.totalorder %s19, 1
    %p75 = por %p73, %p74
    %p77 = scmp.ne.s32.totalorder %s62, %s76
    %p78 = scmp.eq.s32.totalorder %s19, 0
    %p79 = por %p77, %p78
    %s81 = sadd.s32 %s80, 1
    %p84 = scmp.eq.s32.totalorder %s13, 1
    %p85 = scmp.ne.s32.totalorder %s80, %s82
    %p86 = scmp.eq.s32.totalorder %s13, 0
    %p87 = por %p85, %p86
    %p88 = scmp.ne.s32.totalorder %s80, %s82
    %p89 = scmp.eq.s32.totalorder %s18, 1
    %p90 = por %p88, %p89
    %p91 = scmp.ne.s32.totalorder %s82, %s83
    %p92 = scmp.eq.s32.totalorder %s18, 0
    %p93 = por %p91, %p92
    %p94 = scmp.ne.s32.totalorder %s82, %s83
    %p95 = scmp.eq.s32.totalorder %s19, 1
    %p96 = por %p94, %p95
    %p98 = scmp.ne.s32.totalorder %s83, %s97
    %p99 = scmp.eq.s32.totalorder %s19, 0
    %p100 = por %p98, %p99
    %s101 = ssub.s32 %s20, %s32
    %p102 = scmp.eq.s32.totalorder %s101, 0
    %s104 = sadd.s32 %s103, 1
    %s105 = scalar_select %p102, %s103, %s104
    %p108 = pneg %p102
    %p109 = scmp.eq.s32.totalorder %s13, 1
    %p110 = por %p108, %p109
    %p111 = scmp.ne.s32.totalorder %s103, %s106
    %p112 = scmp.eq.s32.totalorder %s13, 0
    %p113 = por %p111, %p112
    %p114 = scmp.ne.s32.totalorder %s103, %s106
    %p115 = scmp.eq.s32.totalorder %s18, 1
    %p116 = por %p114, %p115
    %p117 = scmp.ne.s32.totalorder %s106, %s107
    %p118 = scmp.eq.s32.totalorder %s18, 0
    %p119 = por %p117, %p118
    %p120 = scmp.ne.s32.totalorder %s106, %s107
    %p121 = scmp.eq.s32.totalorder %s19, 1
    %p122 = por %p120, %p121
    %p124 = scmp.ne.s32.totalorder %s107, %s123
    %p125 = scmp.eq.s32.totalorder %s19, 0
    %p126 = por %p124, %p125
    %s127 = ssub.s32 %s21, %s28
    %s128 = ssub.s32 %s20, %s32
    %s129 = sor.u32 %s127, %s128
    %p130 = scmp.eq.s32.totalorder %s129, 0
    %s132 = sadd.s32 %s131, 1
    %s133 = scalar_select %p130, %s131, %s132
    %p136 = pneg %p130
    %p137 = scmp.eq.s32.totalorder %s13, 1
    %p138 = por %p136, %p137
    %p139 = scmp.ne.s32.totalorder %s131, %s134
    %p140 = scmp.eq.s32.totalorder %s13, 0
    %p141 = por %p139, %p140
    %p142 = scmp.ne.s32.totalorder %s131, %s134
    %p143 = scmp.eq.s32.totalorder %s18, 1
    %p144 = por %p142, %p143
    %p145 = scmp.ne.s32.totalorder %s134, %s135
    %p146 = scmp.eq.s32.totalorder %s18, 0
    %p147 = por %p145, %p146
    %p148 = scmp.ne.s32.totalorder %s134, %s135
    %p149 = scmp.eq.s32.totalorder %s19, 1
    %p150 = por %p148, %p149
    %p152 = scmp.ne.s32.totalorder %s135, %s151
    %p153 = scmp.eq.s32.totalorder %s19, 0
    %p154 = por %p152, %p153
    %s155 = ssub.s32 %s20, %s32
    %p156 = scmp.eq.s32.totalorder %s155, 0
    %s158 = sadd.s32 %s157, 1
    %s159 = scalar_select %p156, %s157, %s158
    %p162 = pneg %p156
    %p163 = scmp.eq.s32.totalorder %s13, 1
    %p164 = por %p162, %p163
    %p165 = scmp.ne.s32.totalorder %s157, %s160
    %p166 = scmp.eq.s32.totalorder %s13, 0
    %p167 = por %p165, %p166
    %p168 = scmp.ne.s32.totalorder %s157, %s160
    %p169 = scmp.eq.s32.totalorder %s18, 1
    %p170 = por %p168, %p169
    %p171 = scmp.ne.s32.totalorder %s160, %s161
    %p172 = scmp.eq.s32.totalorder %s18, 0
    %p173 = por %p171, %p172
    %p174 = scmp.ne.s32.totalorder %s160, %s161
    %p175 = scmp.eq.s32.totalorder %s19, 1
    %p176 = por %p174, %p175
    %p178 = scmp.ne.s32.totalorder %s161, %s177
    %p179 = scmp.eq.s32.totalorder %s19, 0
    %p180 = por %p178, %p179
    %s181 = ssub.s32 %s20, %s32
    %p182 = scmp.eq.s32.totalorder %s181, 0
    %s184 = sadd.s32 %s183, 1
    %s185 = scalar_select %p182, %s183, %s184
    %p188 = pneg %p182
    %p189 = scmp.eq.s32.totalorder %s13, 1
    %p190 = por %p188, %p189
    %p191 = scmp.ne.s32.totalorder %s183, %s186
    %p192 = scmp.eq.s32.totalorder %s13, 0
    %p193 = por %p191, %p192
    %p194 = scmp.ne.s32.totalorder %s183, %s186
    %p195 = scmp.eq.s32.totalorder %s18, 1
    %p196 = por %p194, %p195
    %p197 = scmp.ne.s32.totalorder %s186, %s187
    %p198 = scmp.eq.s32.totalorder %s18, 0
    %p199 = por %p197, %p198
    %p200 = scmp.ne.s32.totalorder %s186, %s187
    %p201 = scmp.eq.s32.totalorder %s19, 1
    %p202 = por %p200, %p201
    %p204 = scmp.ne.s32.totalorder %s187, %s203
    %p205 = scmp.eq.s32.totalorder %s19, 0
    %p206 = por %p204, %p205
    %p207 = scmp.le.s32.totalorder 1, %s13
    %p208 = scmp.lt.s32.totalorder %s13, 3
    %p209 = pnand %p207, %p208
    %p210 = pneg %p209
    // Predicated region
    $region9: #{basic_block_forward.4} parent=5 // pred_check
      _
    $region10: #{basic_block_forward.4} parent=5 // pred_check_branch
      %212 = sbr.rel (%p209) target = $region12
    $region11: #{basic_block_forward.4} parent=5 // pred_region
      %s213 = ssub.s32 %s13, 1
      // Predicated region
      $region13: #{basic_block_forward.4} parent=11 // pred_check
        %p214 = pneg %p72
      $region14: #{basic_block_forward.4} parent=11 // pred_check_branch
        %216 = sbr.rel (%p214) target = $region16
      $region15: #{basic_block_forward.4} parent=11 // pred_region
        _
      $region16: #{basic_block_forward.4} parent=11 // pred_fallthru
        _
      // Predicated region
      $region17: #{basic_block_forward.4} parent=11 // pred_check
        %p217 = pneg %p93
      $region18: #{basic_block_forward.4} parent=11 // pred_check_branch
        %219 = sbr.rel (%p217) target = $region20
      $region19: #{basic_block_forward.4} parent=11 // pred_region
        _
      $region20: #{basic_block_forward.4} parent=11 // pred_fallthru
        _
      // Predicated region
      $region21: #{basic_block_forward.4} parent=11 // pred_check
        %p220 = pneg %p119
      $region22: #{basic_block_forward.4} parent=11 // pred_check_branch
        %222 = sbr.rel (%p220) target = $region24
      $region23: #{basic_block_forward.4} parent=11 // pred_region
        %p223 = scmp.lt.s32.totalorder %s22, 0
        %s224 = scalar_select %p223, %s22, 0
        %s225 = smul.addr %s224, 4
        %s226 = scalar_lea.vmem %s3, %s225
      $region24: #{basic_block_forward.4} parent=11 // pred_fallthru
        _
    $region12: #{basic_block_forward.4} parent=5 // pred_fallthru
      _
    %p227 = scmp.lt.s32.totalorder %s13, 2
    // Predicated region
    $region25: #{basic_block_forward.4} parent=5 // pred_check
      %p228 = pneg %p227
    $region26: #{basic_block_forward.4} parent=5 // pred_check_branch
      %230 = sbr.rel (%p228) target = $region28
    $region27: #{basic_block_forward.4} parent=5 // pred_region
      // Predicated region
      $region29: #{basic_block_forward.4} parent=27 // pred_check
        %p231 = pneg %p45
      $region30: #{basic_block_forward.4} parent=27 // pred_check_branch
        %233 = sbr.rel (%p231) target = $region32
      $region31: #{basic_block_forward.4} parent=27 // pred_region
        %p234 = scmp.lt.s32.totalorder %s21, 1
        %s235 = scalar_select %p234, %s21, 1
        %s236 = smul.addr %s235, 8
        %s237 = smul.addr %s236, 4
        %s238 = scalar_lea.vmem %s0, %s237
      $region32: #{basic_block_forward.4} parent=27 // pred_fallthru
        _
    $region28: #{basic_block_forward.4} parent=5 // pred_fallthru
      _
    %p239 = scmp.le.s32.totalorder 1, %s13
    %p240 = scmp.lt.s32.totalorder %s13, 3
    %p241 = pnand %p239, %p240
    %p242 = pneg %p241
    // Predicated region
    $region33: #{basic_block_forward.4} parent=5 // pred_check
      _
    $region34: #{basic_block_forward.4} parent=5 // pred_check_branch
      %244 = sbr.rel (%p241) target = $region36
    $region35: #{basic_block_forward.4} parent=5 // pred_region
      %s245 = ssub.s32 %s13, 1
      %p246 = scmp.lt.s32.totalorder %s23, 1
      %s247 = scalar_select %p246, %s23, 1
      %s248 = smul.addr %s247, 8
      %s249 = smul.addr %s248, 4
      %s250 = scalar_lea.vmem %s0, %s249
      %p251 = pneg %p51
      %p252 = pneg %p48
      %p253 = pneg %p72
      %p254 = pneg %p69
      %p255 = pneg %p93
      %p256 = pneg %p90
      %p257 = scmp.lt.s32.totalorder %s22, 0
      %s258 = scalar_select %p257, %s22, 0
      %s259 = smul.addr %s258, 4
      %s260 = scalar_lea.vmem %s3, %s259
      %p261 = pneg %p119
      %p262 = pneg %p116
      %p263 = pneg %p147
      %p264 = pneg %p144
      %p265 = scmp.lt.s32.totalorder %s23, 1
      %s266 = scalar_select %p265, %s23, 1
      %p267 = scmp.lt.s32.totalorder %s22, 0
      %s268 = scalar_select %p267, %s22, 0
      %s269 = smul.addr %s266, 8
      %s270 = sadd.s32 %s268, %s269
      %s271 = smul.addr %s270, 4
      %s272 = scalar_lea.vmem %s4, %s271
      %p273 = pneg %p173
      %p274 = pneg %p170
      %p275 = scmp.lt.s32.totalorder %s22, 0
      %s276 = scalar_select %p275, %s22, 0
      %s277 = scalar_lea.vmem %s5, %s276
      %p278 = pneg %p199
      %p279 = pneg %p196
      %p280 = scmp.lt.s32.totalorder %s22, 0
      %s281 = scalar_select %p280, %s22, 0
      %s282 = scalar_lea.vmem %s6, %s281
      %p283 = scmp.lt.s32.totalorder %s23, 1
      %s284 = scalar_select %p283, %s23, 1
      %s285 = smul.addr %s284, 8
      %s286 = smul.addr %s285, 4
      %s287 = scalar_lea.vmem %s0, %s286
      %p288 = scmp.lt.s32.totalorder %s22, 0
      %s289 = scalar_select %p288, %s22, 0
      %s290 = smul.addr %s289, 4
      %s291 = scalar_lea.vmem %s3, %s290
      %p292 = scmp.lt.s32.totalorder %s23, 1
      %s293 = scalar_select %p292, %s23, 1
      %p294 = scmp.lt.s32.totalorder %s22, 0
      %s295 = scalar_select %p294, %s22, 0
      %s296 = smul.addr %s293, 8
      %s297 = sadd.s32 %s295, %s296
      %s298 = smul.addr %s297, 4
      %s299 = scalar_lea.vmem %s4, %s298
      %p300 = scmp.lt.s32.totalorder %s22, 0
      %s301 = scalar_select %p300, %s22, 0
      %s302 = scalar_lea.vmem %s5, %s301
      %p303 = scmp.lt.s32.totalorder %s22, 0
      %s304 = scalar_select %p303, %s22, 0
      %s305 = scalar_lea.vmem %s6, %s304
      %p307 = scmp.eq.s32.totalorder %s23, 0
      // Predicated region
      $region37: #{basic_block_forward.4} parent=35 // pred_check
        %p308 = pneg %p307
      $region38: #{basic_block_forward.4} parent=35 // pred_check_branch
        %310 = sbr.rel (%p308) target = $region40
      $region39: #{basic_block_forward.4} parent=35 // pred_region
        %311 = vst [vmem:[%s302] sm:$0x1] 0.0
        %312 = vst [vmem:[%s305] sm:$0x1] 0.0
        %313 = vst [vmem:[#allocation2] sm:$0xf] 0
        %314 = vst [vmem:[#allocation2 + $0x4] sm:$0x1] 0
        %315 = vst [vmem:[#allocation2 + $0x8] sm:$0xf] 0
        %316 = vst [vmem:[#allocation2 + $0xc] sm:$0x1] 0
        %317 = vst [vmem:[#allocation2 + $0x10] sm:$0xf] 0
        %318 = vst [vmem:[#allocation2 + $0x14] sm:$0x1] 0
        %319 = vst [vmem:[#allocation2 + $0x18] sm:$0xf] 0
        %320 = vst [vmem:[#allocation2 + $0x1c] sm:$0x1] 0
        %321 = vst [vmem:[#allocation2 + $0x20] sm:$0xf] 0
        %322 = vst [vmem:[#allocation2 + $0x24] sm:$0x1] 0
        %323 = vst [vmem:[#allocation2 + $0x28] sm:$0xf] 0
        %324 = vst [vmem:[#allocation2 + $0x2c] sm:$0x1] 0
        %325 = vst [vmem:[#allocation2 + $0x30] sm:$0xf] 0
        %326 = vst [vmem:[#allocation2 + $0x34] sm:$0x1] 0
        %327 = vst [vmem:[#allocation2 + $0x38] sm:$0xf] 0
        %328 = vst [vmem:[#allocation2 + $0x3c] sm:$0x1] 0
        %329 = vst [vmem:[#allocation2 + $0x40] sm:$0xf] 0
        %330 = vst [vmem:[#allocation2 + $0x44] sm:$0x1] 0
        %331 = vst [vmem:[#allocation2 + $0x48] sm:$0xf] 0
        %332 = vst [vmem:[#allocation2 + $0x4c] sm:$0x1] 0
      $region40: #{basic_block_forward.4} parent=35 // pred_fallthru
        _
      %v333 = vld [vmem:[%s287] sm:$0xf]
      %v334 = vld [vmem:[%s287 + $0x4] sm:$0xf]
      %v335 = vld [vmem:[%s287 + $0x8] sm:$0xf]
      %v336 = vld [vmem:[%s287 + $0xc] sm:$0xf]
      %v337 = vld [vmem:[%s287 + $0x10] sm:$0xf]
      %v338 = vld [vmem:[%s287 + $0x14] sm:$0xf]
      %v339 = vld [vmem:[%s287 + $0x18] sm:$0xf]
      %v340 = vld [vmem:[%s287 + $0x1c] sm:$0xf]
      %v341 = vunpack.c.l.bf16 %v333
      %v342 = vunpack.c.l.bf16 %v334
      %v343 = vunpack.c.l.bf16 %v335
      %v344 = vunpack.c.l.bf16 %v336
      %v345 = vunpack.c.l.bf16 %v337
      %v346 = vunpack.c.l.bf16 %v338
      %v347 = vunpack.c.l.bf16 %v339
      %v348 = vunpack.c.l.bf16 %v340
      %v349 = vld [vmem:[%s1] sm:$0x1]
      %v351 = vlaneseq
      %v352 = vshrl.u32 %v351, 7
      %v353 = vsub.s32 0, %v352
      %v354 = vrot.slane %v349, %v353
      %v356 = vmul.f32 %v341, %v354
      %v357 = vmul.f32 %v342, %v354
      %v358 = vmul.f32 %v343, %v354
      %v359 = vmul.f32 %v344, %v354
      %v360 = vmul.f32 %v345, %v354
      %v361 = vmul.f32 %v346, %v354
      %v362 = vmul.f32 %v347, %v354
      %v363 = vmul.f32 %v348, %v354
      %v364 = vld [vmem:[%s2] sm:$0x1]
      %v366 = vlaneseq
      %v367 = vshrl.u32 %v366, 7
      %v368 = vsub.s32 0, %v367
      %v369 = vrot.slane %v364, %v368
      %v371 = vadd.f32 %v356, %v369
      %v372 = vadd.f32 %v357, %v369
      %v373 = vadd.f32 %v358, %v369
      %v374 = vadd.f32 %v359, %v369
      %v375 = vadd.f32 %v360, %v369
      %v376 = vadd.f32 %v361, %v369
      %v377 = vadd.f32 %v362, %v369
      %v378 = vadd.f32 %v363, %v369
      %v379 = vmax.f32 %v371, 0.0
      %v380 = vmax.f32 %v372, 0.0
      %v381 = vmax.f32 %v373, 0.0
      %v382 = vmax.f32 %v374, 0.0
      %v383 = vmax.f32 %v375, 0.0
      %v384 = vmax.f32 %v376, 0.0
      %v385 = vmax.f32 %v377, 0.0
      %v386 = vmax.f32 %v378, 0.0
      %v387 = vpack.c.bf16 %v379, %v379
      %v388 = vpack.c.bf16 %v380, %v380
      %v389 = vpack.c.bf16 %v381, %v381
      %v390 = vpack.c.bf16 %v382, %v382
      %v391 = vpack.c.bf16 %v383, %v383
      %v392 = vpack.c.bf16 %v384, %v384
      %v393 = vpack.c.bf16 %v385, %v385
      %v394 = vpack.c.bf16 %v386, %v386
      %v403 = vunpack.c.l.b16 %v387
      %v404 = vunpack.c.l.b16 %v388
      %v405 = vunpack.c.l.b16 %v389
      %v406 = vunpack.c.l.b16 %v390
      %v407 = vunpack.c.l.b16 %v391
      %v408 = vunpack.c.l.b16 %v392
      %v409 = vunpack.c.l.b16 %v393
      %v410 = vunpack.c.l.b16 %v394
      %v411 = vpack.c.b16 %v403, %v403
      %v412 = vpack.c.b16 %v404, %v404
      %v413 = vpack.c.b16 %v405, %v405
      %v414 = vpack.c.b16 %v406, %v406
      %v415 = vpack.c.b16 %v407, %v407
      %v416 = vpack.c.b16 %v408, %v408
      %v417 = vpack.c.b16 %v409, %v409
      %v418 = vpack.c.b16 %v410, %v410
      %v420 = vshrl.u32 %v411, 16
      %v422 = vrot.slane %v420, 7
      %v423 = vshll.u32 %v411, 16
      %v425 = vor.u32 %v422, %v423
      %v426 = vrot.slane %v422, 4
      %v428 = vshrl.u32 %v412, 16
      %v430 = vrot.slane %v428, 7
      %v431 = vshll.u32 %v412, 16
      %v433 = vor.u32 %v430, %v431
      %v434 = vrot.slane %v430, 4
      %v436 = vshrl.u32 %v413, 16
      %v438 = vrot.slane %v436, 7
      %v439 = vshll.u32 %v413, 16
      %v441 = vor.u32 %v438, %v439
      %v442 = vrot.slane %v438, 4
      %v444 = vshrl.u32 %v414, 16
      %v446 = vrot.slane %v444, 7
      %v447 = vshll.u32 %v414, 16
      %v449 = vor.u32 %v446, %v447
      %v450 = vrot.slane %v446, 4
      %v452 = vshrl.u32 %v415, 16
      %v454 = vrot.slane %v452, 7
      %v455 = vshll.u32 %v415, 16
      %v457 = vor.u32 %v454, %v455
      %v458 = vrot.slane %v454, 4
      %v460 = vshrl.u32 %v416, 16
      %v462 = vrot.slane %v460, 7
      %v463 = vshll.u32 %v416, 16
      %v465 = vor.u32 %v462, %v463
      %v466 = vrot.slane %v462, 4
      %v468 = vshrl.u32 %v417, 16
      %v470 = vrot.slane %v468, 7
      %v471 = vshll.u32 %v417, 16
      %v473 = vor.u32 %v470, %v471
      %v474 = vrot.slane %v470, 4
      %v476 = vshrl.u32 %v418, 16
      %v478 = vrot.slane %v476, 7
      %v479 = vshll.u32 %v418, 16
      %v481 = vor.u32 %v478, %v479
      %v482 = vrot.slane %v478, 4
      %s499 = scalar_lea.vmem [#allocation2], 8
      %vm500 = vcmask 1043456
      %vm501 = vsmask.f32 7938
      %vm502 = vmand %vm500, %vm501
      %v503 = vld [vmem:[%s499] sm:$0xf]
      %v504 = vsel %vm502, %v425, %v503
      %505 = vst [vmem:[%s499] sm:$0xf] %v504
      %vm506 = vcmask 1040384
      %vm507 = vsmask.f32 256
      %vm508 = vmand %vm506, %vm507
      %v509 = vld [vmem:[%s499 + $0x4] sm:$0x1]
      %v510 = vsel %vm508, %v426, %v509
      %511 = vst [vmem:[%s499 + $0x4] sm:$0x1] %v510
      %v512 = vld [vmem:[%s499 + $0x8] sm:$0xf]
      %v513 = vsel %vm502, %v433, %v512
      %514 = vst [vmem:[%s499 + $0x8] sm:$0xf] %v513
      %v515 = vld [vmem:[%s499 + $0xc] sm:$0x1]
      %v516 = vsel %vm508, %v434, %v515
      %517 = vst [vmem:[%s499 + $0xc] sm:$0x1] %v516
      %v518 = vld [vmem:[%s499 + $0x10] sm:$0xf]
      %v519 = vsel %vm502, %v441, %v518
      %520 = vst [vmem:[%s499 + $0x10] sm:$0xf] %v519
      %v521 = vld [vmem:[%s499 + $0x14] sm:$0x1]
      %v522 = vsel %vm508, %v442, %v521
      %523 = vst [vmem:[%s499 + $0x14] sm:$0x1] %v522
      %v524 = vld [vmem:[%s499 + $0x18] sm:$0xf]
      %v525 = vsel %vm502, %v449, %v524
      %526 = vst [vmem:[%s499 + $0x18] sm:$0xf] %v525
      %v527 = vld [vmem:[%s499 + $0x1c] sm:$0x1]
      %v528 = vsel %vm508, %v450, %v527
      %529 = vst [vmem:[%s499 + $0x1c] sm:$0x1] %v528
      %v530 = vld [vmem:[%s499 + $0x20] sm:$0xf]
      %v531 = vsel %vm502, %v457, %v530
      %532 = vst [vmem:[%s499 + $0x20] sm:$0xf] %v531
      %v533 = vld [vmem:[%s499 + $0x24] sm:$0x1]
      %v534 = vsel %vm508, %v458, %v533
      %535 = vst [vmem:[%s499 + $0x24] sm:$0x1] %v534
      %v536 = vld [vmem:[%s499 + $0x28] sm:$0xf]
      %v537 = vsel %vm502, %v465, %v536
      %538 = vst [vmem:[%s499 + $0x28] sm:$0xf] %v537
      %v539 = vld [vmem:[%s499 + $0x2c] sm:$0x1]
      %v540 = vsel %vm508, %v466, %v539
      %541 = vst [vmem:[%s499 + $0x2c] sm:$0x1] %v540
      %v542 = vld [vmem:[%s499 + $0x30] sm:$0xf]
      %v543 = vsel %vm502, %v473, %v542
      %544 = vst [vmem:[%s499 + $0x30] sm:$0xf] %v543
      %v545 = vld [vmem:[%s499 + $0x34] sm:$0x1]
      %v546 = vsel %vm508, %v474, %v545
      %547 = vst [vmem:[%s499 + $0x34] sm:$0x1] %v546
      %v548 = vld [vmem:[%s499 + $0x38] sm:$0xf]
      %v549 = vsel %vm502, %v481, %v548
      %550 = vst [vmem:[%s499 + $0x38] sm:$0xf] %v549
      %v551 = vld [vmem:[%s499 + $0x3c] sm:$0x1]
      %v552 = vsel %vm508, %v482, %v551
      %553 = vst [vmem:[%s499 + $0x3c] sm:$0x1] %v552
      %v554 = vld [vmem:[#allocation2] sm:$0xf]
      %v555 = vld [vmem:[#allocation2 + $0x8] sm:$0xf]
      %v556 = vld [vmem:[#allocation2 + $0x10] sm:$0xf]
      %v557 = vld [vmem:[#allocation2 + $0x18] sm:$0xf]
      %v558 = vld [vmem:[#allocation2 + $0x20] sm:$0xf]
      %v559 = vld [vmem:[#allocation2 + $0x28] sm:$0xf]
      %v560 = vld [vmem:[#allocation2 + $0x30] sm:$0xf]
      %v561 = vld [vmem:[#allocation2 + $0x38] sm:$0xf]
      %v562 = vld [vmem:[%s291] sm:$0xf]
      %v563 = vld [vmem:[%s291 + $0x4] sm:$0xf]
      %v564 = vld [vmem:[%s291 + $0x8] sm:$0xf]
      %v565 = vld [vmem:[%s291 + $0xc] sm:$0xf]
      %v566 = vld [vmem:[%s291 + $0x10] sm:$0xf]
      %v567 = vld [vmem:[%s291 + $0x14] sm:$0xf]
      %v568 = vld [vmem:[%s291 + $0x18] sm:$0xf]
      %v569 = vld [vmem:[%s291 + $0x1c] sm:$0xf]
      %v570 = vld [vmem:[%s291 + $0x20] sm:$0xf]
      %v571 = vld [vmem:[%s291 + $0x24] sm:$0xf]
      %v572 = vld [vmem:[%s291 + $0x28] sm:$0xf]
      %v573 = vld [vmem:[%s291 + $0x2c] sm:$0xf]
      %v574 = vld [vmem:[%s291 + $0x30] sm:$0xf]
      %v575 = vld [vmem:[%s291 + $0x34] sm:$0xf]
      %v576 = vld [vmem:[%s291 + $0x38] sm:$0xf]
      %v577 = vld [vmem:[%s291 + $0x3c] sm:$0xf]
      %v578 = vld [vmem:[#allocation2 + $0x4] sm:$0x1]
      %v579 = vld [vmem:[#allocation2 + $0xc] sm:$0x1]
      %v580 = vld [vmem:[#allocation2 + $0x14] sm:$0x1]
      %v581 = vld [vmem:[#allocation2 + $0x1c] sm:$0x1]
      %v582 = vld [vmem:[#allocation2 + $0x24] sm:$0x1]
      %v583 = vld [vmem:[#allocation2 + $0x2c] sm:$0x1]
      %v584 = vld [vmem:[#allocation2 + $0x34] sm:$0x1]
      %v585 = vld [vmem:[#allocation2 + $0x3c] sm:$0x1]
      %vm586 = vsmask.f32 3328
      %vm587 = vsmask.f32 7440
      %vm588 = vmor %vm586, %vm587
      %v590 = vshrl.u32 %v554, 16
      %v592 = vrot.slane %v590, 4
      %v593 = vshll.u32 %v554, 16
      %v595 = vrot.slane %v593, 5
      %v596 = vor.u32 %v592, %v595
      %v597 = vrot.slane %v596, 4
      %v599 = vshll.u32 %v578, 16
      %v601 = vrot.slane %v599, 5
      %v602 = vsel %vm588, %v597, %v601
      %v604 = vshrl.u32 %v555, 16
      %v606 = vrot.slane %v604, 4
      %v607 = vshll.u32 %v555, 16
      %v609 = vrot.slane %v607, 5
      %v610 = vor.u32 %v606, %v609
      %v611 = vrot.slane %v610, 4
      %v613 = vshll.u32 %v579, 16
      %v615 = vrot.slane %v613, 5
      %v616 = vsel %vm588, %v611, %v615
      %v618 = vshrl.u32 %v556, 16
      %v620 = vrot.slane %v618, 4
      %v621 = vshll.u32 %v556, 16
      %v623 = vrot.slane %v621, 5
      %v624 = vor.u32 %v620, %v623
      %v625 = vrot.slane %v624, 4
      %v627 = vshll.u32 %v580, 16
      %v629 = vrot.slane %v627, 5
      %v630 = vsel %vm588, %v625, %v629
      %v632 = vshrl.u32 %v557, 16
      %v634 = vrot.slane %v632, 4
      %v635 = vshll.u32 %v557, 16
      %v637 = vrot.slane %v635, 5
      %v638 = vor.u32 %v634, %v637
      %v639 = vrot.slane %v638, 4
      %v641 = vshll.u32 %v581, 16
      %v643 = vrot.slane %v641, 5
      %v644 = vsel %vm588, %v639, %v643
      %v646 = vshrl.u32 %v558, 16
      %v648 = vrot.slane %v646, 4
      %v649 = vshll.u32 %v558, 16
      %v651 = vrot.slane %v649, 5
      %v652 = vor.u32 %v648, %v651
      %v653 = vrot.slane %v652, 4
      %v655 = vshll.u32 %v582, 16
      %v657 = vrot.slane %v655, 5
      %v658 = vsel %vm588, %v653, %v657
      %v660 = vshrl.u32 %v559, 16
      %v662 = vrot.slane %v660, 4
      %v663 = vshll.u32 %v559, 16
      %v665 = vrot.slane %v663, 5
      %v666 = vor.u32 %v662, %v665
      %v667 = vrot.slane %v666, 4
      %v669 = vshll.u32 %v583, 16
      %v671 = vrot.slane %v669, 5
      %v672 = vsel %vm588, %v667, %v671
      %v674 = vshrl.u32 %v560, 16
      %v676 = vrot.slane %v674, 4
      %v677 = vshll.u32 %v560, 16
      %v679 = vrot.slane %v677, 5
      %v680 = vor.u32 %v676, %v679
      %v681 = vrot.slane %v680, 4
      %v683 = vshll.u32 %v584, 16
      %v685 = vrot.slane %v683, 5
      %v686 = vsel %vm588, %v681, %v685
      %v688 = vshrl.u32 %v561, 16
      %v690 = vrot.slane %v688, 4
      %v691 = vshll.u32 %v561, 16
      %v693 = vrot.slane %v691, 5
      %v694 = vor.u32 %v690, %v693
      %v695 = vrot.slane %v694, 4
      %v697 = vshll.u32 %v585, 16
      %v699 = vrot.slane %v697, 5
      %v700 = vsel %vm588, %v695, %v699
      %v701 = vld [vmem:[%s291 + $0x40] sm:$0xf]
      %v702 = vld [vmem:[%s291 + $0x44] sm:$0xf]
      %v703 = vld [vmem:[%s291 + $0x48] sm:$0xf]
      %v704 = vld [vmem:[%s291 + $0x4c] sm:$0xf]
      %v705 = vld [vmem:[%s291 + $0x50] sm:$0xf]
      %v706 = vld [vmem:[%s291 + $0x54] sm:$0xf]
      %v707 = vld [vmem:[%s291 + $0x58] sm:$0xf]
      %v708 = vld [vmem:[%s291 + $0x5c] sm:$0xf]
      %v709 = vld [vmem:[%s291 + $0x60] sm:$0xf]
      %v710 = vld [vmem:[%s291 + $0x64] sm:$0xf]
      %v711 = vld [vmem:[%s291 + $0x68] sm:$0xf]
      %v712 = vld [vmem:[%s291 + $0x6c] sm:$0xf]
      %v713 = vld [vmem:[%s291 + $0x70] sm:$0xf]
      %v714 = vld [vmem:[%s291 + $0x74] sm:$0xf]
      %v715 = vld [vmem:[%s291 + $0x78] sm:$0xf]
      %v716 = vld [vmem:[%s291 + $0x7c] sm:$0xf]
      %v717 = vunpack.c.l.b16 %v602
      %v718 = vunpack.c.l.b16 %v616
      %v719 = vunpack.c.l.b16 %v630
      %v720 = vunpack.c.l.b16 %v644
      %v721 = vunpack.c.l.b16 %v658
      %v722 = vunpack.c.l.b16 %v672
      %v723 = vunpack.c.l.b16 %v686
      %v724 = vunpack.c.l.b16 %v700
      %v725 = vpack.c.b16 %v718, %v717
      %v726 = vpack.c.b16 %v720, %v719
      %v727 = vpack.c.b16 %v722, %v721
      %v728 = vpack.c.b16 %v724, %v723
      %v749 = vunpack.c.l.b16 %v701
      %v750 = vunpack.c.l.b16 %v702
      %v751 = vunpack.c.l.b16 %v703
      %v752 = vunpack.c.l.b16 %v704
      %v753 = vunpack.c.l.b16 %v705
      %v754 = vunpack.c.l.b16 %v706
      %v755 = vunpack.c.l.b16 %v707
      %v756 = vunpack.c.l.b16 %v708
      %v757 = vunpack.c.l.b16 %v709
      %v758 = vunpack.c.l.b16 %v710
      %v759 = vunpack.c.l.b16 %v711
      %v760 = vunpack.c.l.b16 %v712
      %v761 = vunpack.c.l.b16 %v713
      %v762 = vunpack.c.l.b16 %v714
      %v763 = vunpack.c.l.b16 %v715
      %v764 = vunpack.c.l.b16 %v716
      %v765 = vpack.c.b16 %v750, %v749
      %v766 = vpack.c.b16 %v752, %v751
      %v767 = vpack.c.b16 %v754, %v753
      %v768 = vpack.c.b16 %v756, %v755
      %v769 = vpack.c.b16 %v758, %v757
      %v770 = vpack.c.b16 %v760, %v759
      %v771 = vpack.c.b16 %v762, %v761
      %v772 = vpack.c.b16 %v764, %v763
      %781 = vmatprep.subr.bf16.mxu0 0
      %782 = vmatpush1.bf16.msra.mxu0 %v765
      %783 = vmatprep.subr.bf16.mxu0 0
      %784 = vmatpush1.bf16.msra.mxu0 %v766
      %785 = vmatprep.subr.bf16.mxu0 0
      %786 = vmatpush1.bf16.msra.mxu0 %v767
      %787 = vmatprep.subr.bf16.mxu0 0
      %788 = vmatpush1.bf16.msra.mxu0 %v768
      %789 = vmatprep.subr.bf16.mxu0 0
      %790 = vmatpush1.bf16.msra.mxu0 %v769
      %791 = vmatprep.subr.bf16.mxu0 0
      %792 = vmatpush1.bf16.msra.mxu0 %v770
      %793 = vmatprep.subr.bf16.mxu0 0
      %794 = vmatpush1.bf16.msra.mxu0 %v771
      %795 = vmatprep.subr.bf16.mxu0 0
      %796 = vmatpush1.bf16.msra.mxu0 %v772
      %797 = vmatprep.subr.bf16.mxu0 0
      %798 = vmatpush1.bf16.msra.mxu0 0
      %799 = vmatprep.subr.bf16.mxu0 0
      %800 = vmatpush1.bf16.msra.mxu0 0
      %801 = vmatprep.subr.bf16.mxu0 0
      %802 = vmatpush1.bf16.msra.mxu0 0
      %803 = vmatprep.subr.bf16.mxu0 0
      %804 = vmatpush1.bf16.msra.mxu0 0
      %805 = vmatprep.subr.bf16.mxu0 0
      %806 = vmatpush1.bf16.msra.mxu0 0
      %807 = vmatprep.subr.bf16.mxu0 0
      %808 = vmatpush1.bf16.msra.mxu0 0
      %809 = vmatprep.subr.bf16.mxu0 0
      %810 = vmatpush1.bf16.msra.mxu0 0
      %811 = vmatprep.subr.bf16.mxu0 0
      %812 = vmatpush1.bf16.msra.mxu0 0
      %813 = vmatprep.mubr.bf16.mxu0 0
      %814 = vmatmul.mubr.bf16.gmra.mrb[0].mxu0 %v725
      %v815 = vpop.f32.mrb[0].mxu0
      %v816 = vadd.f32 0.0, %v815
      %v817 = vpop.f32.mrb[0].mxu0
      %v818 = vpop.f32.mrb[0].mxu0
      %v819 = vadd.f32 0.0, %v818
      %v820 = vpop.f32.mrb[0].mxu0
      %821 = vmatprep.mubr.bf16.mxu0 0
      %822 = vmatmul.mubr.bf16.gmra.mrb[0].mxu0 %v726
      %v823 = vpop.f32.mrb[0].mxu0
      %v824 = vadd.f32 0.0, %v823
      %v825 = vpop.f32.mrb[0].mxu0
      %v826 = vpop.f32.mrb[0].mxu0
      %v827 = vadd.f32 0.0, %v826
      %v828 = vpop.f32.mrb[0].mxu0
      %829 = vmatprep.mubr.bf16.mxu0 0
      %830 = vmatmul.mubr.bf16.gmra.mrb[0].mxu0 %v727
      %v831 = vpop.f32.mrb[0].mxu0
      %v832 = vadd.f32 0.0, %v831
      %v833 = vpop.f32.mrb[0].mxu0
      %v834 = vpop.f32.mrb[0].mxu0
      %v835 = vadd.f32 0.0, %v834
      %v836 = vpop.f32.mrb[0].mxu0
      %837 = vmatprep.mubr.bf16.mxu0 0
      %838 = vmatmul.mubr.bf16.gmra.mrb[0].mxu0 %v728
      %v839 = vpop.f32.mrb[0].mxu0
      %v840 = vadd.f32 0.0, %v839
      %v841 = vpop.f32.mrb[0].mxu0
      %v842 = vpop.f32.mrb[0].mxu0
      %v843 = vadd.f32 0.0, %v842
      %v844 = vpop.f32.mrb[0].mxu0
      %845 = vdwg.mxu0
      %v854 = vunpack.c.l.b16 %v554
      %v855 = vunpack.c.l.b16 %v555
      %v856 = vunpack.c.l.b16 %v556
      %v857 = vunpack.c.l.b16 %v557
      %v858 = vunpack.c.l.b16 %v558
      %v859 = vunpack.c.l.b16 %v559
      %v860 = vunpack.c.l.b16 %v560
      %v861 = vunpack.c.l.b16 %v561
      %v862 = vpack.c.b16 %v855, %v854
      %v863 = vpack.c.b16 %v857, %v856
      %v864 = vpack.c.b16 %v859, %v858
      %v865 = vpack.c.b16 %v861, %v860
      %v886 = vunpack.c.l.b16 %v562
      %v887 = vunpack.c.l.b16 %v563
      %v888 = vunpack.c.l.b16 %v564
      %v889 = vunpack.c.l.b16 %v565
      %v890 = vunpack.c.l.b16 %v566
      %v891 = vunpack.c.l.b16 %v567
      %v892 = vunpack.c.l.b16 %v568
      %v893 = vunpack.c.l.b16 %v569
      %v894 = vunpack.c.l.b16 %v570
      %v895 = vunpack.c.l.b16 %v571
      %v896 = vunpack.c.l.b16 %v572
      %v897 = vunpack.c.l.b16 %v573
      %v898 = vunpack.c.l.b16 %v574
      %v899 = vunpack.c.l.b16 %v575
      %v900 = vunpack.c.l.b16 %v576
      %v901 = vunpack.c.l.b16 %v577
      %v902 = vpack.c.b16 %v887, %v886
      %v903 = vpack.c.b16 %v889, %v888
      %v904 = vpack.c.b16 %v891, %v890
      %v905 = vpack.c.b16 %v893, %v892
      %v906 = vpack.c.b16 %v895, %v894
      %v907 = vpack.c.b16 %v897, %v896
      %v908 = vpack.c.b16 %v899, %v898
      %v909 = vpack.c.b16 %v901, %v900
      %918 = vmatprep.subr.bf16.mxu0 0
      %919 = vmatpush1.bf16.msra.mxu0 %v902
      %920 = vmatprep.subr.bf16.mxu0 0
      %921 = vmatpush1.bf16.msra.mxu0 %v903
      %922 = vmatprep.subr.bf16.mxu0 0
      %923 = vmatpush1.bf16.msra.mxu0 %v904
      %924 = vmatprep.subr.bf16.mxu0 0
      %925 = vmatpush1.bf16.msra.mxu0 %v905
      %926 = vmatprep.subr.bf16.mxu0 0
      %927 = vmatpush1.bf16.msra.mxu0 %v906
      %928 = vmatprep.subr.bf16.mxu0 0
      %929 = vmatpush1.bf16.msra.mxu0 %v907
      %930 = vmatprep.subr.bf16.mxu0 0
      %931 = vmatpush1.bf16.msra.mxu0 %v908
      %932 = vmatprep.subr.bf16.mxu0 0
      %933 = vmatpush1.bf16.msra.mxu0 %v909
      %934 = vmatprep.subr.bf16.mxu0 0
      %935 = vmatpush1.bf16.msra.mxu0 0
      %936 = vmatprep.subr.bf16.mxu0 0
      %937 = vmatpush1.bf16.msra.mxu0 0
      %938 = vmatprep.subr.bf16.mxu0 0
      %939 = vmatpush1.bf16.msra.mxu0 0
      %940 = vmatprep.subr.bf16.mxu0 0
      %941 = vmatpush1.bf16.msra.mxu0 0
      %942 = vmatprep.subr.bf16.mxu0 0
      %943 = vmatpush1.bf16.msra.mxu0 0
      %944 = vmatprep.subr.bf16.mxu0 0
      %945 = vmatpush1.bf16.msra.mxu0 0
      %946 = vmatprep.subr.bf16.mxu0 0
      %947 = vmatpush1.bf16.msra.mxu0 0
      %948 = vmatprep.subr.bf16.mxu0 0
      %949 = vmatpush1.bf16.msra.mxu0 0
      %950 = vmatprep.mubr.bf16.mxu0 0
      %951 = vmatmul.mubr.bf16.gmra.mrb[0].mxu0 %v862
      %v952 = vpop.f32.mrb[0].mxu0
      %v953 = vadd.f32 %v816, %v952
      %v954 = vpop.f32.mrb[0].mxu0
      %v955 = vpop.f32.mrb[0].mxu0
      %v956 = vadd.f32 %v819, %v955
      %v957 = vpop.f32.mrb[0].mxu0
      %958 = vmatprep.mubr.bf16.mxu0 0
      %959 = vmatmul.mubr.bf16.gmra.mrb[0].mxu0 %v863
      %v960 = vpop.f32.mrb[0].mxu0
      %v961 = vadd.f32 %v824, %v960
      %v962 = vpop.f32.mrb[0].mxu0
      %v963 = vpop.f32.mrb[0].mxu0
      %v964 = vadd.f32 %v827, %v963
      %v965 = vpop.f32.mrb[0].mxu0
      %966 = vmatprep.mubr.bf16.mxu0 0
      %967 = vmatmul.mubr.bf16.gmra.mrb[0].mxu0 %v864
      %v968 = vpop.f32.mrb[0].mxu0
      %v969 = vadd.f32 %v832, %v968
      %v970 = vpop.f32.mrb[0].mxu0
      %v971 = vpop.f32.mrb[0].mxu0
      %v972 = vadd.f32 %v835, %v971
      %v973 = vpop.f32.mrb[0].mxu0
      %974 = vmatprep.mubr.bf16.mxu0 0
      %975 = vmatmul.mubr.bf16.gmra.mrb[0].mxu0 %v865
      %v976 = vpop.f32.mrb[0].mxu0
      %v977 = vadd.f32 %v840, %v976
      %v978 = vpop.f32.mrb[0].mxu0
      %v979 = vpop.f32.mrb[0].mxu0
      %v980 = vadd.f32 %v843, %v979
      %v981 = vpop.f32.mrb[0].mxu0
      %982 = vdwg.mxu0
      %v983 = vld [vmem:[#allocation2] sm:$0xe]
      %v984 = vld [vmem:[#allocation2 + $0x8] sm:$0xe]
      %v985 = vld [vmem:[#allocation2 + $0x10] sm:$0xe]
      %v986 = vld [vmem:[#allocation2 + $0x18] sm:$0xe]
      %v987 = vld [vmem:[#allocation2 + $0x20] sm:$0xe]
      %v988 = vld [vmem:[#allocation2 + $0x28] sm:$0xe]
      %v989 = vld [vmem:[#allocation2 + $0x30] sm:$0xe]
      %v990 = vld [vmem:[#allocation2 + $0x38] sm:$0xe]
      %vm1007 = vcmask 1042432
      %vm1008 = vcmask 1046532
      %vm1009 = vmor %vm1007, %vm1008
      %v1010 = vrot.slane %v983, 5
      %v1011 = vrot.slane %v1010, 4
      %v1012 = vrot.slane %v578, 5
      %v1013 = vsel %vm1009, %v1011, %v1012
      %v1014 = vrot.slane %v984, 5
      %v1015 = vrot.slane %v1014, 4
      %v1016 = vrot.slane %v579, 5
      %v1017 = vsel %vm1009, %v1015, %v1016
      %v1018 = vrot.slane %v985, 5
      %v1019 = vrot.slane %v1018, 4
      %v1020 = vrot.slane %v580, 5
      %v1021 = vsel %vm1009, %v1019, %v1020
      %v1022 = vrot.slane %v986, 5
      %v1023 = vrot.slane %v1022, 4
      %v1024 = vrot.slane %v581, 5
      %v1025 = vsel %vm1009, %v1023, %v1024
      %v1026 = vrot.slane %v987, 5
      %v1027 = vrot.slane %v1026, 4
      %v1028 = vrot.slane %v582, 5
      %v1029 = vsel %vm1009, %v1027, %v1028
      %v1030 = vrot.slane %v988, 5
      %v1031 = vrot.slane %v1030, 4
      %v1032 = vrot.slane %v583, 5
      %v1033 = vsel %vm1009, %v1031, %v1032
      %v1034 = vrot.slane %v989, 5
      %v1035 = vrot.slane %v1034, 4
      %v1036 = vrot.slane %v584, 5
      %v1037 = vsel %vm1009, %v1035, %v1036
      %v1038 = vrot.slane %v990, 5
      %v1039 = vrot.slane %v1038, 4
      %v1040 = vrot.slane %v585, 5
      %v1041 = vsel %vm1009, %v1039, %v1040
      %v1042 = vld [vmem:[%s291 + $0x80] sm:$0xf]
      %v1043 = vld [vmem:[%s291 + $0x84] sm:$0xf]
      %v1044 = vld [vmem:[%s291 + $0x88] sm:$0xf]
      %v1045 = vld [vmem:[%s291 + $0x8c] sm:$0xf]
      %v1046 = vld [vmem:[%s291 + $0x90] sm:$0xf]
      %v1047 = vld [vmem:[%s291 + $0x94] sm:$0xf]
      %v1048 = vld [vmem:[%s291 + $0x98] sm:$0xf]
      %v1049 = vld [vmem:[%s291 + $0x9c] sm:$0xf]
      %v1050 = vld [vmem:[%s291 + $0xa0] sm:$0xf]
      %v1051 = vld [vmem:[%s291 + $0xa4] sm:$0xf]
      %v1052 = vld [vmem:[%s291 + $0xa8] sm:$0xf]
      %v1053 = vld [vmem:[%s291 + $0xac] sm:$0xf]
      %v1054 = vld [vmem:[%s291 + $0xb0] sm:$0xf]
      %v1055 = vld [vmem:[%s291 + $0xb4] sm:$0xf]
      %v1056 = vld [vmem:[%s291 + $0xb8] sm:$0xf]
      %v1057 = vld [vmem:[%s291 + $0xbc] sm:$0xf]
      %v1058 = vunpack.c.l.b16 %v1013
      %v1059 = vunpack.c.l.b16 %v1017
      %v1060 = vunpack.c.l.b16 %v1021
      %v1061 = vunpack.c.l.b16 %v1025
      %v1062 = vunpack.c.l.b16 %v1029
      %v1063 = vunpack.c.l.b16 %v1033
      %v1064 = vunpack.c.l.b16 %v1037
      %v1065 = vunpack.c.l.b16 %v1041
      %v1066 = vpack.c.b16 %v1059, %v1058
      %v1067 = vpack.c.b16 %v1061, %v1060
      %v1068 = vpack.c.b16 %v1063, %v1062
      %v1069 = vpack.c.b16 %v1065, %v1064
      %v1090 = vunpack.c.l.b16 %v1042
      %v1091 = vunpack.c.l.b16 %v1043
      %v1092 = vunpack.c.l.b16 %v1044
      %v1093 = vunpack.c.l.b16 %v1045
      %v1094 = vunpack.c.l.b16 %v1046
      %v1095 = vunpack.c.l.b16 %v1047
      %v1096 = vunpack.c.l.b16 %v1048
      %v1097 = vunpack.c.l.b16 %v1049
      %v1098 = vunpack.c.l.b16 %v1050
      %v1099 = vunpack.c.l.b16 %v1051
      %v1100 = vunpack.c.l.b16 %v1052
      %v1101 = vunpack.c.l.b16 %v1053
      %v1102 = vunpack.c.l.b16 %v1054
      %v1103 = vunpack.c.l.b16 %v1055
      %v1104 = vunpack.c.l.b16 %v1056
      %v1105 = vunpack.c.l.b16 %v1057
      %v1106 = vpack.c.b16 %v1091, %v1090
      %v1107 = vpack.c.b16 %v1093, %v1092
      %v1108 = vpack.c.b16 %v1095, %v1094
      %v1109 = vpack.c.b16 %v1097, %v1096
      %v1110 = vpack.c.b16 %v1099, %v1098
      %v1111 = vpack.c.b16 %v1101, %v1100
      %v1112 = vpack.c.b16 %v1103, %v1102
      %v1113 = vpack.c.b16 %v1105, %v1104
      %1122 = vmatprep.subr.bf16.mxu0 0
      %1123 = vmatpush1.bf16.msra.mxu0 %v1106
      %1124 = vmatprep.subr.bf16.mxu0 0
      %1125 = vmatpush1.bf16.msra.mxu0 %v1107
      %1126 = vmatprep.subr.bf16.mxu0 0
      %1127 = vmatpush1.bf16.msra.mxu0 %v1108
      %1128 = vmatprep.subr.bf16.mxu0 0
      %1129 = vmatpush1.bf16.msra.mxu0 %v1109
      %1130 = vmatprep.subr.bf16.mxu0 0
      %1131 = vmatpush1.bf16.msra.mxu0 %v1110
      %1132 = vmatprep.subr.bf16.mxu0 0
      %1133 = vmatpush1.bf16.msra.mxu0 %v1111
      %1134 = vmatprep.subr.bf16.mxu0 0
      %1135 = vmatpush1.bf16.msra.mxu0 %v1112
      %1136 = vmatprep.subr.bf16.mxu0 0
      %1137 = vmatpush1.bf16.msra.mxu0 %v1113
      %1138 = vmatprep.subr.bf16.mxu0 0
      %1139 = vmatpush1.bf16.msra.mxu0 0
      %1140 = vmatprep.subr.bf16.mxu0 0
      %1141 = vmatpush1.bf16.msra.mxu0 0
      %1142 = vmatprep.subr.bf16.mxu0 0
      %1143 = vmatpush1.bf16.msra.mxu0 0
      %1144 = vmatprep.subr.bf16.mxu0 0
      %1145 = vmatpush1.bf16.msra.mxu0 0
      %1146 = vmatprep.subr.bf16.mxu0 0
      %1147 = vmatpush1.bf16.msra.mxu0 0
      %1148 = vmatprep.subr.bf16.mxu0 0
      %1149 = vmatpush1.bf16.msra.mxu0 0
      %1150 = vmatprep.subr.bf16.mxu0 0
      %1151 = vmatpush1.bf16.msra.mxu0 0
      %1152 = vmatprep.subr.bf16.mxu0 0
      %1153 = vmatpush1.bf16.msra.mxu0 0
      %1154 = vmatprep.mubr.bf16.mxu0 0
      %1155 = vmatmul.mubr.bf16.gmra.mrb[0].mxu0 %v1066
      %v1156 = vpop.f32.mrb[0].mxu0
      %v1157 = vadd.f32 0.0, %v1156
      %v1158 = vpop.f32.mrb[0].mxu0
      %v1159 = vpop.f32.mrb[0].mxu0
      %v1160 = vadd.f32 0.0, %v1159
      %v1161 = vpop.f32.mrb[0].mxu0
      %1162 = vmatprep.mubr.bf16.mxu0 0
      %1163 = vmatmul.mubr.bf16.gmra.mrb[0].mxu0 %v1067
      %v1164 = vpop.f32.mrb[0].mxu0
      %v1165 = vadd.f32 0.0, %v1164
      %v1166 = vpop.f32.mrb[0].mxu0
      %v1167 = vpop.f32.mrb[0].mxu0
      %v1168 = vadd.f32 0.0, %v1167
      %v1169 = vpop.f32.mrb[0].mxu0
      %1170 = vmatprep.mubr.bf16.mxu0 0
      %1171 = vmatmul.mubr.bf16.gmra.mrb[0].mxu0 %v1068
      %v1172 = vpop.f32.mrb[0].mxu0
      %v1173 = vadd.f32 0.0, %v1172
      %v1174 = vpop.f32.mrb[0].mxu0
      %v1175 = vpop.f32.mrb[0].mxu0
      %v1176 = vadd.f32 0.0, %v1175
      %v1177 = vpop.f32.mrb[0].mxu0
      %1178 = vmatprep.mubr.bf16.mxu0 0
      %1179 = vmatmul.mubr.bf16.gmra.mrb[0].mxu0 %v1069
      %v1180 = vpop.f32.mrb[0].mxu0
      %v1181 = vadd.f32 0.0, %v1180
      %v1182 = vpop.f32.mrb[0].mxu0
      %v1183 = vpop.f32.mrb[0].mxu0
      %v1184 = vadd.f32 0.0, %v1183
      %v1185 = vpop.f32.mrb[0].mxu0
      %1186 = vdwg.mxu0
      %v1187 = vadd.f32 %v953, %v1157
      %v1188 = vadd.f32 %v956, %v1160
      %v1189 = vadd.f32 %v961, %v1165
      %v1190 = vadd.f32 %v964, %v1168
      %v1191 = vadd.f32 %v969, %v1173
      %v1192 = vadd.f32 %v972, %v1176
      %v1193 = vadd.f32 %v977, %v1181
      %v1194 = vadd.f32 %v980, %v1184
      %v1195 = vld [vmem:[%s499] sm:$0xf]
      %v1196 = vld [vmem:[%s499 + $0x8] sm:$0xf]
      %v1197 = vld [vmem:[%s499 + $0x10] sm:$0xf]
      %v1198 = vld [vmem:[%s499 + $0x18] sm:$0xf]
      %v1199 = vld [vmem:[%s499 + $0x20] sm:$0xf]
      %v1200 = vld [vmem:[%s499 + $0x28] sm:$0xf]
      %v1201 = vld [vmem:[%s499 + $0x30] sm:$0xf]
      %v1202 = vld [vmem:[%s499 + $0x38] sm:$0xf]
      %v1203 = vld [vmem:[%s291 + $0xc0] sm:$0xf]
      %v1204 = vld [vmem:[%s291 + $0xc4] sm:$0xf]
      %v1205 = vld [vmem:[%s291 + $0xc8] sm:$0xf]
      %v1206 = vld [vmem:[%s291 + $0xcc] sm:$0xf]
      %v1207 = vld [vmem:[%s291 + $0xd0] sm:$0xf]
      %v1208 = vld [vmem:[%s291 + $0xd4] sm:$0xf]
      %v1209 = vld [vmem:[%s291 + $0xd8] sm:$0xf]
      %v1210 = vld [vmem:[%s291 + $0xdc] sm:$0xf]
      %v1211 = vld [vmem:[%s291 + $0xe0] sm:$0xf]
      %v1212 = vld [vmem:[%s291 + $0xe4] sm:$0xf]
      %v1213 = vld [vmem:[%s291 + $0xe8] sm:$0xf]
      %v1214 = vld [vmem:[%s291 + $0xec] sm:$0xf]
      %v1215 = vld [vmem:[%s291 + $0xf0] sm:$0xf]
      %v1216 = vld [vmem:[%s291 + $0xf4] sm:$0xf]
      %v1217 = vld [vmem:[%s291 + $0xf8] sm:$0xf]
      %v1218 = vld [vmem:[%s291 + $0xfc] sm:$0xf]
      %v1227 = vunpack.c.l.b16 %v1195
      %v1228 = vunpack.c.l.b16 %v1196
      %v1229 = vunpack.c.l.b16 %v1197
      %v1230 = vunpack.c.l.b16 %v1198
      %v1231 = vunpack.c.l.b16 %v1199
      %v1232 = vunpack.c.l.b16 %v1200
      %v1233 = vunpack.c.l.b16 %v1201
      %v1234 = vunpack.c.l.b16 %v1202
      %v1235 = vpack.c.b16 %v1228, %v1227
      %v1236 = vpack.c.b16 %v1230, %v1229
      %v1237 = vpack.c.b16 %v1232, %v1231
      %v1238 = vpack.c.b16 %v1234, %v1233
      %v1259 = vunpack.c.l.b16 %v1203
      %v1260 = vunpack.c.l.b16 %v1204
      %v1261 = vunpack.c.l.b16 %v1205
      %v1262 = vunpack.c.l.b16 %v1206
      %v1263 = vunpack.c.l.b16 %v1207
      %v1264 = vunpack.c.l.b16 %v1208
      %v1265 = vunpack.c.l.b16 %v1209
      %v1266 = vunpack.c.l.b16 %v1210
      %v1267 = vunpack.c.l.b16 %v1211
      %v1268 = vunpack.c.l.b16 %v1212
      %v1269 = vunpack.c.l.b16 %v1213
      %v1270 = vunpack.c.l.b16 %v1214
      %v1271 = vunpack.c.l.b16 %v1215
      %v1272 = vunpack.c.l.b16 %v1216
      %v1273 = vunpack.c.l.b16 %v1217
      %v1274 = vunpack.c.l.b16 %v1218
      %v1275 = vpack.c.b16 %v1260, %v1259
      %v1276 = vpack.c.b16 %v1262, %v1261
      %v1277 = vpack.c.b16 %v1264, %v1263
      %v1278 = vpack.c.b16 %v1266, %v1265
      %v1279 = vpack.c.b16 %v1268, %v1267
      %v1280 = vpack.c.b16 %v1270, %v1269
      %v1281 = vpack.c.b16 %v1272, %v1271
      %v1282 = vpack.c.b16 %v1274, %v1273
      %1291 = vmatprep.subr.bf16.mxu0 0
      %1292 = vmatpush1.bf16.msra.mxu0 %v1275
      %1293 = vmatprep.subr.bf16.mxu0 0
      %1294 = vmatpush1.bf16.msra.mxu0 %v1276
      %1295 = vmatprep.subr.bf16.mxu0 0
      %1296 = vmatpush1.bf16.msra.mxu0 %v1277
      %1297 = vmatprep.subr.bf16.mxu0 0
      %1298 = vmatpush1.bf16.msra.mxu0 %v1278
      %1299 = vmatprep.subr.bf16.mxu0 0
      %1300 = vmatpush1.bf16.msra.mxu0 %v1279
      %1301 = vmatprep.subr.bf16.mxu0 0
      %1302 = vmatpush1.bf16.msra.mxu0 %v1280
      %1303 = vmatprep.subr.bf16.mxu0 0
      %1304 = vmatpush1.bf16.msra.mxu0 %v1281
      %1305 = vmatprep.subr.bf16.mxu0 0
      %1306 = vmatpush1.bf16.msra.mxu0 %v1282
      %1307 = vmatprep.subr.bf16.mxu0 0
      %1308 = vmatpush1.bf16.msra.mxu0 0
      %1309 = vmatprep.subr.bf16.mxu0 0
      %1310 = vmatpush1.bf16.msra.mxu0 0
      %1311 = vmatprep.subr.bf16.mxu0 0
      %1312 = vmatpush1.bf16.msra.mxu0 0
      %1313 = vmatprep.subr.bf16.mxu0 0
      %1314 = vmatpush1.bf16.msra.mxu0 0
      %1315 = vmatprep.subr.bf16.mxu0 0
      %1316 = vmatpush1.bf16.msra.mxu0 0
      %1317 = vmatprep.subr.bf16.mxu0 0
      %1318 = vmatpush1.bf16.msra.mxu0 0
      %1319 = vmatprep.subr.bf16.mxu0 0
      %1320 = vmatpush1.bf16.msra.mxu0 0
      %1321 = vmatprep.subr.bf16.mxu0 0
      %1322 = vmatpush1.bf16.msra.mxu0 0
      %1323 = vmatprep.mubr.bf16.mxu0 0
      %1324 = vmatmul.mubr.bf16.gmra.mrb[0].mxu0 %v1235
      %v1325 = vpop.f32.mrb[0].mxu0
      %v1326 = vadd.f32 0.0, %v1325
      %v1327 = vpop.f32.mrb[0].mxu0
      %v1328 = vpop.f32.mrb[0].mxu0
      %v1329 = vadd.f32 0.0, %v1328
      %v1330 = vpop.f32.mrb[0].mxu0
      %1331 = vmatprep.mubr.bf16.mxu0 0
      %1332 = vmatmul.mubr.bf16.gmra.mrb[0].mxu0 %v1236
      %v1333 = vpop.f32.mrb[0].mxu0
      %v1334 = vadd.f32 0.0, %v1333
      %v1335 = vpop.f32.mrb[0].mxu0
      %v1336 = vpop.f32.mrb[0].mxu0
      %v1337 = vadd.f32 0.0, %v1336
      %v1338 = vpop.f32.mrb[0].mxu0
      %1339 = vmatprep.mubr.bf16.mxu0 0
      %1340 = vmatmul.mubr.bf16.gmra.mrb[0].mxu0 %v1237
      %v1341 = vpop.f32.mrb[0].mxu0
      %v1342 = vadd.f32 0.0, %v1341
      %v1343 = vpop.f32.mrb[0].mxu0
      %v1344 = vpop.f32.mrb[0].mxu0
      %v1345 = vadd.f32 0.0, %v1344
      %v1346 = vpop.f32.mrb[0].mxu0
      %1347 = vmatprep.mubr.bf16.mxu0 0
      %1348 = vmatmul.mubr.bf16.gmra.mrb[0].mxu0 %v1238
      %v1349 = vpop.f32.mrb[0].mxu0
      %v1350 = vadd.f32 0.0, %v1349
      %v1351 = vpop.f32.mrb[0].mxu0
      %v1352 = vpop.f32.mrb[0].mxu0
      %v1353 = vadd.f32 0.0, %v1352
      %v1354 = vpop.f32.mrb[0].mxu0
      %1355 = vdwg.mxu0
      %v1356 = vadd.f32 %v1187, %v1326
      %v1357 = vadd.f32 %v1188, %v1329
      %v1358 = vadd.f32 %v1189, %v1334
      %v1359 = vadd.f32 %v1190, %v1337
      %v1360 = vadd.f32 %v1191, %v1342
      %v1361 = vadd.f32 %v1192, %v1345
      %v1362 = vadd.f32 %v1193, %v1350
      %v1363 = vadd.f32 %v1194, %v1353
      %v1364 = vld [vmem:[%s499] sm:$0xf]
      %v1365 = vld [vmem:[%s499 + $0x4] sm:$0x1]
      %v1366 = vld [vmem:[%s499 + $0x8] sm:$0xf]
      %v1367 = vld [vmem:[%s499 + $0xc] sm:$0x1]
      %v1368 = vld [vmem:[%s499 + $0x10] sm:$0xf]
      %v1369 = vld [vmem:[%s499 + $0x14] sm:$0x1]
      %v1370 = vld [vmem:[%s499 + $0x18] sm:$0xf]
      %v1371 = vld [vmem:[%s499 + $0x1c] sm:$0x1]
      %v1372 = vld [vmem:[%s499 + $0x20] sm:$0xf]
      %v1373 = vld [vmem:[%s499 + $0x24] sm:$0x1]
      %v1374 = vld [vmem:[%s499 + $0x28] sm:$0xf]
      %v1375 = vld [vmem:[%s499 + $0x2c] sm:$0x1]
      %v1376 = vld [vmem:[%s499 + $0x30] sm:$0xf]
      %v1377 = vld [vmem:[%s499 + $0x34] sm:$0x1]
      %v1378 = vld [vmem:[%s499 + $0x38] sm:$0xf]
      %v1379 = vld [vmem:[%s499 + $0x3c] sm:$0x1]
      %v1381 = vshrl.u32 %v1364, 16
      %v1383 = vrot.slane %v1381, 4
      %v1384 = vshll.u32 %v1364, 16
      %v1386 = vrot.slane %v1384, 5
      %v1387 = vor.u32 %v1383, %v1386
      %v1388 = vrot.slane %v1387, 4
      %v1390 = vshll.u32 %v1365, 16
      %v1392 = vrot.slane %v1390, 5
      %v1393 = vsel %vm588, %v1388, %v1392
      %v1395 = vshrl.u32 %v1366, 16
      %v1397 = vrot.slane %v1395, 4
      %v1398 = vshll.u32 %v1366, 16
      %v1400 = vrot.slane %v1398, 5
      %v1401 = vor.u32 %v1397, %v1400
      %v1402 = vrot.slane %v1401, 4
      %v1404 = vshll.u32 %v1367, 16
      %v1406 = vrot.slane %v1404, 5
      %v1407 = vsel %vm588, %v1402, %v1406
      %v1409 = vshrl.u32 %v1368, 16
      %v1411 = vrot.slane %v1409, 4
      %v1412 = vshll.u32 %v1368, 16
      %v1414 = vrot.slane %v1412, 5
      %v1415 = vor.u32 %v1411, %v1414
      %v1416 = vrot.slane %v1415, 4
      %v1418 = vshll.u32 %v1369, 16
      %v1420 = vrot.slane %v1418, 5
      %v1421 = vsel %vm588, %v1416, %v1420
      %v1423 = vshrl.u32 %v1370, 16
      %v1425 = vrot.slane %v1423, 4
      %v1426 = vshll.u32 %v1370, 16
      %v1428 = vrot.slane %v1426, 5
      %v1429 = vor.u32 %v1425, %v1428
      %v1430 = vrot.slane %v1429, 4
      %v1432 = vshll.u32 %v1371, 16
      %v1434 = vrot.slane %v1432, 5
      %v1435 = vsel %vm588, %v1430, %v1434
      %v1437 = vshrl.u32 %v1372, 16
      %v1439 = vrot.slane %v1437, 4
      %v1440 = vshll.u32 %v1372, 16
      %v1442 = vrot.slane %v1440, 5
      %v1443 = vor.u32 %v1439, %v1442
      %v1444 = vrot.slane %v1443, 4
      %v1446 = vshll.u32 %v1373, 16
      %v1448 = vrot.slane %v1446, 5
      %v1449 = vsel %vm588, %v1444, %v1448
      %v1451 = vshrl.u32 %v1374, 16
      %v1453 = vrot.slane %v1451, 4
      %v1454 = vshll.u32 %v1374, 16
      %v1456 = vrot.slane %v1454, 5
      %v1457 = vor.u32 %v1453, %v1456
      %v1458 = vrot.slane %v1457, 4
      %v1460 = vshll.u32 %v1375, 16
      %v1462 = vrot.slane %v1460, 5
      %v1463 = vsel %vm588, %v1458, %v1462
      %v1465 = vshrl.u32 %v1376, 16
      %v1467 = vrot.slane %v1465, 4
      %v1468 = vshll.u32 %v1376, 16
      %v1470 = vrot.slane %v1468, 5
      %v1471 = vor.u32 %v1467, %v1470
      %v1472 = vrot.slane %v1471, 4
      %v1474 = vshll.u32 %v1377, 16
      %v1476 = vrot.slane %v1474, 5
      %v1477 = vsel %vm588, %v1472, %v1476
      %v1479 = vshrl.u32 %v1378, 16
      %v1481 = vrot.slane %v1479, 4
      %v1482 = vshll.u32 %v1378, 16
      %v1484 = vrot.slane %v1482, 5
      %v1485 = vor.u32 %v1481, %v1484
      %v1486 = vrot.slane %v1485, 4
      %v1488 = vshll.u32 %v1379, 16
      %v1490 = vrot.slane %v1488, 5
      %v1491 = vsel %vm588, %v1486, %v1490
      %v1492 = vld [vmem:[%s291 + $0x100] sm:$0xf]
      %v1493 = vld [vmem:[%s291 + $0x104] sm:$0xf]
      %v1494 = vld [vmem:[%s291 + $0x108] sm:$0xf]
      %v1495 = vld [vmem:[%s291 + $0x10c] sm:$0xf]
      %v1496 = vld [vmem:[%s291 + $0x110] sm:$0xf]
      %v1497 = vld [vmem:[%s291 + $0x114] sm:$0xf]
      %v1498 = vld [vmem:[%s291 + $0x118] sm:$0xf]
      %v1499 = vld [vmem:[%s291 + $0x11c] sm:$0xf]
      %v1500 = vld [vmem:[%s291 + $0x120] sm:$0xf]
      %v1501 = vld [vmem:[%s291 + $0x124] sm:$0xf]
      %v1502 = vld [vmem:[%s291 + $0x128] sm:$0xf]
      %v1503 = vld [vmem:[%s291 + $0x12c] sm:$0xf]
      %v1504 = vld [vmem:[%s291 + $0x130] sm:$0xf]
      %v1505 = vld [vmem:[%s291 + $0x134] sm:$0xf]
      %v1506 = vld [vmem:[%s291 + $0x138] sm:$0xf]
      %v1507 = vld [vmem:[%s291 + $0x13c] sm:$0xf]
      %v1508 = vunpack.c.l.b16 %v1393
      %v1509 = vunpack.c.l.b16 %v1407
      %v1510 = vunpack.c.l.b16 %v1421
      %v1511 = vunpack.c.l.b16 %v1435
      %v1512 = vunpack.c.l.b16 %v1449
      %v1513 = vunpack.c.l.b16 %v1463
      %v1514 = vunpack.c.l.b16 %v1477
      %v1515 = vunpack.c.l.b16 %v1491
      %v1516 = vpack.c.b16 %v1509, %v1508
      %v1517 = vpack.c.b16 %v1511, %v1510
      %v1518 = vpack.c.b16 %v1513, %v1512
      %v1519 = vpack.c.b16 %v1515, %v1514
      %v1540 = vunpack.c.l.b16 %v1492
      %v1541 = vunpack.c.l.b16 %v1493
      %v1542 = vunpack.c.l.b16 %v1494
      %v1543 = vunpack.c.l.b16 %v1495
      %v1544 = vunpack.c.l.b16 %v1496
      %v1545 = vunpack.c.l.b16 %v1497
      %v1546 = vunpack.c.l.b16 %v1498
      %v1547 = vunpack.c.l.b16 %v1499
      %v1548 = vunpack.c.l.b16 %v1500
      %v1549 = vunpack.c.l.b16 %v1501
      %v1550 = vunpack.c.l.b16 %v1502
      %v1551 = vunpack.c.l.b16 %v1503
      %v1552 = vunpack.c.l.b16 %v1504
      %v1553 = vunpack.c.l.b16 %v1505
      %v1554 = vunpack.c.l.b16 %v1506
      %v1555 = vunpack.c.l.b16 %v1507
      %v1556 = vpack.c.b16 %v1541, %v1540
      %v1557 = vpack.c.b16 %v1543, %v1542
      %v1558 = vpack.c.b16 %v1545, %v1544
      %v1559 = vpack.c.b16 %v1547, %v1546
      %v1560 = vpack.c.b16 %v1549, %v1548
      %v1561 = vpack.c.b16 %v1551, %v1550
      %v1562 = vpack.c.b16 %v1553, %v1552
      %v1563 = vpack.c.b16 %v1555, %v1554
      %1572 = vmatprep.subr.bf16.mxu0 0
      %1573 = vmatpush1.bf16.msra.mxu0 %v1556
      %1574 = vmatprep.subr.bf16.mxu0 0
      %1575 = vmatpush1.bf16.msra.mxu0 %v1557
      %1576 = vmatprep.subr.bf16.mxu0 0
      %1577 = vmatpush1.bf16.msra.mxu0 %v1558
      %1578 = vmatprep.subr.bf16.mxu0 0
      %1579 = vmatpush1.bf16.msra.mxu0 %v1559
      %1580 = vmatprep.subr.bf16.mxu0 0
      %1581 = vmatpush1.bf16.msra.mxu0 %v1560
      %1582 = vmatprep.subr.bf16.mxu0 0
      %1583 = vmatpush1.bf16.msra.mxu0 %v1561
      %1584 = vmatprep.subr.bf16.mxu0 0
      %1585 = vmatpush1.bf16.msra.mxu0 %v1562
      %1586 = vmatprep.subr.bf16.mxu0 0
      %1587 = vmatpush1.bf16.msra.mxu0 %v1563
      %1588 = vmatprep.subr.bf16.mxu0 0
      %1589 = vmatpush1.bf16.msra.mxu0 0
      %1590 = vmatprep.subr.bf16.mxu0 0
      %1591 = vmatpush1.bf16.msra.mxu0 0
      %1592 = vmatprep.subr.bf16.mxu0 0
      %1593 = vmatpush1.bf16.msra.mxu0 0
      %1594 = vmatprep.subr.bf16.mxu0 0
      %1595 = vmatpush1.bf16.msra.mxu0 0
      %1596 = vmatprep.subr.bf16.mxu0 0
      %1597 = vmatpush1.bf16.msra.mxu0 0
      %1598 = vmatprep.subr.bf16.mxu0 0
      %1599 = vmatpush1.bf16.msra.mxu0 0
      %1600 = vmatprep.subr.bf16.mxu0 0
      %1601 = vmatpush1.bf16.msra.mxu0 0
      %1602 = vmatprep.subr.bf16.mxu0 0
      %1603 = vmatpush1.bf16.msra.mxu0 0
      %1604 = vmatprep.mubr.bf16.mxu0 0
      %1605 = vmatmul.mubr.bf16.gmra.mrb[0].mxu0 %v1516
      %v1606 = vpop.f32.mrb[0].mxu0
      %v1607 = vadd.f32 0.0, %v1606
      %v1608 = vpop.f32.mrb[0].mxu0
      %v1609 = vpop.f32.mrb[0].mxu0
      %v1610 = vadd.f32 0.0, %v1609
      %v1611 = vpop.f32.mrb[0].mxu0
      %1612 = vmatprep.mubr.bf16.mxu0 0
      %1613 = vmatmul.mubr.bf16.gmra.mrb[0].mxu0 %v1517
      %v1614 = vpop.f32.mrb[0].mxu0
      %v1615 = vadd.f32 0.0, %v1614
      %v1616 = vpop.f32.mrb[0].mxu0
      %v1617 = vpop.f32.mrb[0].mxu0
      %v1618 = vadd.f32 0.0, %v1617
      %v1619 = vpop.f32.mrb[0].mxu0
      %1620 = vmatprep.mubr.bf16.mxu0 0
      %1621 = vmatmul.mubr.bf16.gmra.mrb[0].mxu0 %v1518
      %v1622 = vpop.f32.mrb[0].mxu0
      %v1623 = vadd.f32 0.0, %v1622
      %v1624 = vpop.f32.mrb[0].mxu0
      %v1625 = vpop.f32.mrb[0].mxu0
      %v1626 = vadd.f32 0.0, %v1625
      %v1627 = vpop.f32.mrb[0].mxu0
      %1628 = vmatprep.mubr.bf16.mxu0 0
      %1629 = vmatmul.mubr.bf16.gmra.mrb[0].mxu0 %v1519
      %v1630 = vpop.f32.mrb[0].mxu0
      %v1631 = vadd.f32 0.0, %v1630
      %v1632 = vpop.f32.mrb[0].mxu0
      %v1633 = vpop.f32.mrb[0].mxu0
      %v1634 = vadd.f32 0.0, %v1633
      %v1635 = vpop.f32.mrb[0].mxu0
      %1636 = vdwg.mxu0
      %v1637 = vadd.f32 %v1356, %v1607
      %v1638 = vadd.f32 %v1357, %v1610
      %v1639 = vadd.f32 %v1358, %v1615
      %v1640 = vadd.f32 %v1359, %v1618
      %v1641 = vadd.f32 %v1360, %v1623
      %v1642 = vadd.f32 %v1361, %v1626
      %v1643 = vadd.f32 %v1362, %v1631
      %v1644 = vadd.f32 %v1363, %v1634
      %v1645 = vld [vmem:[%s499] sm:$0xe]
      %v1646 = vld [vmem:[%s499 + $0x8] sm:$0xe]
      %v1647 = vld [vmem:[%s499 + $0x10] sm:$0xe]
      %v1648 = vld [vmem:[%s499 + $0x18] sm:$0xe]
      %v1649 = vld [vmem:[%s499 + $0x20] sm:$0xe]
      %v1650 = vld [vmem:[%s499 + $0x28] sm:$0xe]
      %v1651 = vld [vmem:[%s499 + $0x30] sm:$0xe]
      %v1652 = vld [vmem:[%s499 + $0x38] sm:$0xe]
      %v1669 = vrot.slane %v1645, 5
      %v1670 = vrot.slane %v1669, 4
      %v1671 = vrot.slane %v1365, 5
      %v1672 = vsel %vm1009, %v1670, %v1671
      %v1673 = vrot.slane %v1646, 5
      %v1674 = vrot.slane %v1673, 4
      %v1675 = vrot.slane %v1367, 5
      %v1676 = vsel %vm1009, %v1674, %v1675
      %v1677 = vrot.slane %v1647, 5
      %v1678 = vrot.slane %v1677, 4
      %v1679 = vrot.slane %v1369, 5
      %v1680 = vsel %vm1009, %v1678, %v1679
      %v1681 = vrot.slane %v1648, 5
      %v1682 = vrot.slane %v1681, 4
      %v1683 = vrot.slane %v1371, 5
      %v1684 = vsel %vm1009, %v1682, %v1683
      %v1685 = vrot.slane %v1649, 5
      %v1686 = vrot.slane %v1685, 4
      %v1687 = vrot.slane %v1373, 5
      %v1688 = vsel %vm1009, %v1686, %v1687
      %v1689 = vrot.slane %v1650, 5
      %v1690 = vrot.slane %v1689, 4
      %v1691 = vrot.slane %v1375, 5
      %v1692 = vsel %vm1009, %v1690, %v1691
      %v1693 = vrot.slane %v1651, 5
      %v1694 = vrot.slane %v1693, 4
      %v1695 = vrot.slane %v1377, 5
      %v1696 = vsel %vm1009, %v1694, %v1695
      %v1697 = vrot.slane %v1652, 5
      %v1698 = vrot.slane %v1697, 4
      %v1699 = vrot.slane %v1379, 5
      %v1700 = vsel %vm1009, %v1698, %v1699
      %v1701 = vld [vmem:[%s291 + $0x140] sm:$0xf]
      %v1702 = vld [vmem:[%s291 + $0x144] sm:$0xf]
      %v1703 = vld [vmem:[%s291 + $0x148] sm:$0xf]
      %v1704 = vld [vmem:[%s291 + $0x14c] sm:$0xf]
      %v1705 = vld [vmem:[%s291 + $0x150] sm:$0xf]
      %v1706 = vld [vmem:[%s291 + $0x154] sm:$0xf]
      %v1707 = vld [vmem:[%s291 + $0x158] sm:$0xf]
      %v1708 = vld [vmem:[%s291 + $0x15c] sm:$0xf]
      %v1709 = vld [vmem:[%s291 + $0x160] sm:$0xf]
      %v1710 = vld [vmem:[%s291 + $0x164] sm:$0xf]
      %v1711 = vld [vmem:[%s291 + $0x168] sm:$0xf]
      %v1712 = vld [vmem:[%s291 + $0x16c] sm:$0xf]
      %v1713 = vld [vmem:[%s291 + $0x170] sm:$0xf]
      %v1714 = vld [vmem:[%s291 + $0x174] sm:$0xf]
      %v1715 = vld [vmem:[%s291 + $0x178] sm:$0xf]
      %v1716 = vld [vmem:[%s291 + $0x17c] sm:$0xf]
      %v1717 = vunpack.c.l.b16 %v1672
      %v1718 = vunpack.c.l.b16 %v1676
      %v1719 = vunpack.c.l.b16 %v1680
      %v1720 = vunpack.c.l.b16 %v1684
      %v1721 = vunpack.c.l.b16 %v1688
      %v1722 = vunpack.c.l.b16 %v1692
      %v1723 = vunpack.c.l.b16 %v1696
      %v1724 = vunpack.c.l.b16 %v1700
      %v1725 = vpack.c.b16 %v1718, %v1717
      %v1726 = vpack.c.b16 %v1720, %v1719
      %v1727 = vpack.c.b16 %v1722, %v1721
      %v1728 = vpack.c.b16 %v1724, %v1723
      %v1749 = vunpack.c.l.b16 %v1701
      %v1750 = vunpack.c.l.b16 %v1702
      %v1751 = vunpack.c.l.b16 %v1703
      %v1752 = vunpack.c.l.b16 %v1704
      %v1753 = vunpack.c.l.b16 %v1705
      %v1754 = vunpack.c.l.b16 %v1706
      %v1755 = vunpack.c.l.b16 %v1707
      %v1756 = vunpack.c.l.b16 %v1708
      %v1757 = vunpack.c.l.b16 %v1709
      %v1758 = vunpack.c.l.b16 %v1710
      %v1759 = vunpack.c.l.b16 %v1711
      %v1760 = vunpack.c.l.b16 %v1712
      %v1761 = vunpack.c.l.b16 %v1713
      %v1762 = vunpack.c.l.b16 %v1714
      %v1763 = vunpack.c.l.b16 %v1715
      %v1764 = vunpack.c.l.b16 %v1716
      %v1765 = vpack.c.b16 %v1750, %v1749
      %v1766 = vpack.c.b16 %v1752, %v1751
      %v1767 = vpack.c.b16 %v1754, %v1753
      %v1768 = vpack.c.b16 %v1756, %v1755
      %v1769 = vpack.c.b16 %v1758, %v1757
      %v1770 = vpack.c.b16 %v1760, %v1759
      %v1771 = vpack.c.b16 %v1762, %v1761
      %v1772 = vpack.c.b16 %v1764, %v1763
      %1781 = vmatprep.subr.bf16.mxu0 0
      %1782 = vmatpush1.bf16.msra.mxu0 %v1765
      %1783 = vmatprep.subr.bf16.mxu0 0
      %1784 = vmatpush1.bf16.msra.mxu0 %v1766
      %1785 = vmatprep.subr.bf16.mxu0 0
      %1786 = vmatpush1.bf16.msra.mxu0 %v1767
      %1787 = vmatprep.subr.bf16.mxu0 0
      %1788 = vmatpush1.bf16.msra.mxu0 %v1768
      %1789 = vmatprep.subr.bf16.mxu0 0
      %1790 = vmatpush1.bf16.msra.mxu0 %v1769
      %1791 = vmatprep.subr.bf16.mxu0 0
      %1792 = vmatpush1.bf16.msra.mxu0 %v1770
      %1793 = vmatprep.subr.bf16.mxu0 0
      %1794 = vmatpush1.bf16.msra.mxu0 %v1771
      %1795 = vmatprep.subr.bf16.mxu0 0
      %1796 = vmatpush1.bf16.msra.mxu0 %v1772
      %1797 = vmatprep.subr.bf16.mxu0 0
      %1798 = vmatpush1.bf16.msra.mxu0 0
      %1799 = vmatprep.subr.bf16.mxu0 0
      %1800 = vmatpush1.bf16.msra.mxu0 0
      %1801 = vmatprep.subr.bf16.mxu0 0
      %1802 = vmatpush1.bf16.msra.mxu0 0
      %1803 = vmatprep.subr.bf16.mxu0 0
      %1804 = vmatpush1.bf16.msra.mxu0 0
      %1805 = vmatprep.subr.bf16.mxu0 0
      %1806 = vmatpush1.bf16.msra.mxu0 0
      %1807 = vmatprep.subr.bf16.mxu0 0
      %1808 = vmatpush1.bf16.msra.mxu0 0
      %1809 = vmatprep.subr.bf16.mxu0 0
      %1810 = vmatpush1.bf16.msra.mxu0 0
      %1811 = vmatprep.subr.bf16.mxu0 0
      %1812 = vmatpush1.bf16.msra.mxu0 0
      %1813 = vmatprep.mubr.bf16.mxu0 0
      %1814 = vmatmul.mubr.bf16.gmra.mrb[0].mxu0 %v1725
      %v1815 = vpop.f32.mrb[0].mxu0
      %v1816 = vadd.f32 0.0, %v1815
      %v1817 = vpop.f32.mrb[0].mxu0
      %v1818 = vpop.f32.mrb[0].mxu0
      %v1819 = vadd.f32 0.0, %v1818
      %v1820 = vpop.f32.mrb[0].mxu0
      %1821 = vmatprep.mubr.bf16.mxu0 0
      %1822 = vmatmul.mubr.bf16.gmra.mrb[0].mxu0 %v1726
      %v1823 = vpop.f32.mrb[0].mxu0
      %v1824 = vadd.f32 0.0, %v1823
      %v1825 = vpop.f32.mrb[0].mxu0
      %v1826 = vpop.f32.mrb[0].mxu0
      %v1827 = vadd.f32 0.0, %v1826
      %v1828 = vpop.f32.mrb[0].mxu0
      %1829 = vmatprep.mubr.bf16.mxu0 0
      %1830 = vmatmul.mubr.bf16.gmra.mrb[0].mxu0 %v1727
      %v1831 = vpop.f32.mrb[0].mxu0
      %v1832 = vadd.f32 0.0, %v1831
      %v1833 = vpop.f32.mrb[0].mxu0
      %v1834 = vpop.f32.mrb[0].mxu0
      %v1835 = vadd.f32 0.0, %v1834
      %v1836 = vpop.f32.mrb[0].mxu0
      %1837 = vmatprep.mubr.bf16.mxu0 0
      %1838 = vmatmul.mubr.bf16.gmra.mrb[0].mxu0 %v1728
      %v1839 = vpop.f32.mrb[0].mxu0
      %v1840 = vadd.f32 0.0, %v1839
      %v1841 = vpop.f32.mrb[0].mxu0
      %v1842 = vpop.f32.mrb[0].mxu0
      %v1843 = vadd.f32 0.0, %v1842
      %v1844 = vpop.f32.mrb[0].mxu0
      %1845 = vdwg.mxu0
      %v1846 = vadd.f32 %v1637, %v1816
      %v1847 = vadd.f32 %v1638, %v1819
      %v1848 = vadd.f32 %v1639, %v1824
      %v1849 = vadd.f32 %v1640, %v1827
      %v1850 = vadd.f32 %v1641, %v1832
      %v1851 = vadd.f32 %v1642, %v1835
      %v1852 = vadd.f32 %v1643, %v1840
      %v1853 = vadd.f32 %v1644, %v1843
      %s1854 = scalar_lea.vmem [#allocation2], 16
      %v1855 = vld [vmem:[%s1854] sm:$0xf]
      %v1856 = vld [vmem:[%s1854 + $0x8] sm:$0xf]
      %v1857 = vld [vmem:[%s1854 + $0x10] sm:$0xf]
      %v1858 = vld [vmem:[%s1854 + $0x18] sm:$0xf]
      %v1859 = vld [vmem:[%s1854 + $0x20] sm:$0xf]
      %v1860 = vld [vmem:[%s1854 + $0x28] sm:$0xf]
      %v1861 = vld [vmem:[%s1854 + $0x30] sm:$0xf]
      %v1862 = vld [vmem:[%s1854 + $0x38] sm:$0xf]
      %v1863 = vld [vmem:[%s291 + $0x180] sm:$0xf]
      %v1864 = vld [vmem:[%s291 + $0x184] sm:$0xf]
      %v1865 = vld [vmem:[%s291 + $0x188] sm:$0xf]
      %v1866 = vld [vmem:[%s291 + $0x18c] sm:$0xf]
      %v1867 = vld [vmem:[%s291 + $0x190] sm:$0xf]
      %v1868 = vld [vmem:[%s291 + $0x194] sm:$0xf]
      %v1869 = vld [vmem:[%s291 + $0x198] sm:$0xf]
      %v1870 = vld [vmem:[%s291 + $0x19c] sm:$0xf]
      %v1871 = vld [vmem:[%s291 + $0x1a0] sm:$0xf]
      %v1872 = vld [vmem:[%s291 + $0x1a4] sm:$0xf]
      %v1873 = vld [vmem:[%s291 + $0x1a8] sm:$0xf]
      %v1874 = vld [vmem:[%s291 + $0x1ac] sm:$0xf]
      %v1875 = vld [vmem:[%s291 + $0x1b0] sm:$0xf]
      %v1876 = vld [vmem:[%s291 + $0x1b4] sm:$0xf]
      %v1877 = vld [vmem:[%s291 + $0x1b8] sm:$0xf]
      %v1878 = vld [vmem:[%s291 + $0x1bc] sm:$0xf]
      %v1887 = vunpack.c.l.b16 %v1855
      %v1888 = vunpack.c.l.b16 %v1856
      %v1889 = vunpack.c.l.b16 %v1857
      %v1890 = vunpack.c.l.b16 %v1858
      %v1891 = vunpack.c.l.b16 %v1859
      %v1892 = vunpack.c.l.b16 %v1860
      %v1893 = vunpack.c.l.b16 %v1861
      %v1894 = vunpack.c.l.b16 %v1862
      %v1895 = vpack.c.b16 %v1888, %v1887
      %v1896 = vpack.c.b16 %v1890, %v1889
      %v1897 = vpack.c.b16 %v1892, %v1891
      %v1898 = vpack.c.b16 %v1894, %v1893
      %v1919 = vunpack.c.l.b16 %v1863
      %v1920 = vunpack.c.l.b16 %v1864
      %v1921 = vunpack.c.l.b16 %v1865
      %v1922 = vunpack.c.l.b16 %v1866
      %v1923 = vunpack.c.l.b16 %v1867
      %v1924 = vunpack.c.l.b16 %v1868
      %v1925 = vunpack.c.l.b16 %v1869
      %v1926 = vunpack.c.l.b16 %v1870
      %v1927 = vunpack.c.l.b16 %v1871
      %v1928 = vunpack.c.l.b16 %v1872
      %v1929 = vunpack.c.l.b16 %v1873
      %v1930 = vunpack.c.l.b16 %v1874
      %v1931 = vunpack.c.l.b16 %v1875
      %v1932 = vunpack.c.l.b16 %v1876
      %v1933 = vunpack.c.l.b16 %v1877
      %v1934 = vunpack.c.l.b16 %v1878
      %v1935 = vpack.c.b16 %v1920, %v1919
      %v1936 = vpack.c.b16 %v1922, %v1921
      %v1937 = vpack.c.b16 %v1924, %v1923
      %v1938 = vpack.c.b16 %v1926, %v1925
      %v1939 = vpack.c.b16 %v1928, %v1927
      %v1940 = vpack.c.b16 %v1930, %v1929
      %v1941 = vpack.c.b16 %v1932, %v1931
      %v1942 = vpack.c.b16 %v1934, %v1933
      %1951 = vmatprep.subr.bf16.mxu0 0
      %1952 = vmatpush1.bf16.msra.mxu0 %v1935
      %1953 = vmatprep.subr.bf16.mxu0 0
      %1954 = vmatpush1.bf16.msra.mxu0 %v1936
      %1955 = vmatprep.subr.bf16.mxu0 0
      %1956 = vmatpush1.bf16.msra.mxu0 %v1937
      %1957 = vmatprep.subr.bf16.mxu0 0
      %1958 = vmatpush1.bf16.msra.mxu0 %v1938
      %1959 = vmatprep.subr.bf16.mxu0 0
      %1960 = vmatpush1.bf16.msra.mxu0 %v1939
      %1961 = vmatprep.subr.bf16.mxu0 0
      %1962 = vmatpush1.bf16.msra.mxu0 %v1940
      %1963 = vmatprep.subr.bf16.mxu0 0
      %1964 = vmatpush1.bf16.msra.mxu0 %v1941
      %1965 = vmatprep.subr.bf16.mxu0 0
      %1966 = vmatpush1.bf16.msra.mxu0 %v1942
      %1967 = vmatprep.subr.bf16.mxu0 0
      %1968 = vmatpush1.bf16.msra.mxu0 0
      %1969 = vmatprep.subr.bf16.mxu0 0
      %1970 = vmatpush1.bf16.msra.mxu0 0
      %1971 = vmatprep.subr.bf16.mxu0 0
      %1972 = vmatpush1.bf16.msra.mxu0 0
      %1973 = vmatprep.subr.bf16.mxu0 0
      %1974 = vmatpush1.bf16.msra.mxu0 0
      %1975 = vmatprep.subr.bf16.mxu0 0
      %1976 = vmatpush1.bf16.msra.mxu0 0
      %1977 = vmatprep.subr.bf16.mxu0 0
      %1978 = vmatpush1.bf16.msra.mxu0 0
      %1979 = vmatprep.subr.bf16.mxu0 0
      %1980 = vmatpush1.bf16.msra.mxu0 0
      %1981 = vmatprep.subr.bf16.mxu0 0
      %1982 = vmatpush1.bf16.msra.mxu0 0
      %1983 = vmatprep.mubr.bf16.mxu0 0
      %1984 = vmatmul.mubr.bf16.gmra.mrb[0].mxu0 %v1895
      %v1985 = vpop.f32.mrb[0].mxu0
      %v1986 = vadd.f32 0.0, %v1985
      %v1987 = vpop.f32.mrb[0].mxu0
      %v1988 = vpop.f32.mrb[0].mxu0
      %v1989 = vadd.f32 0.0, %v1988
      %v1990 = vpop.f32.mrb[0].mxu0
      %1991 = vmatprep.mubr.bf16.mxu0 0
      %1992 = vmatmul.mubr.bf16.gmra.mrb[0].mxu0 %v1896
      %v1993 = vpop.f32.mrb[0].mxu0
      %v1994 = vadd.f32 0.0, %v1993
      %v1995 = vpop.f32.mrb[0].mxu0
      %v1996 = vpop.f32.mrb[0].mxu0
      %v1997 = vadd.f32 0.0, %v1996
      %v1998 = vpop.f32.mrb[0].mxu0
      %1999 = vmatprep.mubr.bf16.mxu0 0
      %2000 = vmatmul.mubr.bf16.gmra.mrb[0].mxu0 %v1897
      %v2001 = vpop.f32.mrb[0].mxu0
      %v2002 = vadd.f32 0.0, %v2001
      %v2003 = vpop.f32.mrb[0].mxu0
      %v2004 = vpop.f32.mrb[0].mxu0
      %v2005 = vadd.f32 0.0, %v2004
      %v2006 = vpop.f32.mrb[0].mxu0
      %2007 = vmatprep.mubr.bf16.mxu0 0
      %2008 = vmatmul.mubr.bf16.gmra.mrb[0].mxu0 %v1898
      %v2009 = vpop.f32.mrb[0].mxu0
      %v2010 = vadd.f32 0.0, %v2009
      %v2011 = vpop.f32.mrb[0].mxu0
      %v2012 = vpop.f32.mrb[0].mxu0
      %v2013 = vadd.f32 0.0, %v2012
      %v2014 = vpop.f32.mrb[0].mxu0
      %2015 = vdwg.mxu0
      %v2016 = vadd.f32 %v1846, %v1986
      %v2017 = vadd.f32 %v1847, %v1989
      %v2018 = vadd.f32 %v1848, %v1994
      %v2019 = vadd.f32 %v1849, %v1997
      %v2020 = vadd.f32 %v1850, %v2002
      %v2021 = vadd.f32 %v1851, %v2005
      %v2022 = vadd.f32 %v1852, %v2010
      %v2023 = vadd.f32 %v1853, %v2013
      %v2024 = vld [vmem:[%s1854] sm:$0xf]
      %v2025 = vld [vmem:[%s1854 + $0x4] sm:$0x1]
      %v2026 = vld [vmem:[%s1854 + $0x8] sm:$0xf]
      %v2027 = vld [vmem:[%s1854 + $0xc] sm:$0x1]
      %v2028 = vld [vmem:[%s1854 + $0x10] sm:$0xf]
      %v2029 = vld [vmem:[%s1854 + $0x14] sm:$0x1]
      %v2030 = vld [vmem:[%s1854 + $0x18] sm:$0xf]
      %v2031 = vld [vmem:[%s1854 + $0x1c] sm:$0x1]
      %v2032 = vld [vmem:[%s1854 + $0x20] sm:$0xf]
      %v2033 = vld [vmem:[%s1854 + $0x24] sm:$0x1]
      %v2034 = vld [vmem:[%s1854 + $0x28] sm:$0xf]
      %v2035 = vld [vmem:[%s1854 + $0x2c] sm:$0x1]
      %v2036 = vld [vmem:[%s1854 + $0x30] sm:$0xf]
      %v2037 = vld [vmem:[%s1854 + $0x34] sm:$0x1]
      %v2038 = vld [vmem:[%s1854 + $0x38] sm:$0xf]
      %v2039 = vld [vmem:[%s1854 + $0x3c] sm:$0x1]
      %v2041 = vshrl.u32 %v2024, 16
      %v2043 = vrot.slane %v2041, 4
      %v2044 = vshll.u32 %v2024, 16
      %v2046 = vrot.slane %v2044, 5
      %v2047 = vor.u32 %v2043, %v2046
      %v2048 = vrot.slane %v2047, 4
      %v2050 = vshll.u32 %v2025, 16
      %v2052 = vrot.slane %v2050, 5
      %v2053 = vsel %vm588, %v2048, %v2052
      %v2055 = vshrl.u32 %v2026, 16
      %v2057 = vrot.slane %v2055, 4
      %v2058 = vshll.u32 %v2026, 16
      %v2060 = vrot.slane %v2058, 5
      %v2061 = vor.u32 %v2057, %v2060
      %v2062 = vrot.slane %v2061, 4
      %v2064 = vshll.u32 %v2027, 16
      %v2066 = vrot.slane %v2064, 5
      %v2067 = vsel %vm588, %v2062, %v2066
      %v2069 = vshrl.u32 %v2028, 16
      %v2071 = vrot.slane %v2069, 4
      %v2072 = vshll.u32 %v2028, 16
      %v2074 = vrot.slane %v2072, 5
      %v2075 = vor.u32 %v2071, %v2074
      %v2076 = vrot.slane %v2075, 4
      %v2078 = vshll.u32 %v2029, 16
      %v2080 = vrot.slane %v2078, 5
      %v2081 = vsel %vm588, %v2076, %v2080
      %v2083 = vshrl.u32 %v2030, 16
      %v2085 = vrot.slane %v2083, 4
      %v2086 = vshll.u32 %v2030, 16
      %v2088 = vrot.slane %v2086, 5
      %v2089 = vor.u32 %v2085, %v2088
      %v2090 = vrot.slane %v2089, 4
      %v2092 = vshll.u32 %v2031, 16
      %v2094 = vrot.slane %v2092, 5
      %v2095 = vsel %vm588, %v2090, %v2094
      %v2097 = vshrl.u32 %v2032, 16
      %v2099 = vrot.slane %v2097, 4
      %v2100 = vshll.u32 %v2032, 16
      %v2102 = vrot.slane %v2100, 5
      %v2103 = vor.u32 %v2099, %v2102
      %v2104 = vrot.slane %v2103, 4
      %v2106 = vshll.u32 %v2033, 16
      %v2108 = vrot.slane %v2106, 5
      %v2109 = vsel %vm588, %v2104, %v2108
      %v2111 = vshrl.u32 %v2034, 16
      %v2113 = vrot.slane %v2111, 4
      %v2114 = vshll.u32 %v2034, 16
      %v2116 = vrot.slane %v2114, 5
      %v2117 = vor.u32 %v2113, %v2116
      %v2118 = vrot.slane %v2117, 4
      %v2120 = vshll.u32 %v2035, 16
      %v2122 = vrot.slane %v2120, 5
      %v2123 = vsel %vm588, %v2118, %v2122
      %v2125 = vshrl.u32 %v2036, 16
      %v2127 = vrot.slane %v2125, 4
      %v2128 = vshll.u32 %v2036, 16
      %v2130 = vrot.slane %v2128, 5
      %v2131 = vor.u32 %v2127, %v2130
      %v2132 = vrot.slane %v2131, 4
      %v2134 = vshll.u32 %v2037, 16
      %v2136 = vrot.slane %v2134, 5
      %v2137 = vsel %vm588, %v2132, %v2136
      %v2139 = vshrl.u32 %v2038, 16
      %v2141 = vrot.slane %v2139, 4
      %v2142 = vshll.u32 %v2038, 16
      %v2144 = vrot.slane %v2142, 5
      %v2145 = vor.u32 %v2141, %v2144
      %v2146 = vrot.slane %v2145, 4
      %v2148 = vshll.u32 %v2039, 16
      %v2150 = vrot.slane %v2148, 5
      %v2151 = vsel %vm588, %v2146, %v2150
      %v2152 = vld [vmem:[%s291 + $0x1c0] sm:$0xf]
      %v2153 = vld [vmem:[%s291 + $0x1c4] sm:$0xf]
      %v2154 = vld [vmem:[%s291 + $0x1c8] sm:$0xf]
      %v2155 = vld [vmem:[%s291 + $0x1cc] sm:$0xf]
      %v2156 = vld [vmem:[%s291 + $0x1d0] sm:$0xf]
      %v2157 = vld [vmem:[%s291 + $0x1d4] sm:$0xf]
      %v2158 = vld [vmem:[%s291 + $0x1d8] sm:$0xf]
      %v2159 = vld [vmem:[%s291 + $0x1dc] sm:$0xf]
      %v2160 = vld [vmem:[%s291 + $0x1e0] sm:$0xf]
      %v2161 = vld [vmem:[%s291 + $0x1e4] sm:$0xf]
      %v2162 = vld [vmem:[%s291 + $0x1e8] sm:$0xf]
      %v2163 = vld [vmem:[%s291 + $0x1ec] sm:$0xf]
      %v2164 = vld [vmem:[%s291 + $0x1f0] sm:$0xf]
      %v2165 = vld [vmem:[%s291 + $0x1f4] sm:$0xf]
      %v2166 = vld [vmem:[%s291 + $0x1f8] sm:$0xf]
      %v2167 = vld [vmem:[%s291 + $0x1fc] sm:$0xf]
      %v2168 = vunpack.c.l.b16 %v2053
      %v2169 = vunpack.c.l.b16 %v2067
      %v2170 = vunpack.c.l.b16 %v2081
      %v2171 = vunpack.c.l.b16 %v2095
      %v2172 = vunpack.c.l.b16 %v2109
      %v2173 = vunpack.c.l.b16 %v2123
      %v2174 = vunpack.c.l.b16 %v2137
      %v2175 = vunpack.c.l.b16 %v2151
      %v2176 = vpack.c.b16 %v2169, %v2168
      %v2177 = vpack.c.b16 %v2171, %v2170
      %v2178 = vpack.c.b16 %v2173, %v2172
      %v2179 = vpack.c.b16 %v2175, %v2174
      %v2200 = vunpack.c.l.b16 %v2152
      %v2201 = vunpack.c.l.b16 %v2153
      %v2202 = vunpack.c.l.b16 %v2154
      %v2203 = vunpack.c.l.b16 %v2155
      %v2204 = vunpack.c.l.b16 %v2156
      %v2205 = vunpack.c.l.b16 %v2157
      %v2206 = vunpack.c.l.b16 %v2158
      %v2207 = vunpack.c.l.b16 %v2159
      %v2208 = vunpack.c.l.b16 %v2160
      %v2209 = vunpack.c.l.b16 %v2161
      %v2210 = vunpack.c.l.b16 %v2162
      %v2211 = vunpack.c.l.b16 %v2163
      %v2212 = vunpack.c.l.b16 %v2164
      %v2213 = vunpack.c.l.b16 %v2165
      %v2214 = vunpack.c.l.b16 %v2166
      %v2215 = vunpack.c.l.b16 %v2167
      %v2216 = vpack.c.b16 %v2201, %v2200
      %v2217 = vpack.c.b16 %v2203, %v2202
      %v2218 = vpack.c.b16 %v2205, %v2204
      %v2219 = vpack.c.b16 %v2207, %v2206
      %v2220 = vpack.c.b16 %v2209, %v2208
      %v2221 = vpack.c.b16 %v2211, %v2210
      %v2222 = vpack.c.b16 %v2213, %v2212
      %v2223 = vpack.c.b16 %v2215, %v2214
      %2232 = vmatprep.subr.bf16.mxu0 0
      %2233 = vmatpush1.bf16.msra.mxu0 %v2216
      %2234 = vmatprep.subr.bf16.mxu0 0
      %2235 = vmatpush1.bf16.msra.mxu0 %v2217
      %2236 = vmatprep.subr.bf16.mxu0 0
      %2237 = vmatpush1.bf16.msra.mxu0 %v2218
      %2238 = vmatprep.subr.bf16.mxu0 0
      %2239 = vmatpush1.bf16.msra.mxu0 %v2219
      %2240 = vmatprep.subr.bf16.mxu0 0
      %2241 = vmatpush1.bf16.msra.mxu0 %v2220
      %2242 = vmatprep.subr.bf16.mxu0 0
      %2243 = vmatpush1.bf16.msra.mxu0 %v2221
      %2244 = vmatprep.subr.bf16.mxu0 0
      %2245 = vmatpush1.bf16.msra.mxu0 %v2222
      %2246 = vmatprep.subr.bf16.mxu0 0
      %2247 = vmatpush1.bf16.msra.mxu0 %v2223
      %2248 = vmatprep.subr.bf16.mxu0 0
      %2249 = vmatpush1.bf16.msra.mxu0 0
      %2250 = vmatprep.subr.bf16.mxu0 0
      %2251 = vmatpush1.bf16.msra.mxu0 0
      %2252 = vmatprep.subr.bf16.mxu0 0
      %2253 = vmatpush1.bf16.msra.mxu0 0
      %2254 = vmatprep.subr.bf16.mxu0 0
      %2255 = vmatpush1.bf16.msra.mxu0 0
      %2256 = vmatprep.subr.bf16.mxu0 0
      %2257 = vmatpush1.bf16.msra.mxu0 0
      %2258 = vmatprep.subr.bf16.mxu0 0
      %2259 = vmatpush1.bf16.msra.mxu0 0
      %2260 = vmatprep.subr.bf16.mxu0 0
      %2261 = vmatpush1.bf16.msra.mxu0 0
      %2262 = vmatprep.subr.bf16.mxu0 0
      %2263 = vmatpush1.bf16.msra.mxu0 0
      %2264 = vmatprep.mubr.bf16.mxu0 0
      %2265 = vmatmul.mubr.bf16.gmra.mrb[0].mxu0 %v2176
      %v2266 = vpop.f32.mrb[0].mxu0
      %v2267 = vadd.f32 0.0, %v2266
      %v2268 = vpop.f32.mrb[0].mxu0
      %v2269 = vpop.f32.mrb[0].mxu0
      %v2270 = vadd.f32 0.0, %v2269
      %v2271 = vpop.f32.mrb[0].mxu0
      %2272 = vmatprep.mubr.bf16.mxu0 0
      %2273 = vmatmul.mubr.bf16.gmra.mrb[0].mxu0 %v2177
      %v2274 = vpop.f32.mrb[0].mxu0
      %v2275 = vadd.f32 0.0, %v2274
      %v2276 = vpop.f32.mrb[0].mxu0
      %v2277 = vpop.f32.mrb[0].mxu0
      %v2278 = vadd.f32 0.0, %v2277
      %v2279 = vpop.f32.mrb[0].mxu0
      %2280 = vmatprep.mubr.bf16.mxu0 0
      %2281 = vmatmul.mubr.bf16.gmra.mrb[0].mxu0 %v2178
      %v2282 = vpop.f32.mrb[0].mxu0
      %v2283 = vadd.f32 0.0, %v2282
      %v2284 = vpop.f32.mrb[0].mxu0
      %v2285 = vpop.f32.mrb[0].mxu0
      %v2286 = vadd.f32 0.0, %v2285
      %v2287 = vpop.f32.mrb[0].mxu0
      %2288 = vmatprep.mubr.bf16.mxu0 0
      %2289 = vmatmul.mubr.bf16.gmra.mrb[0].mxu0 %v2179
      %v2290 = vpop.f32.mrb[0].mxu0
      %v2291 = vadd.f32 0.0, %v2290
      %v2292 = vpop.f32.mrb[0].mxu0
      %v2293 = vpop.f32.mrb[0].mxu0
      %v2294 = vadd.f32 0.0, %v2293
      %v2295 = vpop.f32.mrb[0].mxu0
      %2296 = vdwg.mxu0
      %v2297 = vadd.f32 %v2016, %v2267
      %v2298 = vadd.f32 %v2017, %v2270
      %v2299 = vadd.f32 %v2018, %v2275
      %v2300 = vadd.f32 %v2019, %v2278
      %v2301 = vadd.f32 %v2020, %v2283
      %v2302 = vadd.f32 %v2021, %v2286
      %v2303 = vadd.f32 %v2022, %v2291
      %v2304 = vadd.f32 %v2023, %v2294
      %v2305 = vld [vmem:[%s1854] sm:$0xe]
      %v2306 = vld [vmem:[%s1854 + $0x8] sm:$0xe]
      %v2307 = vld [vmem:[%s1854 + $0x10] sm:$0xe]
      %v2308 = vld [vmem:[%s1854 + $0x18] sm:$0xe]
      %v2309 = vld [vmem:[%s1854 + $0x20] sm:$0xe]
      %v2310 = vld [vmem:[%s1854 + $0x28] sm:$0xe]
      %v2311 = vld [vmem:[%s1854 + $0x30] sm:$0xe]
      %v2312 = vld [vmem:[%s1854 + $0x38] sm:$0xe]
      %v2329 = vrot.slane %v2305, 5
      %v2330 = vrot.slane %v2329, 4
      %v2331 = vrot.slane %v2025, 5
      %v2332 = vsel %vm1009, %v2330, %v2331
      %v2333 = vrot.slane %v2306, 5
      %v2334 = vrot.slane %v2333, 4
      %v2335 = vrot.slane %v2027, 5
      %v2336 = vsel %vm1009, %v2334, %v2335
      %v2337 = vrot.slane %v2307, 5
      %v2338 = vrot.slane %v2337, 4
      %v2339 = vrot.slane %v2029, 5
      %v2340 = vsel %vm1009, %v2338, %v2339
      %v2341 = vrot.slane %v2308, 5
      %v2342 = vrot.slane %v2341, 4
      %v2343 = vrot.slane %v2031, 5
      %v2344 = vsel %vm1009, %v2342, %v2343
      %v2345 = vrot.slane %v2309, 5
      %v2346 = vrot.slane %v2345, 4
      %v2347 = vrot.slane %v2033, 5
      %v2348 = vsel %vm1009, %v2346, %v2347
      %v2349 = vrot.slane %v2310, 5
      %v2350 = vrot.slane %v2349, 4
      %v2351 = vrot.slane %v2035, 5
      %v2352 = vsel %vm1009, %v2350, %v2351
      %v2353 = vrot.slane %v2311, 5
      %v2354 = vrot.slane %v2353, 4
      %v2355 = vrot.slane %v2037, 5
      %v2356 = vsel %vm1009, %v2354, %v2355
      %v2357 = vrot.slane %v2312, 5
      %v2358 = vrot.slane %v2357, 4
      %v2359 = vrot.slane %v2039, 5
      %v2360 = vsel %vm1009, %v2358, %v2359
      %v2361 = vld [vmem:[%s291 + $0x200] sm:$0xf]
      %v2362 = vld [vmem:[%s291 + $0x204] sm:$0xf]
      %v2363 = vld [vmem:[%s291 + $0x208] sm:$0xf]
      %v2364 = vld [vmem:[%s291 + $0x20c] sm:$0xf]
      %v2365 = vld [vmem:[%s291 + $0x210] sm:$0xf]
      %v2366 = vld [vmem:[%s291 + $0x214] sm:$0xf]
      %v2367 = vld [vmem:[%s291 + $0x218] sm:$0xf]
      %v2368 = vld [vmem:[%s291 + $0x21c] sm:$0xf]
      %v2369 = vld [vmem:[%s291 + $0x220] sm:$0xf]
      %v2370 = vld [vmem:[%s291 + $0x224] sm:$0xf]
      %v2371 = vld [vmem:[%s291 + $0x228] sm:$0xf]
      %v2372 = vld [vmem:[%s291 + $0x22c] sm:$0xf]
      %v2373 = vld [vmem:[%s291 + $0x230] sm:$0xf]
      %v2374 = vld [vmem:[%s291 + $0x234] sm:$0xf]
      %v2375 = vld [vmem:[%s291 + $0x238] sm:$0xf]
      %v2376 = vld [vmem:[%s291 + $0x23c] sm:$0xf]
      %v2377 = vunpack.c.l.b16 %v2332
      %v2378 = vunpack.c.l.b16 %v2336
      %v2379 = vunpack.c.l.b16 %v2340
      %v2380 = vunpack.c.l.b16 %v2344
      %v2381 = vunpack.c.l.b16 %v2348
      %v2382 = vunpack.c.l.b16 %v2352
      %v2383 = vunpack.c.l.b16 %v2356
      %v2384 = vunpack.c.l.b16 %v2360
      %v2385 = vpack.c.b16 %v2378, %v2377
      %v2386 = vpack.c.b16 %v2380, %v2379
      %v2387 = vpack.c.b16 %v2382, %v2381
      %v2388 = vpack.c.b16 %v2384, %v2383
      %v2409 = vunpack.c.l.b16 %v2361
      %v2410 = vunpack.c.l.b16 %v2362
      %v2411 = vunpack.c.l.b16 %v2363
      %v2412 = vunpack.c.l.b16 %v2364
      %v2413 = vunpack.c.l.b16 %v2365
      %v2414 = vunpack.c.l.b16 %v2366
      %v2415 = vunpack.c.l.b16 %v2367
      %v2416 = vunpack.c.l.b16 %v2368
      %v2417 = vunpack.c.l.b16 %v2369
      %v2418 = vunpack.c.l.b16 %v2370
      %v2419 = vunpack.c.l.b16 %v2371
      %v2420 = vunpack.c.l.b16 %v2372
      %v2421 = vunpack.c.l.b16 %v2373
      %v2422 = vunpack.c.l.b16 %v2374
      %v2423 = vunpack.c.l.b16 %v2375
      %v2424 = vunpack.c.l.b16 %v2376
      %v2425 = vpack.c.b16 %v2410, %v2409
      %v2426 = vpack.c.b16 %v2412, %v2411
      %v2427 = vpack.c.b16 %v2414, %v2413
      %v2428 = vpack.c.b16 %v2416, %v2415
      %v2429 = vpack.c.b16 %v2418, %v2417
      %v2430 = vpack.c.b16 %v2420, %v2419
      %v2431 = vpack.c.b16 %v2422, %v2421
      %v2432 = vpack.c.b16 %v2424, %v2423
      %2441 = vmatprep.subr.bf16.mxu0 0
      %2442 = vmatpush1.bf16.msra.mxu0 %v2425
      %2443 = vmatprep.subr.bf16.mxu0 0
      %2444 = vmatpush1.bf16.msra.mxu0 %v2426
      %2445 = vmatprep.subr.bf16.mxu0 0
      %2446 = vmatpush1.bf16.msra.mxu0 %v2427
      %2447 = vmatprep.subr.bf16.mxu0 0
      %2448 = vmatpush1.bf16.msra.mxu0 %v2428
      %2449 = vmatprep.subr.bf16.mxu0 0
      %2450 = vmatpush1.bf16.msra.mxu0 %v2429
      %2451 = vmatprep.subr.bf16.mxu0 0
      %2452 = vmatpush1.bf16.msra.mxu0 %v2430
      %2453 = vmatprep.subr.bf16.mxu0 0
      %2454 = vmatpush1.bf16.msra.mxu0 %v2431
      %2455 = vmatprep.subr.bf16.mxu0 0
      %2456 = vmatpush1.bf16.msra.mxu0 %v2432
      %2457 = vmatprep.subr.bf16.mxu0 0
      %2458 = vmatpush1.bf16.msra.mxu0 0
      %2459 = vmatprep.subr.bf16.mxu0 0
      %2460 = vmatpush1.bf16.msra.mxu0 0
      %2461 = vmatprep.subr.bf16.mxu0 0
      %2462 = vmatpush1.bf16.msra.mxu0 0
      %2463 = vmatprep.subr.bf16.mxu0 0
      %2464 = vmatpush1.bf16.msra.mxu0 0
      %2465 = vmatprep.subr.bf16.mxu0 0
      %2466 = vmatpush1.bf16.msra.mxu0 0
      %2467 = vmatprep.subr.bf16.mxu0 0
      %2468 = vmatpush1.bf16.msra.mxu0 0
      %2469 = vmatprep.subr.bf16.mxu0 0
      %2470 = vmatpush1.bf16.msra.mxu0 0
      %2471 = vmatprep.subr.bf16.mxu0 0
      %2472 = vmatpush1.bf16.msra.mxu0 0
      %2473 = vmatprep.mubr.bf16.mxu0 0
      %2474 = vmatmul.mubr.bf16.gmra.mrb[0].mxu0 %v2385
      %v2475 = vpop.f32.mrb[0].mxu0
      %v2476 = vadd.f32 0.0, %v2475
      %v2477 = vpop.f32.mrb[0].mxu0
      %v2478 = vpop.f32.mrb[0].mxu0
      %v2479 = vadd.f32 0.0, %v2478
      %v2480 = vpop.f32.mrb[0].mxu0
      %2481 = vmatprep.mubr.bf16.mxu0 0
      %2482 = vmatmul.mubr.bf16.gmra.mrb[0].mxu0 %v2386
      %v2483 = vpop.f32.mrb[0].mxu0
      %v2484 = vadd.f32 0.0, %v2483
      %v2485 = vpop.f32.mrb[0].mxu0
      %v2486 = vpop.f32.mrb[0].mxu0
      %v2487 = vadd.f32 0.0, %v2486
      %v2488 = vpop.f32.mrb[0].mxu0
      %2489 = vmatprep.mubr.bf16.mxu0 0
      %2490 = vmatmul.mubr.bf16.gmra.mrb[0].mxu0 %v2387
      %v2491 = vpop.f32.mrb[0].mxu0
      %v2492 = vadd.f32 0.0, %v2491
      %v2493 = vpop.f32.mrb[0].mxu0
      %v2494 = vpop.f32.mrb[0].mxu0
      %v2495 = vadd.f32 0.0, %v2494
      %v2496 = vpop.f32.mrb[0].mxu0
      %2497 = vmatprep.mubr.bf16.mxu0 0
      %2498 = vmatmul.mubr.bf16.gmra.mrb[0].mxu0 %v2388
      %v2499 = vpop.f32.mrb[0].mxu0
      %v2500 = vadd.f32 0.0, %v2499
      %v2501 = vpop.f32.mrb[0].mxu0
      %v2502 = vpop.f32.mrb[0].mxu0
      %v2503 = vadd.f32 0.0, %v2502
      %v2504 = vpop.f32.mrb[0].mxu0
      %2505 = vdwg.mxu0
      %v2506 = vadd.f32 %v2297, %v2476
      %v2507 = vadd.f32 %v2298, %v2479
      %v2508 = vadd.f32 %v2299, %v2484
      %v2509 = vadd.f32 %v2300, %v2487
      %v2510 = vadd.f32 %v2301, %v2492
      %v2511 = vadd.f32 %v2302, %v2495
      %v2512 = vadd.f32 %v2303, %v2500
      %v2513 = vadd.f32 %v2304, %v2503
      %v2514 = vpack.c.bf16 %v2507, %v2506
      %v2515 = vpack.c.bf16 %v2509, %v2508
      %v2516 = vpack.c.bf16 %v2511, %v2510
      %v2517 = vpack.c.bf16 %v2513, %v2512
      %v2522 = vunpack.c.l.b16 %v2514
      %v2523 = vunpack.c.h.b16 %v2514
      %v2524 = vunpack.c.l.b16 %v2515
      %v2525 = vunpack.c.h.b16 %v2515
      %v2526 = vunpack.c.l.b16 %v2516
      %v2527 = vunpack.c.h.b16 %v2516
      %v2528 = vunpack.c.l.b16 %v2517
      %v2529 = vunpack.c.h.b16 %v2517
      %v2530 = vpack.c.b16 %v2522, %v2522
      %v2531 = vpack.c.b16 %v2523, %v2523
      %v2532 = vpack.c.b16 %v2524, %v2524
      %v2533 = vpack.c.b16 %v2525, %v2525
      %v2534 = vpack.c.b16 %v2526, %v2526
      %v2535 = vpack.c.b16 %v2527, %v2527
      %v2536 = vpack.c.b16 %v2528, %v2528
      %v2537 = vpack.c.b16 %v2529, %v2529
      %2546 = vst [vmem:[%s299] sm:$0xf] %v2530
      %2547 = vst [vmem:[%s299 + $0x4] sm:$0xf] %v2531
      %2548 = vst [vmem:[%s299 + $0x8] sm:$0xf] %v2532
      %2549 = vst [vmem:[%s299 + $0xc] sm:$0xf] %v2533
      %2550 = vst [vmem:[%s299 + $0x10] sm:$0xf] %v2534
      %2551 = vst [vmem:[%s299 + $0x14] sm:$0xf] %v2535
      %2552 = vst [vmem:[%s299 + $0x18] sm:$0xf] %v2536
      %2553 = vst [vmem:[%s299 + $0x1c] sm:$0xf] %v2537
      %v2554 = vld [vmem:[%s302] sm:$0x1]
      %v2555 = vadd.f32 %v2506, %v2507
      %v2556 = vadd.f32 %v2555, %v2508
      %v2557 = vadd.f32 %v2556, %v2509
      %v2558 = vadd.f32 %v2557, %v2510
      %v2559 = vadd.f32 %v2558, %v2511
      %v2560 = vadd.f32 %v2559, %v2512
      %v2561 = vadd.f32 %v2560, %v2513
      %v2562 = vrot.slane %v2561, 4
      %v2563 = vadd.f32 %v2561, %v2562
      %v2564 = vrot.slane %v2563, 2
      %v2565 = vadd.f32 %v2563, %v2564
      %v2566 = vrot.slane %v2565, 1
      %v2567 = vadd.f32 %v2565, %v2566
      %v2568 = vadd.f32 %v2554, %v2567
      %2569 = vst [vmem:[%s302] sm:$0x1] %v2568
      %v2570 = vld [vmem:[%s305] sm:$0x1]
      %v2571 = vmul.f32 %v2506, %v2506
      %v2572 = vmul.f32 %v2507, %v2507
      %v2573 = vmul.f32 %v2508, %v2508
      %v2574 = vmul.f32 %v2509, %v2509
      %v2575 = vmul.f32 %v2510, %v2510
      %v2576 = vmul.f32 %v2511, %v2511
      %v2577 = vmul.f32 %v2512, %v2512
      %v2578 = vmul.f32 %v2513, %v2513
      %v2579 = vadd.f32 %v2571, %v2572
      %v2580 = vadd.f32 %v2579, %v2573
      %v2581 = vadd.f32 %v2580, %v2574
      %v2582 = vadd.f32 %v2581, %v2575
      %v2583 = vadd.f32 %v2582, %v2576
      %v2584 = vadd.f32 %v2583, %v2577
      %v2585 = vadd.f32 %v2584, %v2578
      %v2586 = vrot.slane %v2585, 4
      %v2587 = vadd.f32 %v2585, %v2586
      %v2588 = vrot.slane %v2587, 2
      %v2589 = vadd.f32 %v2587, %v2588
      %v2590 = vrot.slane %v2589, 1
      %v2591 = vadd.f32 %v2589, %v2590
      %v2592 = vadd.f32 %v2570, %v2591
      %2593 = vst [vmem:[%s305] sm:$0x1] %v2592
      %p2594 = scmp.lt.s32.totalorder %s23, 1
      %s2595 = scalar_select %p2594, %s23, 1
      %p2596 = scmp.lt.s32.totalorder %s22, 0
      %s2597 = scalar_select %p2596, %s22, 0
      %s2598 = smul.addr %s2595, 8
      %s2599 = sadd.s32 %s2597, %s2598
      %s2600 = smul.addr %s2599, 4
      %s2601 = scalar_lea.vmem %s4, %s2600
      %p2602 = scmp.lt.s32.totalorder %s22, 0
      %s2603 = scalar_select %p2602, %s22, 0
      %s2604 = scalar_lea.vmem %s5, %s2603
      %p2605 = scmp.lt.s32.totalorder %s22, 0
      %s2606 = scalar_select %p2605, %s22, 0
      %s2607 = scalar_lea.vmem %s6, %s2606
      // Predicated region
      $region41: #{basic_block_forward.4} parent=35 // pred_check
        %p2608 = pneg %p144
      $region42: #{basic_block_forward.4} parent=35 // pred_check_branch
        %2610 = sbr.rel (%p2608) target = $region44
      $region43: #{basic_block_forward.4} parent=35 // pred_region
        _
      $region44: #{basic_block_forward.4} parent=35 // pred_fallthru
        _
      // Predicated region
      $region45: #{basic_block_forward.4} parent=35 // pred_check
        %p2611 = pneg %p170
      $region46: #{basic_block_forward.4} parent=35 // pred_check_branch
        %2613 = sbr.rel (%p2611) target = $region48
      $region47: #{basic_block_forward.4} parent=35 // pred_region
        _
      $region48: #{basic_block_forward.4} parent=35 // pred_fallthru
        _
      // Predicated region
      $region49: #{basic_block_forward.4} parent=35 // pred_check
        %p2614 = pneg %p196
      $region50: #{basic_block_forward.4} parent=35 // pred_check_branch
        %2616 = sbr.rel (%p2614) target = $region52
      $region51: #{basic_block_forward.4} parent=35 // pred_region
        _
      $region52: #{basic_block_forward.4} parent=35 // pred_fallthru
        _
      // Predicated region
      $region53: #{basic_block_forward.4} parent=35 // pred_check
        %p2617 = pneg %p170
      $region54: #{basic_block_forward.4} parent=35 // pred_check_branch
        %2619 = sbr.rel (%p2617) target = $region56
      $region55: #{basic_block_forward.4} parent=35 // pred_region
        %p2620 = scmp.lt.s32.totalorder %s22, 0
        %s2621 = scalar_select %p2620, %s22, 0
        %s2622 = scalar_lea.vmem %s5, %s2621
      $region56: #{basic_block_forward.4} parent=35 // pred_fallthru
        _
      // Predicated region
      $region57: #{basic_block_forward.4} parent=35 // pred_check
        %p2623 = pneg %p196
      $region58: #{basic_block_forward.4} parent=35 // pred_check_branch
        %2625 = sbr.rel (%p2623) target = $region60
      $region59: #{basic_block_forward.4} parent=35 // pred_region
        %p2626 = scmp.lt.s32.totalorder %s22, 0
        %s2627 = scalar_select %p2626, %s22, 0
        %s2628 = scalar_lea.vmem %s6, %s2627
      $region60: #{basic_block_forward.4} parent=35 // pred_fallthru
        _
    $region36: #{basic_block_forward.4} parent=5 // pred_fallthru
      _
    %p2629 = scmp.le.s32.totalorder 2, %s13
    // Predicated region
    $region61: #{basic_block_forward.4} parent=5 // pred_check
      %p2630 = pneg %p2629
    $region62: #{basic_block_forward.4} parent=5 // pred_check_branch
      %2632 = sbr.rel (%p2630) target = $region64
    $region63: #{basic_block_forward.4} parent=5 // pred_region
      %s2633 = ssub.s32 %s13, 2
      // Predicated region
      $region65: #{basic_block_forward.4} parent=63 // pred_check
        %p2634 = pneg %p150
      $region66: #{basic_block_forward.4} parent=63 // pred_check_branch
        %2636 = sbr.rel (%p2634) target = $region68
      $region67: #{basic_block_forward.4} parent=63 // pred_region
        %p2637 = scmp.lt.s32.totalorder %s25, 1
        %s2638 = scalar_select %p2637, %s25, 1
        %p2639 = scmp.lt.s32.totalorder %s24, 0
        %s2640 = scalar_select %p2639, %s24, 0
        %s2641 = smul.addr %s2638, 8
        %s2642 = sadd.s32 %s2640, %s2641
        %s2643 = smul.addr %s2642, 4
        %s2644 = scalar_lea.vmem %s4, %s2643
      $region68: #{basic_block_forward.4} parent=63 // pred_fallthru
        _
    $region64: #{basic_block_forward.4} parent=5 // pred_fallthru
      _
  $region6: #{basic_block_forward.4} parent=0 // loop_footer
    %s17 = sadd.s32 1, %s13
  $region7: #{basic_block_forward.4} parent=0 // loop_footer_branch
    %12 = sbr.rel target = $region3
  $region8: #{basic_block_forward.4} parent=0 // loop_exit
    _

</llo_original>
